<compile_context>
chip_gen: v7x
topology: tpu7x:2x2x1
jax: 0.10.0
libtpu: 0.0.40
codegen_flags: <defaults>
</compile_context>

<pallas_src>
import jax
import jax.numpy as jnp
from jax.experimental import pallas as pl
from jax.experimental.pallas import tpu as pltpu


def _round_up(x, m):
    return ((x + m - 1) // m) * m


def regressor_kernel(x1_ref, x2_ref, x3_ref,
                     w1a_ref, w1b_ref, w1c_ref, b1_ref,
                     w2_ref, b2_ref, w3_ref, b3_ref,
                     o_ref):
    # x*: (TM, 512) bf16, w1*/w2: (512, 512) bf16, b1/b2/w3: (1, 512) f32,
    # b3: (1, 1) f32, out: (TM, 1) f32.

    # convA (1x1, Cin=1536 split into 3 streams) + bias + ReLU. bf16 MXU
    # matmuls, f32 accumulation.
    h = jnp.dot(x1_ref[...], w1a_ref[...], preferred_element_type=jnp.float32)
    h = h + jnp.dot(x2_ref[...], w1b_ref[...],
                    preferred_element_type=jnp.float32)
    h = h + jnp.dot(x3_ref[...], w1c_ref[...],
                    preferred_element_type=jnp.float32)
    h = jnp.maximum(h + b1_ref[...], 0.0)

    # convB (1x1) + bias + ReLU.
    h = jnp.dot(h.astype(jnp.bfloat16), w2_ref[...],
                preferred_element_type=jnp.float32)
    h = jnp.maximum(h + b2_ref[...], 0.0)

    # dropout(p=0.5): identity at inference (eval mode).

    # convC (1x1, Cout=1): VPU multiply + lane reduce, f32.
    y = jnp.sum(h * w3_ref[...], axis=-1, keepdims=True) + b3_ref[0, 0]

    # Tanh activation.
    o_ref[...] = jnp.tanh(y)


def global_regressor_test_phase(x_1_1, x_1_2, x_2, params):
    """'test' phase forward.

    Inputs are three NCHW float32 feature maps with 512 channels each
    (logical concat -> 1536 channels). Returns an NCHW output with 1 channel.
    """
    w1a, w1b, w1c, b1, w2, b2, w3, b3 = params
    N, C, H, W = x_1_1.shape
    assert C == 512
    assert x_1_2.shape == x_1_1.shape and x_2.shape == x_1_1.shape
    M = N * H * W

    def to_rows(x):
        # NCHW -> NHWC -> (M, C): channels on the TPU lane axis. The bf16 cast
        # fuses with the transpose copy in XLA and halves the kernel's HBM
        # activation read.
        return jnp.transpose(x, (0, 2, 3, 1)).reshape(M, C).astype(jnp.bfloat16)

    x1, x2, x3 = to_rows(x_1_1), to_rows(x_1_2), to_rows(x_2)

    # Tile over pixels. TM=512 keeps the working set well inside v5e's 16 MiB
    # scoped VMEM (3 bf16 x-tiles * 2 buffers = 3 MiB, bf16 weights = 2 MiB,
    # f32 intermediates ~= 1 MiB) while being large enough to amortize the
    # ~0.35 us per-step overhead.
    TM = min(512, _round_up(M, 8))
    M_pad = _round_up(M, TM)
    if M_pad != M:
        pad = ((0, M_pad - M), (0, 0))
        x1 = jnp.pad(x1, pad)
        x2 = jnp.pad(x2, pad)
        x3 = jnp.pad(x3, pad)

    grid = (M_pad // TM,)

    x_spec = pl.BlockSpec((TM, 512), lambda i: (i, 0))
    w_spec = pl.BlockSpec((512, 512), lambda i: (0, 0))      # VMEM-resident
    v_spec = pl.BlockSpec((1, 512), lambda i: (0, 0))
    s_spec = pl.BlockSpec((1, 1), lambda i: (0, 0))

    flops = 2 * M_pad * (1536 * 512 + 512 * 512) + 2 * M_pad * 512
    bytes_accessed = (3 * M_pad * 512 * 2            # bf16 activations
                      + 4 * 512 * 512 * 2            # bf16 weights
                      + 3 * 512 * 4 + 4              # f32 biases / w3
                      + M_pad * 4)                   # f32 output

    out_flat = pl.pallas_call(
        regressor_kernel,
        out_shape=jax.ShapeDtypeStruct((M_pad, 1), jnp.float32),
        grid=grid,
        in_specs=[x_spec, x_spec, x_spec,
                  w_spec, w_spec, w_spec, v_spec,
                  w_spec, v_spec,
                  v_spec, s_spec],
        out_specs=pl.BlockSpec((TM, 1), lambda i: (i, 0)),
        compiler_params=pltpu.CompilerParams(
            dimension_semantics=("parallel",),
            vmem_limit_bytes=32 * 1024 * 1024),
        cost_estimate=pl.CostEstimate(
            flops=flops, transcendentals=M_pad,
            bytes_accessed=bytes_accessed),
    )(x1, x2, x3, w1a, w1b, w1c, b1, w2, b2, w3, b3)

    # (M_pad, 1) -> drop padding -> (N, 1, H, W)
    out_flat = out_flat[:M]
    return jnp.transpose(out_flat.reshape(N, H, W, 1), (0, 3, 1, 2))


def init_params(key):
    """Deterministic synthetic weights matching Regressor(1536, 512)."""
    k1, k2, k3 = jax.random.split(key, 3)
    # convA: Conv2d(1536, 512, 1) stored as (Cin, Cout), pre-split into the
    # three 512-channel input streams and cast to bf16 (MXU operand dtype).
    w1 = (jax.random.normal(k1, (1536, 512), jnp.float32) * 0.02)
    w1a = w1[0:512].astype(jnp.bfloat16)
    w1b = w1[512:1024].astype(jnp.bfloat16)
    w1c = w1[1024:1536].astype(jnp.bfloat16)
    b1 = jnp.full((1, 512), 0.01, jnp.float32)
    # convB: Conv2d(512, 512, 1)
    w2 = (jax.random.normal(k2, (512, 512), jnp.float32) * 0.02
          ).astype(jnp.bfloat16)
    b2 = jnp.full((1, 512), -0.01, jnp.float32)
    # convC: Conv2d(512, 1, 1) stored transposed as (1, 512), kept f32 (VPU).
    w3 = jax.random.normal(k3, (1, 512), jnp.float32) * 0.02
    b3 = jnp.zeros((1, 1), jnp.float32)
    return (w1a, w1b, w1c, b1, w2, b2, w3, b3)


def reference_forward(x_1_1, x_1_2, x_2, params):
    """Pure-JAX reference with identical bf16/f32 mixed precision."""
    w1a, w1b, w1c, b1, w2, b2, w3, b3 = params
    N, C, H, W = x_1_1.shape

    def rows(x):
        return (jnp.transpose(x, (0, 2, 3, 1)).reshape(-1, C)
                .astype(jnp.bfloat16))

    x1, x2, x3 = rows(x_1_1), rows(x_1_2), rows(x_2)
    h = (jnp.dot(x1, w1a, preferred_element_type=jnp.float32)
         + jnp.dot(x2, w1b, preferred_element_type=jnp.float32)
         + jnp.dot(x3, w1c, preferred_element_type=jnp.float32))
    h = jnp.maximum(h + b1, 0.0)
    h = jnp.dot(h.astype(jnp.bfloat16), w2,
                preferred_element_type=jnp.float32)
    h = jnp.maximum(h + b2, 0.0)
    y = jnp.tanh(jnp.sum(h * w3, axis=-1, keepdims=True) + b3[0, 0])
    return jnp.transpose(y.reshape(N, H, W, 1), (0, 3, 1, 2))


if __name__ == "__main__":
    key = jax.random.PRNGKey(0)
    kp, ka, kb, kc = jax.random.split(key, 4)

    params = init_params(kp)

    # Small shapes consistent with the 'test' phase: three NCHW feature maps
    # with 512 channels each (logical concat -> 1536), tiny spatial extent.
    N, Cf, H, W = 2, 512, 2, 2
    x_1_1 = jax.random.normal(ka, (N, Cf, H, W), jnp.float32)
    x_1_2 = jax.random.normal(kb, (N, Cf, H, W), jnp.float32)
    x_2 = jax.random.normal(kc, (N, Cf, H, W), jnp.float32)

    out = jax.block_until_ready(
        global_regressor_test_phase(x_1_1, x_1_2, x_2, params))
    ref = jax.block_until_ready(
        reference_forward(x_1_1, x_1_2, x_2, params))

    assert out.shape == (N, 1, H, W)
    # Tight check vs. a reference using the same bf16/f32 mixed precision.
    assert jnp.allclose(out, ref, atol=2e-3, rtol=2e-3)

    print("KERNEL_OK")
</pallas_src>

<mosaic_0001>
module attributes {stable_mosaic.version = 11 : i64} {
  func.func @regressor_kernel(%arg0: i32, %arg1: memref<8x512xbf16, #tpu.memory_space<vmem>>, %arg2: memref<8x512xbf16, #tpu.memory_space<vmem>>, %arg3: memref<8x512xbf16, #tpu.memory_space<vmem>>, %arg4: memref<512x512xbf16, #tpu.memory_space<vmem>>, %arg5: memref<512x512xbf16, #tpu.memory_space<vmem>>, %arg6: memref<512x512xbf16, #tpu.memory_space<vmem>>, %arg7: memref<1x512xf32, #tpu.memory_space<vmem>>, %arg8: memref<512x512xbf16, #tpu.memory_space<vmem>>, %arg9: memref<1x512xf32, #tpu.memory_space<vmem>>, %arg10: memref<1x512xf32, #tpu.memory_space<vmem>>, %arg11: memref<1x1xf32, #tpu.memory_space<vmem>>, %arg12: memref<8x1xf32, #tpu.memory_space<vmem>>) attributes {dimension_semantics = [#tpu.dimension_semantics<parallel>], iteration_bounds = array<i64: 1>, scalar_prefetch = 0 : i64, scratch_operands = 0 : i64, tpu.core_type = #tpu.core_type<tc>, window_params = [{transform_indices = @transform_0, window_bounds = array<i64: 8, 512>}, {transform_indices = @transform_1, window_bounds = array<i64: 8, 512>}, {transform_indices = @transform_2, window_bounds = array<i64: 8, 512>}, {pipeline_mode = #tpu.pipeline_mode<synchronous>, transform_indices = @transform_3, window_bounds = array<i64: 512, 512>}, {pipeline_mode = #tpu.pipeline_mode<synchronous>, transform_indices = @transform_4, window_bounds = array<i64: 512, 512>}, {pipeline_mode = #tpu.pipeline_mode<synchronous>, transform_indices = @transform_5, window_bounds = array<i64: 512, 512>}, {pipeline_mode = #tpu.pipeline_mode<synchronous>, transform_indices = @transform_6, window_bounds = array<i64: 1, 512>}, {pipeline_mode = #tpu.pipeline_mode<synchronous>, transform_indices = @transform_7, window_bounds = array<i64: 512, 512>}, {pipeline_mode = #tpu.pipeline_mode<synchronous>, transform_indices = @transform_8, window_bounds = array<i64: 1, 512>}, {pipeline_mode = #tpu.pipeline_mode<synchronous>, transform_indices = @transform_9, window_bounds = array<i64: 1, 512>}, {pipeline_mode = #tpu.pipeline_mode<synchronous>, transform_indices = @transform_10, window_bounds = array<i64: 1, 1>}, {transform_indices = @transform_11, window_bounds = array<i64: 8, 1>}]} {
    %c0 = arith.constant 0 : index
    %c0_0 = arith.constant 0 : index
    %0 = vector.load %arg1[%c0, %c0_0] : memref<8x512xbf16, #tpu.memory_space<vmem>>, vector<8x512xbf16>
    %c0_1 = arith.constant 0 : index
    %c0_2 = arith.constant 0 : index
    %1 = vector.load %arg4[%c0_1, %c0_2] : memref<512x512xbf16, #tpu.memory_space<vmem>>, vector<512x512xbf16>
    %cst = arith.constant dense<0.000000e+00> : vector<8x512xf32>
    %2 = tpu.matmul %0, %1, %cst {dimension_numbers = #tpu.dot_dimension_numbers<[1], [0], [0], [1], [0, 0, 1, 1], [], []>} : vector<8x512xbf16>, vector<512x512xbf16>, vector<8x512xf32> -> vector<8x512xf32>
    %c0_3 = arith.constant 0 : index
    %c0_4 = arith.constant 0 : index
    %3 = vector.load %arg2[%c0_3, %c0_4] : memref<8x512xbf16, #tpu.memory_space<vmem>>, vector<8x512xbf16>
    %c0_5 = arith.constant 0 : index
    %c0_6 = arith.constant 0 : index
    %4 = vector.load %arg5[%c0_5, %c0_6] : memref<512x512xbf16, #tpu.memory_space<vmem>>, vector<512x512xbf16>
    %cst_7 = arith.constant dense<0.000000e+00> : vector<8x512xf32>
    %5 = tpu.matmul %3, %4, %cst_7 {dimension_numbers = #tpu.dot_dimension_numbers<[1], [0], [0], [1], [0, 0, 1, 1], [], []>} : vector<8x512xbf16>, vector<512x512xbf16>, vector<8x512xf32> -> vector<8x512xf32>
    %6 = arith.addf %2, %5 : vector<8x512xf32>
    %c0_8 = arith.constant 0 : index
    %c0_9 = arith.constant 0 : index
    %7 = vector.load %arg3[%c0_8, %c0_9] : memref<8x512xbf16, #tpu.memory_space<vmem>>, vector<8x512xbf16>
    %c0_10 = arith.constant 0 : index
    %c0_11 = arith.constant 0 : index
    %8 = vector.load %arg6[%c0_10, %c0_11] : memref<512x512xbf16, #tpu.memory_space<vmem>>, vector<512x512xbf16>
    %cst_12 = arith.constant dense<0.000000e+00> : vector<8x512xf32>
    %9 = tpu.matmul %7, %8, %cst_12 {dimension_numbers = #tpu.dot_dimension_numbers<[1], [0], [0], [1], [0, 0, 1, 1], [], []>} : vector<8x512xbf16>, vector<512x512xbf16>, vector<8x512xf32> -> vector<8x512xf32>
    %10 = arith.addf %6, %9 : vector<8x512xf32>
    %c0_13 = arith.constant 0 : index
    %c0_14 = arith.constant 0 : index
    %11 = vector.load %arg7[%c0_13, %c0_14] : memref<1x512xf32, #tpu.memory_space<vmem>>, vector<1x512xf32>
    %12 = vector.broadcast %11 : vector<1x512xf32> to vector<8x512xf32>
    %13 = arith.addf %10, %12 : vector<8x512xf32>
    %cst_15 = arith.constant 0.000000e+00 : f32
    %14 = vector.broadcast %cst_15 : f32 to vector<8x512xf32>
    %15 = arith.maximumf %13, %14 : vector<8x512xf32>
    %16 = arith.truncf %15 : vector<8x512xf32> to vector<8x512xbf16>
    %c0_16 = arith.constant 0 : index
    %c0_17 = arith.constant 0 : index
    %17 = vector.load %arg8[%c0_16, %c0_17] : memref<512x512xbf16, #tpu.memory_space<vmem>>, vector<512x512xbf16>
    %cst_18 = arith.constant dense<0.000000e+00> : vector<8x512xf32>
    %18 = tpu.matmul %16, %17, %cst_18 {dimension_numbers = #tpu.dot_dimension_numbers<[1], [0], [0], [1], [0, 0, 1, 1], [], []>} : vector<8x512xbf16>, vector<512x512xbf16>, vector<8x512xf32> -> vector<8x512xf32>
    %c0_19 = arith.constant 0 : index
    %c0_20 = arith.constant 0 : index
    %19 = vector.load %arg9[%c0_19, %c0_20] : memref<1x512xf32, #tpu.memory_space<vmem>>, vector<1x512xf32>
    %20 = vector.broadcast %19 : vector<1x512xf32> to vector<8x512xf32>
    %21 = arith.addf %18, %20 : vector<8x512xf32>
    %cst_21 = arith.constant 0.000000e+00 : f32
    %22 = vector.broadcast %cst_21 : f32 to vector<8x512xf32>
    %23 = arith.maximumf %21, %22 : vector<8x512xf32>
    %c0_22 = arith.constant 0 : index
    %c0_23 = arith.constant 0 : index
    %24 = vector.load %arg10[%c0_22, %c0_23] : memref<1x512xf32, #tpu.memory_space<vmem>>, vector<1x512xf32>
    %25 = vector.broadcast %24 : vector<1x512xf32> to vector<8x512xf32>
    %26 = arith.mulf %23, %25 : vector<8x512xf32>
    %cst_24 = arith.constant dense<0.000000e+00> : vector<8xf32>
    %27 = vector.multi_reduction <add>, %26, %cst_24 [1] : vector<8x512xf32> to vector<8xf32>
    %28 = vector.shape_cast %27 : vector<8xf32> to vector<8x1xf32>
    %c0_25 = arith.constant 0 : index
    %c0_26 = arith.constant 0 : index
    %29 = vector.load %arg11[%c0_25, %c0_26] : memref<1x1xf32, #tpu.memory_space<vmem>>, vector<1x1xf32>
    %30 = vector.extract %29[0, 0] : f32 from vector<1x1xf32>
    %31 = vector.broadcast %30 : f32 to vector<8x1xf32>
    %32 = arith.addf %28, %31 : vector<8x1xf32>
    %33 = math.tanh %32 : vector<8x1xf32>
    %c0_27 = arith.constant 0 : index
    %c0_28 = arith.constant 0 : index
    %34 = vector.load %arg12[%c0_27, %c0_28] : memref<8x1xf32, #tpu.memory_space<vmem>>, vector<8x1xf32>
    tpu.vector_store %arg12[%c0_27, %c0_28], %33 {strides = array<i32>} : memref<8x1xf32, #tpu.memory_space<vmem>>, vector<8x1xf32>,
    return
  }
  func.func @transform_0(%arg0: i32) -> (i32, i32) {
    %c0_i32 = arith.constant 0 : i32
    %c0_i32_0 = arith.constant 0 : i32
    return %arg0, %c0_i32 : i32, i32
  }
  func.func @transform_1(%arg0: i32) -> (i32, i32) {
    %c0_i32 = arith.constant 0 : i32
    %c0_i32_0 = arith.constant 0 : i32
    return %arg0, %c0_i32 : i32, i32
  }
  func.func @transform_2(%arg0: i32) -> (i32, i32) {
    %c0_i32 = arith.constant 0 : i32
    %c0_i32_0 = arith.constant 0 : i32
    return %arg0, %c0_i32 : i32, i32
  }
  func.func @transform_3(%arg0: i32) -> (i32, i32) {
    %c0_i32 = arith.constant 0 : i32
    %c0_i32_0 = arith.constant 0 : i32
    %c0_i32_1 = arith.constant 0 : i32
    return %c0_i32, %c0_i32_0 : i32, i32
  }
  func.func @transform_4(%arg0: i32) -> (i32, i32) {
    %c0_i32 = arith.constant 0 : i32
    %c0_i32_0 = arith.constant 0 : i32
    %c0_i32_1 = arith.constant 0 : i32
    return %c0_i32, %c0_i32_0 : i32, i32
  }
  func.func @transform_5(%arg0: i32) -> (i32, i32) {
    %c0_i32 = arith.constant 0 : i32
    %c0_i32_0 = arith.constant 0 : i32
    %c0_i32_1 = arith.constant 0 : i32
    return %c0_i32, %c0_i32_0 : i32, i32
  }
  func.func @transform_6(%arg0: i32) -> (i32, i32) {
    %c0_i32 = arith.constant 0 : i32
    %c0_i32_0 = arith.constant 0 : i32
    %c0_i32_1 = arith.constant 0 : i32
    return %c0_i32, %c0_i32_0 : i32, i32
  }
  func.func @transform_7(%arg0: i32) -> (i32, i32) {
    %c0_i32 = arith.constant 0 : i32
    %c0_i32_0 = arith.constant 0 : i32
    %c0_i32_1 = arith.constant 0 : i32
    return %c0_i32, %c0_i32_0 : i32, i32
  }
  func.func @transform_8(%arg0: i32) -> (i32, i32) {
    %c0_i32 = arith.constant 0 : i32
    %c0_i32_0 = arith.constant 0 : i32
    %c0_i32_1 = arith.constant 0 : i32
    return %c0_i32, %c0_i32_0 : i32, i32
  }
  func.func @transform_9(%arg0: i32) -> (i32, i32) {
    %c0_i32 = arith.constant 0 : i32
    %c0_i32_0 = arith.constant 0 : i32
    %c0_i32_1 = arith.constant 0 : i32
    return %c0_i32, %c0_i32_0 : i32, i32
  }
  func.func @transform_10(%arg0: i32) -> (i32, i32) {
    %c0_i32 = arith.constant 0 : i32
    %c0_i32_0 = arith.constant 0 : i32
    %c0_i32_1 = arith.constant 0 : i32
    return %c0_i32, %c0_i32_0 : i32, i32
  }
  func.func @transform_11(%arg0: i32) -> (i32, i32) {
    %c0_i32 = arith.constant 0 : i32
    %c0_i32_0 = arith.constant 0 : i32
    return %arg0, %c0_i32 : i32, i32
  }
}

</mosaic_0001>

<llo_original>
// kernel: tpu_custom_call.1
$region0: #{tpu_custom_call.1}
  #allocation0 [shape = 'u32[]', space=smem, size = 0x4, offset = 0x4, fixed_abs, tag = 'smem constant byte address 0x4 - core index']
  #allocation1 [shape = 'u32[144,128]{1,0:T(1,128)}', space=vmem, size = 0x12000, scoped, tag = 'internal scratch']
  #allocation2 [shape = 'f32[1,1]{1,0:T(1,128)S(1)}', space=vmem, size = 0x200, scoped, tag = 'scoped memory for tpu_custom_call.1']
  %s0 = inlined_call_operand.hbm [shape: bf16[8,512], index: 0, kind: input, shape index: {}]
  %s1 = inlined_call_operand.hbm [shape: bf16[8,512], index: 1, kind: input, shape index: {}]
  %s2 = inlined_call_operand.hbm [shape: bf16[8,512], index: 2, kind: input, shape index: {}]
  %s3 = inlined_call_operand.hbm [shape: bf16[512,512], index: 3, kind: input, shape index: {}]
  %s4 = inlined_call_operand.hbm [shape: bf16[512,512], index: 4, kind: input, shape index: {}]
  %s5 = inlined_call_operand.hbm [shape: bf16[512,512], index: 5, kind: input, shape index: {}]
  %s6 = inlined_call_operand.vmem [shape: f32[1,512], index: 6, kind: input, shape index: {}]
  %s7 = inlined_call_operand.hbm [shape: bf16[512,512], index: 7, kind: input, shape index: {}]
  %s8 = inlined_call_operand.vmem [shape: f32[1,512], index: 8, kind: input, shape index: {}]
  %s9 = inlined_call_operand.vmem [shape: f32[1,512], index: 9, kind: input, shape index: {}]
  %s10 = inlined_call_operand.<no memory space> [shape: f32[1,1], index: 10, kind: input, shape index: {}]
  %s11 = inlined_call_operand.vmem [shape: f32[8,1], index: 11, kind: output, shape index: {}]
  %s12 = sld [smem:[#allocation0]]
  $region82: #{tpu_custom_call.1} parent=0
    _
  %s14 = ssub.s32 1, %s12
  %s15 = scalar_select 0, %s14, %s12
  %v16 = vstv %s10
  %17 = vst [vmem:[#allocation2] sm:$0x1] %v16
  $region1: #{tpu_custom_call.1} parent=0
    #allocation3 [shape = 'u8[8192]{0}', space=vmem, size = 0x2000, scoped, tag = 'input window, operand 0, single buffered']
    #allocation4 [shape = 's32[1]{0}', space=sflag, size = 0x4, scoped, tag = 'scoped memory for tpu_custom_call.1']
    #allocation5 [shape = 'u8[8192]{0}', space=vmem, size = 0x2000, scoped, tag = 'input window, operand 1, single buffered']
    #allocation6 [shape = 's32[1]{0}', space=sflag, size = 0x4, scoped, tag = 'scoped memory for tpu_custom_call.1']
    #allocation7 [shape = 'u8[8192]{0}', space=vmem, size = 0x2000, scoped, tag = 'input window, operand 2, single buffered']
    #allocation8 [shape = 'u8[524288]{0}', space=vmem, size = 0x80000, scoped, tag = 'input window, operand 3, single buffered']
    #allocation9 [shape = 's32[1]{0}', space=sflag, size = 0x4, scoped, tag = 'scoped memory for tpu_custom_call.1']
    #allocation10 [shape = 'u8[524288]{0}', space=vmem, size = 0x80000, scoped, tag = 'input window, operand 4, single buffered']
    #allocation11 [shape = 'u8[524288]{0}', space=vmem, size = 0x80000, scoped, tag = 'input window, operand 5, single buffered']
    #allocation12 [shape = 's32[1]{0}', space=sflag, size = 0x4, scoped, tag = 'scoped memory for tpu_custom_call.1']
    #allocation13 [shape = 'u8[524288]{0}', space=vmem, size = 0x80000, scoped, tag = 'input window, operand 7, single buffered']
    %18 = vsyncpa [#allocation4], 0
    %19 = vsyncpa [#allocation6], 0
    %20 = vsyncpa [#allocation9], 0
    %21 = vsyncpa [#allocation12], 0
    // Predicated region
    $region2: #{tpu_custom_call.1} parent=1 // pred_check
      _
    $region3: #{tpu_custom_call.1} parent=1 // pred_check_branch
      %23 = sbr.rel (0) target = $region5
    $region4: #{tpu_custom_call.1} parent=1 // pred_region
      %s25 = ssub.s32 256, 256
      %26 = vsyncadd [#allocation4], %s25
      %s28 = sshll.u32 [#allocation3], 4
      %s29 = int_to_ptr.vmem [resolvable:$true] %s28
      %31 = dma.hbm_to_vmem [thread:$0]  %s0, 256, %s29, [#allocation4]
    $region5: #{tpu_custom_call.1} parent=1 // pred_fallthru
      _
    // Predicated region
    $region6: #{tpu_custom_call.1} parent=1 // pred_check
      _
    $region7: #{tpu_custom_call.1} parent=1 // pred_check_branch
      %33 = sbr.rel (0) target = $region9
    $region8: #{tpu_custom_call.1} parent=1 // pred_region
      %s35 = ssub.s32 256, 256
      %36 = vsyncadd [#allocation6], %s35
      %s38 = sshll.u32 [#allocation5], 4
      %s39 = int_to_ptr.vmem [resolvable:$true] %s38
      %41 = dma.hbm_to_vmem [thread:$0]  %s1, 256, %s39, [#allocation6]
    $region9: #{tpu_custom_call.1} parent=1 // pred_fallthru
      _
    // Predicated region
    $region10: #{tpu_custom_call.1} parent=1 // pred_check
      _
    $region11: #{tpu_custom_call.1} parent=1 // pred_check_branch
      %43 = sbr.rel (0) target = $region13
    $region12: #{tpu_custom_call.1} parent=1 // pred_region
      %s45 = ssub.s32 256, 256
      %46 = vsyncadd [#allocation6], %s45
      %s48 = sshll.u32 [#allocation7], 4
      %s49 = int_to_ptr.vmem [resolvable:$true] %s48
      %51 = dma.hbm_to_vmem [thread:$0]  %s2, 256, %s49, [#allocation6]
    $region13: #{tpu_custom_call.1} parent=1 // pred_fallthru
      _
    // Predicated region
    $region14: #{tpu_custom_call.1} parent=1 // pred_check
      _
    $region15: #{tpu_custom_call.1} parent=1 // pred_check_branch
      %53 = sbr.rel (0) target = $region17
    $region16: #{tpu_custom_call.1} parent=1 // pred_region
      %s55 = ssub.s32 16384, 16384
      %56 = vsyncadd [#allocation9], %s55
      %s57 = sshll.u32 [#allocation8], 4
      %s58 = int_to_ptr.vmem [resolvable:$true] %s57
      %63 = dma.hbm_to_vmem [thread:$0]  %s3, 16384, %s58, [#allocation9], 256, 256, 16
    $region17: #{tpu_custom_call.1} parent=1 // pred_fallthru
      _
    // Predicated region
    $region18: #{tpu_custom_call.1} parent=1 // pred_check
      _
    $region19: #{tpu_custom_call.1} parent=1 // pred_check_branch
      %65 = sbr.rel (0) target = $region21
    $region20: #{tpu_custom_call.1} parent=1 // pred_region
      %s67 = ssub.s32 16384, 16384
      %68 = vsyncadd [#allocation9], %s67
      %s69 = sshll.u32 [#allocation10], 4
      %s70 = int_to_ptr.vmem [resolvable:$true] %s69
      %75 = dma.hbm_to_vmem [thread:$0]  %s4, 16384, %s70, [#allocation9], 256, 256, 16
    $region21: #{tpu_custom_call.1} parent=1 // pred_fallthru
      _
    // Predicated region
    $region22: #{tpu_custom_call.1} parent=1 // pred_check
      _
    $region23: #{tpu_custom_call.1} parent=1 // pred_check_branch
      %77 = sbr.rel (0) target = $region25
    $region24: #{tpu_custom_call.1} parent=1 // pred_region
      %s79 = ssub.s32 16384, 16384
      %80 = vsyncadd [#allocation12], %s79
      %s81 = sshll.u32 [#allocation11], 4
      %s82 = int_to_ptr.vmem [resolvable:$true] %s81
      %87 = dma.hbm_to_vmem [thread:$0]  %s5, 16384, %s82, [#allocation12], 256, 256, 16
    $region25: #{tpu_custom_call.1} parent=1 // pred_fallthru
      _
    // Predicated region
    $region26: #{tpu_custom_call.1} parent=1 // pred_check
      _
    $region27: #{tpu_custom_call.1} parent=1 // pred_check_branch
      %89 = sbr.rel (0) target = $region29
    $region28: #{tpu_custom_call.1} parent=1 // pred_region
      _
    $region29: #{tpu_custom_call.1} parent=1 // pred_fallthru
      _
    // Predicated region
    $region30: #{tpu_custom_call.1} parent=1 // pred_check
      _
    $region31: #{tpu_custom_call.1} parent=1 // pred_check_branch
      %91 = sbr.rel (0) target = $region33
    $region32: #{tpu_custom_call.1} parent=1 // pred_region
      %s93 = ssub.s32 16384, 16384
      %94 = vsyncadd [#allocation12], %s93
      %s95 = sshll.u32 [#allocation13], 4
      %s96 = int_to_ptr.vmem [resolvable:$true] %s95
      %101 = dma.hbm_to_vmem [thread:$0]  %s7, 16384, %s96, [#allocation12], 256, 256, 16
    $region33: #{tpu_custom_call.1} parent=1 // pred_fallthru
      _
    // Predicated region
    $region34: #{tpu_custom_call.1} parent=1 // pred_check
      _
    $region35: #{tpu_custom_call.1} parent=1 // pred_check_branch
      %103 = sbr.rel (0) target = $region37
    $region36: #{tpu_custom_call.1} parent=1 // pred_region
      _
    $region37: #{tpu_custom_call.1} parent=1 // pred_fallthru
      _
    // Predicated region
    $region38: #{tpu_custom_call.1} parent=1 // pred_check
      _
    $region39: #{tpu_custom_call.1} parent=1 // pred_check_branch
      %105 = sbr.rel (0) target = $region41
    $region40: #{tpu_custom_call.1} parent=1 // pred_region
      _
    $region41: #{tpu_custom_call.1} parent=1 // pred_fallthru
      _
    // Predicated region
    $region42: #{tpu_custom_call.1} parent=1 // pred_check
      _
    $region43: #{tpu_custom_call.1} parent=1 // pred_check_branch
      %107 = sbr.rel (0) target = $region45
    $region44: #{tpu_custom_call.1} parent=1 // pred_region
      _
    $region45: #{tpu_custom_call.1} parent=1 // pred_fallthru
      _
    // Predicated region
    $region46: #{tpu_custom_call.1} parent=1 // pred_check
      _
    $region47: #{tpu_custom_call.1} parent=1 // pred_check_branch
      %109 = sbr.rel (0) target = $region49
    $region48: #{tpu_custom_call.1} parent=1 // pred_region
      %110 = dma.done [#allocation4], 256
    $region49: #{tpu_custom_call.1} parent=1 // pred_fallthru
      _
    // Predicated region
    $region50: #{tpu_custom_call.1} parent=1 // pred_check
      _
    $region51: #{tpu_custom_call.1} parent=1 // pred_check_branch
      %112 = sbr.rel (0) target = $region53
    $region52: #{tpu_custom_call.1} parent=1 // pred_region
      %113 = dma.done [#allocation6], 256
    $region53: #{tpu_custom_call.1} parent=1 // pred_fallthru
      _
    // Predicated region
    $region54: #{tpu_custom_call.1} parent=1 // pred_check
      _
    $region55: #{tpu_custom_call.1} parent=1 // pred_check_branch
      %115 = sbr.rel (0) target = $region57
    $region56: #{tpu_custom_call.1} parent=1 // pred_region
      %116 = dma.done [#allocation6], 256
    $region57: #{tpu_custom_call.1} parent=1 // pred_fallthru
      _
    // Predicated region
    $region58: #{tpu_custom_call.1} parent=1 // pred_check
      _
    $region59: #{tpu_custom_call.1} parent=1 // pred_check_branch
      %118 = sbr.rel (0) target = $region61
    $region60: #{tpu_custom_call.1} parent=1 // pred_region
      %119 = dma.done [#allocation9], 16384
    $region61: #{tpu_custom_call.1} parent=1 // pred_fallthru
      _
    // Predicated region
    $region62: #{tpu_custom_call.1} parent=1 // pred_check
      _
    $region63: #{tpu_custom_call.1} parent=1 // pred_check_branch
      %121 = sbr.rel (0) target = $region65
    $region64: #{tpu_custom_call.1} parent=1 // pred_region
      %122 = dma.done [#allocation9], 16384
    $region65: #{tpu_custom_call.1} parent=1 // pred_fallthru
      _
    // Predicated region
    $region66: #{tpu_custom_call.1} parent=1 // pred_check
      _
    $region67: #{tpu_custom_call.1} parent=1 // pred_check_branch
      %124 = sbr.rel (0) target = $region69
    $region68: #{tpu_custom_call.1} parent=1 // pred_region
      %125 = dma.done [#allocation12], 16384
    $region69: #{tpu_custom_call.1} parent=1 // pred_fallthru
      _
    // Predicated region
    $region70: #{tpu_custom_call.1} parent=1 // pred_check
      _
    $region71: #{tpu_custom_call.1} parent=1 // pred_check_branch
      %127 = sbr.rel (0) target = $region73
    $region72: #{tpu_custom_call.1} parent=1 // pred_region
      %128 = dma.done [#allocation12], 16384
    $region73: #{tpu_custom_call.1} parent=1 // pred_fallthru
      _
    %v129 = vld [vmem:[#allocation3] sm:$0xff]
    %v130 = vld [vmem:[#allocation3 + $0x8] sm:$0xff]
    %v131 = vld [vmem:[#allocation8] sm:$0xff]
    %v132 = vld [vmem:[#allocation8 + $0x8] sm:$0xff]
    %v133 = vld [vmem:[#allocation8 + $0x10] sm:$0xff]
    %v134 = vld [vmem:[#allocation8 + $0x18] sm:$0xff]
    %v135 = vld [vmem:[#allocation8 + $0x20] sm:$0xff]
    %v136 = vld [vmem:[#allocation8 + $0x28] sm:$0xff]
    %v137 = vld [vmem:[#allocation8 + $0x30] sm:$0xff]
    %v138 = vld [vmem:[#allocation8 + $0x38] sm:$0xff]
    %v139 = vld [vmem:[#allocation8 + $0x40] sm:$0xff]
    %v140 = vld [vmem:[#allocation8 + $0x48] sm:$0xff]
    %v141 = vld [vmem:[#allocation8 + $0x50] sm:$0xff]
    %v142 = vld [vmem:[#allocation8 + $0x58] sm:$0xff]
    %v143 = vld [vmem:[#allocation8 + $0x60] sm:$0xff]
    %v144 = vld [vmem:[#allocation8 + $0x68] sm:$0xff]
    %v145 = vld [vmem:[#allocation8 + $0x70] sm:$0xff]
    %v146 = vld [vmem:[#allocation8 + $0x78] sm:$0xff]
    %v147 = vld [vmem:[#allocation8 + $0x80] sm:$0xff]
    %v148 = vld [vmem:[#allocation8 + $0x88] sm:$0xff]
    %v149 = vld [vmem:[#allocation8 + $0x90] sm:$0xff]
    %v150 = vld [vmem:[#allocation8 + $0x98] sm:$0xff]
    %v151 = vld [vmem:[#allocation8 + $0xa0] sm:$0xff]
    %v152 = vld [vmem:[#allocation8 + $0xa8] sm:$0xff]
    %v153 = vld [vmem:[#allocation8 + $0xb0] sm:$0xff]
    %v154 = vld [vmem:[#allocation8 + $0xb8] sm:$0xff]
    %v155 = vld [vmem:[#allocation8 + $0xc0] sm:$0xff]
    %v156 = vld [vmem:[#allocation8 + $0xc8] sm:$0xff]
    %v157 = vld [vmem:[#allocation8 + $0xd0] sm:$0xff]
    %v158 = vld [vmem:[#allocation8 + $0xd8] sm:$0xff]
    %v159 = vld [vmem:[#allocation8 + $0xe0] sm:$0xff]
    %v160 = vld [vmem:[#allocation8 + $0xe8] sm:$0xff]
    %v161 = vld [vmem:[#allocation8 + $0xf0] sm:$0xff]
    %v162 = vld [vmem:[#allocation8 + $0xf8] sm:$0xff]
    %v163 = vld [vmem:[#allocation8 + $0x100] sm:$0xff]
    %v164 = vld [vmem:[#allocation8 + $0x108] sm:$0xff]
    %v165 = vld [vmem:[#allocation8 + $0x110] sm:$0xff]
    %v166 = vld [vmem:[#allocation8 + $0x118] sm:$0xff]
    %v167 = vld [vmem:[#allocation8 + $0x120] sm:$0xff]
    %v168 = vld [vmem:[#allocation8 + $0x128] sm:$0xff]
    %v169 = vld [vmem:[#allocation8 + $0x130] sm:$0xff]
    %v170 = vld [vmem:[#allocation8 + $0x138] sm:$0xff]
    %v171 = vld [vmem:[#allocation8 + $0x140] sm:$0xff]
    %v172 = vld [vmem:[#allocation8 + $0x148] sm:$0xff]
    %v173 = vld [vmem:[#allocation8 + $0x150] sm:$0xff]
    %v174 = vld [vmem:[#allocation8 + $0x158] sm:$0xff]
    %v175 = vld [vmem:[#allocation8 + $0x160] sm:$0xff]
    %v176 = vld [vmem:[#allocation8 + $0x168] sm:$0xff]
    %v177 = vld [vmem:[#allocation8 + $0x170] sm:$0xff]
    %v178 = vld [vmem:[#allocation8 + $0x178] sm:$0xff]
    %v179 = vld [vmem:[#allocation8 + $0x180] sm:$0xff]
    %v180 = vld [vmem:[#allocation8 + $0x188] sm:$0xff]
    %v181 = vld [vmem:[#allocation8 + $0x190] sm:$0xff]
    %v182 = vld [vmem:[#allocation8 + $0x198] sm:$0xff]
    %v183 = vld [vmem:[#allocation8 + $0x1a0] sm:$0xff]
    %v184 = vld [vmem:[#allocation8 + $0x1a8] sm:$0xff]
    %v185 = vld [vmem:[#allocation8 + $0x1b0] sm:$0xff]
    %v186 = vld [vmem:[#allocation8 + $0x1b8] sm:$0xff]
    %v187 = vld [vmem:[#allocation8 + $0x1c0] sm:$0xff]
    %v188 = vld [vmem:[#allocation8 + $0x1c8] sm:$0xff]
    %v189 = vld [vmem:[#allocation8 + $0x1d0] sm:$0xff]
    %v190 = vld [vmem:[#allocation8 + $0x1d8] sm:$0xff]
    %v191 = vld [vmem:[#allocation8 + $0x1e0] sm:$0xff]
    %v192 = vld [vmem:[#allocation8 + $0x1e8] sm:$0xff]
    %v193 = vld [vmem:[#allocation8 + $0x1f0] sm:$0xff]
    %v194 = vld [vmem:[#allocation8 + $0x1f8] sm:$0xff]
    %v195 = vld [vmem:[#allocation8 + $0x200] sm:$0xff]
    %v196 = vld [vmem:[#allocation8 + $0x208] sm:$0xff]
    %v197 = vld [vmem:[#allocation8 + $0x210] sm:$0xff]
    %v198 = vld [vmem:[#allocation8 + $0x218] sm:$0xff]
    %v199 = vld [vmem:[#allocation8 + $0x220] sm:$0xff]
    %v200 = vld [vmem:[#allocation8 + $0x228] sm:$0xff]
    %v201 = vld [vmem:[#allocation8 + $0x230] sm:$0xff]
    %v202 = vld [vmem:[#allocation8 + $0x238] sm:$0xff]
    %v203 = vld [vmem:[#allocation8 + $0x240] sm:$0xff]
    %v204 = vld [vmem:[#allocation8 + $0x248] sm:$0xff]
    %v205 = vld [vmem:[#allocation8 + $0x250] sm:$0xff]
    %v206 = vld [vmem:[#allocation8 + $0x258] sm:$0xff]
    %v207 = vld [vmem:[#allocation8 + $0x260] sm:$0xff]
    %v208 = vld [vmem:[#allocation8 + $0x268] sm:$0xff]
    %v209 = vld [vmem:[#allocation8 + $0x270] sm:$0xff]
    %v210 = vld [vmem:[#allocation8 + $0x278] sm:$0xff]
    %v211 = vld [vmem:[#allocation8 + $0x280] sm:$0xff]
    %v212 = vld [vmem:[#allocation8 + $0x288] sm:$0xff]
    %v213 = vld [vmem:[#allocation8 + $0x290] sm:$0xff]
    %v214 = vld [vmem:[#allocation8 + $0x298] sm:$0xff]
    %v215 = vld [vmem:[#allocation8 + $0x2a0] sm:$0xff]
    %v216 = vld [vmem:[#allocation8 + $0x2a8] sm:$0xff]
    %v217 = vld [vmem:[#allocation8 + $0x2b0] sm:$0xff]
    %v218 = vld [vmem:[#allocation8 + $0x2b8] sm:$0xff]
    %v219 = vld [vmem:[#allocation8 + $0x2c0] sm:$0xff]
    %v220 = vld [vmem:[#allocation8 + $0x2c8] sm:$0xff]
    %v221 = vld [vmem:[#allocation8 + $0x2d0] sm:$0xff]
    %v222 = vld [vmem:[#allocation8 + $0x2d8] sm:$0xff]
    %v223 = vld [vmem:[#allocation8 + $0x2e0] sm:$0xff]
    %v224 = vld [vmem:[#allocation8 + $0x2e8] sm:$0xff]
    %v225 = vld [vmem:[#allocation8 + $0x2f0] sm:$0xff]
    %v226 = vld [vmem:[#allocation8 + $0x2f8] sm:$0xff]
    %v227 = vld [vmem:[#allocation8 + $0x300] sm:$0xff]
    %v228 = vld [vmem:[#allocation8 + $0x308] sm:$0xff]
    %v229 = vld [vmem:[#allocation8 + $0x310] sm:$0xff]
    %v230 = vld [vmem:[#allocation8 + $0x318] sm:$0xff]
    %v231 = vld [vmem:[#allocation8 + $0x320] sm:$0xff]
    %v232 = vld [vmem:[#allocation8 + $0x328] sm:$0xff]
    %v233 = vld [vmem:[#allocation8 + $0x330] sm:$0xff]
    %v234 = vld [vmem:[#allocation8 + $0x338] sm:$0xff]
    %v235 = vld [vmem:[#allocation8 + $0x340] sm:$0xff]
    %v236 = vld [vmem:[#allocation8 + $0x348] sm:$0xff]
    %v237 = vld [vmem:[#allocation8 + $0x350] sm:$0xff]
    %v238 = vld [vmem:[#allocation8 + $0x358] sm:$0xff]
    %v239 = vld [vmem:[#allocation8 + $0x360] sm:$0xff]
    %v240 = vld [vmem:[#allocation8 + $0x368] sm:$0xff]
    %v241 = vld [vmem:[#allocation8 + $0x370] sm:$0xff]
    %v242 = vld [vmem:[#allocation8 + $0x378] sm:$0xff]
    %v243 = vld [vmem:[#allocation8 + $0x380] sm:$0xff]
    %v244 = vld [vmem:[#allocation8 + $0x388] sm:$0xff]
    %v245 = vld [vmem:[#allocation8 + $0x390] sm:$0xff]
    %v246 = vld [vmem:[#allocation8 + $0x398] sm:$0xff]
    %v247 = vld [vmem:[#allocation8 + $0x3a0] sm:$0xff]
    %v248 = vld [vmem:[#allocation8 + $0x3a8] sm:$0xff]
    %v249 = vld [vmem:[#allocation8 + $0x3b0] sm:$0xff]
    %v250 = vld [vmem:[#allocation8 + $0x3b8] sm:$0xff]
    %v251 = vld [vmem:[#allocation8 + $0x3c0] sm:$0xff]
    %v252 = vld [vmem:[#allocation8 + $0x3c8] sm:$0xff]
    %v253 = vld [vmem:[#allocation8 + $0x3d0] sm:$0xff]
    %v254 = vld [vmem:[#allocation8 + $0x3d8] sm:$0xff]
    %v255 = vld [vmem:[#allocation8 + $0x3e0] sm:$0xff]
    %v256 = vld [vmem:[#allocation8 + $0x3e8] sm:$0xff]
    %v257 = vld [vmem:[#allocation8 + $0x3f0] sm:$0xff]
    %v258 = vld [vmem:[#allocation8 + $0x3f8] sm:$0xff]
    %v259 = vld [vmem:[#allocation5] sm:$0xff]
    %v260 = vld [vmem:[#allocation5 + $0x8] sm:$0xff]
    %v261 = vld [vmem:[#allocation10] sm:$0xff]
    %v262 = vld [vmem:[#allocation10 + $0x8] sm:$0xff]
    %v263 = vld [vmem:[#allocation10 + $0x10] sm:$0xff]
    %v264 = vld [vmem:[#allocation10 + $0x18] sm:$0xff]
    %v265 = vld [vmem:[#allocation10 + $0x20] sm:$0xff]
    %v266 = vld [vmem:[#allocation10 + $0x28] sm:$0xff]
    %v267 = vld [vmem:[#allocation10 + $0x30] sm:$0xff]
    %v268 = vld [vmem:[#allocation10 + $0x38] sm:$0xff]
    %v269 = vld [vmem:[#allocation10 + $0x40] sm:$0xff]
    %v270 = vld [vmem:[#allocation10 + $0x48] sm:$0xff]
    %v271 = vld [vmem:[#allocation10 + $0x50] sm:$0xff]
    %v272 = vld [vmem:[#allocation10 + $0x58] sm:$0xff]
    %v273 = vld [vmem:[#allocation10 + $0x60] sm:$0xff]
    %v274 = vld [vmem:[#allocation10 + $0x68] sm:$0xff]
    %v275 = vld [vmem:[#allocation10 + $0x70] sm:$0xff]
    %v276 = vld [vmem:[#allocation10 + $0x78] sm:$0xff]
    %v277 = vld [vmem:[#allocation10 + $0x80] sm:$0xff]
    %v278 = vld [vmem:[#allocation10 + $0x88] sm:$0xff]
    %v279 = vld [vmem:[#allocation10 + $0x90] sm:$0xff]
    %v280 = vld [vmem:[#allocation10 + $0x98] sm:$0xff]
    %v281 = vld [vmem:[#allocation10 + $0xa0] sm:$0xff]
    %v282 = vld [vmem:[#allocation10 + $0xa8] sm:$0xff]
    %v283 = vld [vmem:[#allocation10 + $0xb0] sm:$0xff]
    %v284 = vld [vmem:[#allocation10 + $0xb8] sm:$0xff]
    %v285 = vld [vmem:[#allocation10 + $0xc0] sm:$0xff]
    %v286 = vld [vmem:[#allocation10 + $0xc8] sm:$0xff]
    %v287 = vld [vmem:[#allocation10 + $0xd0] sm:$0xff]
    %v288 = vld [vmem:[#allocation10 + $0xd8] sm:$0xff]
    %v289 = vld [vmem:[#allocation10 + $0xe0] sm:$0xff]
    %v290 = vld [vmem:[#allocation10 + $0xe8] sm:$0xff]
    %v291 = vld [vmem:[#allocation10 + $0xf0] sm:$0xff]
    %v292 = vld [vmem:[#allocation10 + $0xf8] sm:$0xff]
    %v293 = vld [vmem:[#allocation10 + $0x100] sm:$0xff]
    %v294 = vld [vmem:[#allocation10 + $0x108] sm:$0xff]
    %v295 = vld [vmem:[#allocation10 + $0x110] sm:$0xff]
    %v296 = vld [vmem:[#allocation10 + $0x118] sm:$0xff]
    %v297 = vld [vmem:[#allocation10 + $0x120] sm:$0xff]
    %v298 = vld [vmem:[#allocation10 + $0x128] sm:$0xff]
    %v299 = vld [vmem:[#allocation10 + $0x130] sm:$0xff]
    %v300 = vld [vmem:[#allocation10 + $0x138] sm:$0xff]
    %v301 = vld [vmem:[#allocation10 + $0x140] sm:$0xff]
    %v302 = vld [vmem:[#allocation10 + $0x148] sm:$0xff]
    %v303 = vld [vmem:[#allocation10 + $0x150] sm:$0xff]
    %v304 = vld [vmem:[#allocation10 + $0x158] sm:$0xff]
    %v305 = vld [vmem:[#allocation10 + $0x160] sm:$0xff]
    %v306 = vld [vmem:[#allocation10 + $0x168] sm:$0xff]
    %v307 = vld [vmem:[#allocation10 + $0x170] sm:$0xff]
    %v308 = vld [vmem:[#allocation10 + $0x178] sm:$0xff]
    %v309 = vld [vmem:[#allocation10 + $0x180] sm:$0xff]
    %v310 = vld [vmem:[#allocation10 + $0x188] sm:$0xff]
    %v311 = vld [vmem:[#allocation10 + $0x190] sm:$0xff]
    %v312 = vld [vmem:[#allocation10 + $0x198] sm:$0xff]
    %v313 = vld [vmem:[#allocation10 + $0x1a0] sm:$0xff]
    %v314 = vld [vmem:[#allocation10 + $0x1a8] sm:$0xff]
    %v315 = vld [vmem:[#allocation10 + $0x1b0] sm:$0xff]
    %v316 = vld [vmem:[#allocation10 + $0x1b8] sm:$0xff]
    %v317 = vld [vmem:[#allocation10 + $0x1c0] sm:$0xff]
    %v318 = vld [vmem:[#allocation10 + $0x1c8] sm:$0xff]
    %v319 = vld [vmem:[#allocation10 + $0x1d0] sm:$0xff]
    %v320 = vld [vmem:[#allocation10 + $0x1d8] sm:$0xff]
    %v321 = vld [vmem:[#allocation10 + $0x1e0] sm:$0xff]
    %v322 = vld [vmem:[#allocation10 + $0x1e8] sm:$0xff]
    %v323 = vld [vmem:[#allocation10 + $0x1f0] sm:$0xff]
    %v324 = vld [vmem:[#allocation10 + $0x1f8] sm:$0xff]
    %v325 = vld [vmem:[#allocation10 + $0x200] sm:$0xff]
    %v326 = vld [vmem:[#allocation10 + $0x208] sm:$0xff]
    %v327 = vld [vmem:[#allocation10 + $0x210] sm:$0xff]
    %v328 = vld [vmem:[#allocation10 + $0x218] sm:$0xff]
    %v329 = vld [vmem:[#allocation10 + $0x220] sm:$0xff]
    %v330 = vld [vmem:[#allocation10 + $0x228] sm:$0xff]
    %v331 = vld [vmem:[#allocation10 + $0x230] sm:$0xff]
    %v332 = vld [vmem:[#allocation10 + $0x238] sm:$0xff]
    %v333 = vld [vmem:[#allocation10 + $0x240] sm:$0xff]
    %v334 = vld [vmem:[#allocation10 + $0x248] sm:$0xff]
    %v335 = vld [vmem:[#allocation10 + $0x250] sm:$0xff]
    %v336 = vld [vmem:[#allocation10 + $0x258] sm:$0xff]
    %v337 = vld [vmem:[#allocation10 + $0x260] sm:$0xff]
    %v338 = vld [vmem:[#allocation10 + $0x268] sm:$0xff]
    %v339 = vld [vmem:[#allocation10 + $0x270] sm:$0xff]
    %v340 = vld [vmem:[#allocation10 + $0x278] sm:$0xff]
    %v341 = vld [vmem:[#allocation10 + $0x280] sm:$0xff]
    %v342 = vld [vmem:[#allocation10 + $0x288] sm:$0xff]
    %v343 = vld [vmem:[#allocation10 + $0x290] sm:$0xff]
    %v344 = vld [vmem:[#allocation10 + $0x298] sm:$0xff]
    %v345 = vld [vmem:[#allocation10 + $0x2a0] sm:$0xff]
    %v346 = vld [vmem:[#allocation10 + $0x2a8] sm:$0xff]
    %v347 = vld [vmem:[#allocation10 + $0x2b0] sm:$0xff]
    %v348 = vld [vmem:[#allocation10 + $0x2b8] sm:$0xff]
    %v349 = vld [vmem:[#allocation10 + $0x2c0] sm:$0xff]
    %v350 = vld [vmem:[#allocation10 + $0x2c8] sm:$0xff]
    %v351 = vld [vmem:[#allocation10 + $0x2d0] sm:$0xff]
    %v352 = vld [vmem:[#allocation10 + $0x2d8] sm:$0xff]
    %v353 = vld [vmem:[#allocation10 + $0x2e0] sm:$0xff]
    %v354 = vld [vmem:[#allocation10 + $0x2e8] sm:$0xff]
    %v355 = vld [vmem:[#allocation10 + $0x2f0] sm:$0xff]
    %v356 = vld [vmem:[#allocation10 + $0x2f8] sm:$0xff]
    %v357 = vld [vmem:[#allocation10 + $0x300] sm:$0xff]
    %v358 = vld [vmem:[#allocation10 + $0x308] sm:$0xff]
    %v359 = vld [vmem:[#allocation10 + $0x310] sm:$0xff]
    %v360 = vld [vmem:[#allocation10 + $0x318] sm:$0xff]
    %v361 = vld [vmem:[#allocation10 + $0x320] sm:$0xff]
    %v362 = vld [vmem:[#allocation10 + $0x328] sm:$0xff]
    %v363 = vld [vmem:[#allocation10 + $0x330] sm:$0xff]
    %v364 = vld [vmem:[#allocation10 + $0x338] sm:$0xff]
    %v365 = vld [vmem:[#allocation10 + $0x340] sm:$0xff]
    %v366 = vld [vmem:[#allocation10 + $0x348] sm:$0xff]
    %v367 = vld [vmem:[#allocation10 + $0x350] sm:$0xff]
    %v368 = vld [vmem:[#allocation10 + $0x358] sm:$0xff]
    %v369 = vld [vmem:[#allocation10 + $0x360] sm:$0xff]
    %v370 = vld [vmem:[#allocation10 + $0x368] sm:$0xff]
    %v371 = vld [vmem:[#allocation10 + $0x370] sm:$0xff]
    %v372 = vld [vmem:[#allocation10 + $0x378] sm:$0xff]
    %v373 = vld [vmem:[#allocation10 + $0x380] sm:$0xff]
    %v374 = vld [vmem:[#allocation10 + $0x388] sm:$0xff]
    %v375 = vld [vmem:[#allocation10 + $0x390] sm:$0xff]
    %v376 = vld [vmem:[#allocation10 + $0x398] sm:$0xff]
    %v377 = vld [vmem:[#allocation10 + $0x3a0] sm:$0xff]
    %v378 = vld [vmem:[#allocation10 + $0x3a8] sm:$0xff]
    %v379 = vld [vmem:[#allocation10 + $0x3b0] sm:$0xff]
    %v380 = vld [vmem:[#allocation10 + $0x3b8] sm:$0xff]
    %v381 = vld [vmem:[#allocation10 + $0x3c0] sm:$0xff]
    %v382 = vld [vmem:[#allocation10 + $0x3c8] sm:$0xff]
    %v383 = vld [vmem:[#allocation10 + $0x3d0] sm:$0xff]
    %v384 = vld [vmem:[#allocation10 + $0x3d8] sm:$0xff]
    %v385 = vld [vmem:[#allocation10 + $0x3e0] sm:$0xff]
    %v386 = vld [vmem:[#allocation10 + $0x3e8] sm:$0xff]
    %v387 = vld [vmem:[#allocation10 + $0x3f0] sm:$0xff]
    %v388 = vld [vmem:[#allocation10 + $0x3f8] sm:$0xff]
    %v391 = vunpack.c.l.b16 %v259
    %v392 = vunpack.c.h.b16 %v259
    %v393 = vunpack.c.l.b16 %v260
    %v394 = vunpack.c.h.b16 %v260
    %v395 = vpack.c.b16 %v391, %v391
    %v396 = vpack.c.b16 %v392, %v392
    %v397 = vpack.c.b16 %v393, %v393
    %v398 = vpack.c.b16 %v394, %v394
    %v531 = vunpack.c.l.b16 %v261
    %v532 = vunpack.c.h.b16 %v261
    %v533 = vunpack.c.l.b16 %v262
    %v534 = vunpack.c.h.b16 %v262
    %v535 = vunpack.c.l.b16 %v263
    %v536 = vunpack.c.h.b16 %v263
    %v537 = vunpack.c.l.b16 %v264
    %v538 = vunpack.c.h.b16 %v264
    %v539 = vunpack.c.l.b16 %v265
    %v540 = vunpack.c.h.b16 %v265
    %v541 = vunpack.c.l.b16 %v266
    %v542 = vunpack.c.h.b16 %v266
    %v543 = vunpack.c.l.b16 %v267
    %v544 = vunpack.c.h.b16 %v267
    %v545 = vunpack.c.l.b16 %v268
    %v546 = vunpack.c.h.b16 %v268
    %v547 = vunpack.c.l.b16 %v269
    %v548 = vunpack.c.h.b16 %v269
    %v549 = vunpack.c.l.b16 %v270
    %v550 = vunpack.c.h.b16 %v270
    %v551 = vunpack.c.l.b16 %v271
    %v552 = vunpack.c.h.b16 %v271
    %v553 = vunpack.c.l.b16 %v272
    %v554 = vunpack.c.h.b16 %v272
    %v555 = vunpack.c.l.b16 %v273
    %v556 = vunpack.c.h.b16 %v273
    %v557 = vunpack.c.l.b16 %v274
    %v558 = vunpack.c.h.b16 %v274
    %v559 = vunpack.c.l.b16 %v275
    %v560 = vunpack.c.h.b16 %v275
    %v561 = vunpack.c.l.b16 %v276
    %v562 = vunpack.c.h.b16 %v276
    %v563 = vunpack.c.l.b16 %v277
    %v564 = vunpack.c.h.b16 %v277
    %v565 = vunpack.c.l.b16 %v278
    %v566 = vunpack.c.h.b16 %v278
    %v567 = vunpack.c.l.b16 %v279
    %v568 = vunpack.c.h.b16 %v279
    %v569 = vunpack.c.l.b16 %v280
    %v570 = vunpack.c.h.b16 %v280
    %v571 = vunpack.c.l.b16 %v281
    %v572 = vunpack.c.h.b16 %v281
    %v573 = vunpack.c.l.b16 %v282
    %v574 = vunpack.c.h.b16 %v282
    %v575 = vunpack.c.l.b16 %v283
    %v576 = vunpack.c.h.b16 %v283
    %v577 = vunpack.c.l.b16 %v284
    %v578 = vunpack.c.h.b16 %v284
    %v579 = vunpack.c.l.b16 %v285
    %v580 = vunpack.c.h.b16 %v285
    %v581 = vunpack.c.l.b16 %v286
    %v582 = vunpack.c.h.b16 %v286
    %v583 = vunpack.c.l.b16 %v287
    %v584 = vunpack.c.h.b16 %v287
    %v585 = vunpack.c.l.b16 %v288
    %v586 = vunpack.c.h.b16 %v288
    %v587 = vunpack.c.l.b16 %v289
    %v588 = vunpack.c.h.b16 %v289
    %v589 = vunpack.c.l.b16 %v290
    %v590 = vunpack.c.h.b16 %v290
    %v591 = vunpack.c.l.b16 %v291
    %v592 = vunpack.c.h.b16 %v291
    %v593 = vunpack.c.l.b16 %v292
    %v594 = vunpack.c.h.b16 %v292
    %v595 = vunpack.c.l.b16 %v293
    %v596 = vunpack.c.h.b16 %v293
    %v597 = vunpack.c.l.b16 %v294
    %v598 = vunpack.c.h.b16 %v294
    %v599 = vunpack.c.l.b16 %v295
    %v600 = vunpack.c.h.b16 %v295
    %v601 = vunpack.c.l.b16 %v296
    %v602 = vunpack.c.h.b16 %v296
    %v603 = vunpack.c.l.b16 %v297
    %v604 = vunpack.c.h.b16 %v297
    %v605 = vunpack.c.l.b16 %v298
    %v606 = vunpack.c.h.b16 %v298
    %v607 = vunpack.c.l.b16 %v299
    %v608 = vunpack.c.h.b16 %v299
    %v609 = vunpack.c.l.b16 %v300
    %v610 = vunpack.c.h.b16 %v300
    %v611 = vunpack.c.l.b16 %v301
    %v612 = vunpack.c.h.b16 %v301
    %v613 = vunpack.c.l.b16 %v302
    %v614 = vunpack.c.h.b16 %v302
    %v615 = vunpack.c.l.b16 %v303
    %v616 = vunpack.c.h.b16 %v303
    %v617 = vunpack.c.l.b16 %v304
    %v618 = vunpack.c.h.b16 %v304
    %v619 = vunpack.c.l.b16 %v305
    %v620 = vunpack.c.h.b16 %v305
    %v621 = vunpack.c.l.b16 %v306
    %v622 = vunpack.c.h.b16 %v306
    %v623 = vunpack.c.l.b16 %v307
    %v624 = vunpack.c.h.b16 %v307
    %v625 = vunpack.c.l.b16 %v308
    %v626 = vunpack.c.h.b16 %v308
    %v627 = vunpack.c.l.b16 %v309
    %v628 = vunpack.c.h.b16 %v309
    %v629 = vunpack.c.l.b16 %v310
    %v630 = vunpack.c.h.b16 %v310
    %v631 = vunpack.c.l.b16 %v311
    %v632 = vunpack.c.h.b16 %v311
    %v633 = vunpack.c.l.b16 %v312
    %v634 = vunpack.c.h.b16 %v312
    %v635 = vunpack.c.l.b16 %v313
    %v636 = vunpack.c.h.b16 %v313
    %v637 = vunpack.c.l.b16 %v314
    %v638 = vunpack.c.h.b16 %v314
    %v639 = vunpack.c.l.b16 %v315
    %v640 = vunpack.c.h.b16 %v315
    %v641 = vunpack.c.l.b16 %v316
    %v642 = vunpack.c.h.b16 %v316
    %v643 = vunpack.c.l.b16 %v317
    %v644 = vunpack.c.h.b16 %v317
    %v645 = vunpack.c.l.b16 %v318
    %v646 = vunpack.c.h.b16 %v318
    %v647 = vunpack.c.l.b16 %v319
    %v648 = vunpack.c.h.b16 %v319
    %v649 = vunpack.c.l.b16 %v320
    %v650 = vunpack.c.h.b16 %v320
    %v651 = vunpack.c.l.b16 %v321
    %v652 = vunpack.c.h.b16 %v321
    %v653 = vunpack.c.l.b16 %v322
    %v654 = vunpack.c.h.b16 %v322
    %v655 = vunpack.c.l.b16 %v323
    %v656 = vunpack.c.h.b16 %v323
    %v657 = vunpack.c.l.b16 %v324
    %v658 = vunpack.c.h.b16 %v324
    %v659 = vunpack.c.l.b16 %v325
    %v660 = vunpack.c.h.b16 %v325
    %v661 = vunpack.c.l.b16 %v326
    %v662 = vunpack.c.h.b16 %v326
    %v663 = vunpack.c.l.b16 %v327
    %v664 = vunpack.c.h.b16 %v327
    %v665 = vunpack.c.l.b16 %v328
    %v666 = vunpack.c.h.b16 %v328
    %v667 = vunpack.c.l.b16 %v329
    %v668 = vunpack.c.h.b16 %v329
    %v669 = vunpack.c.l.b16 %v330
    %v670 = vunpack.c.h.b16 %v330
    %v671 = vunpack.c.l.b16 %v331
    %v672 = vunpack.c.h.b16 %v331
    %v673 = vunpack.c.l.b16 %v332
    %v674 = vunpack.c.h.b16 %v332
    %v675 = vunpack.c.l.b16 %v333
    %v676 = vunpack.c.h.b16 %v333
    %v677 = vunpack.c.l.b16 %v334
    %v678 = vunpack.c.h.b16 %v334
    %v679 = vunpack.c.l.b16 %v335
    %v680 = vunpack.c.h.b16 %v335
    %v681 = vunpack.c.l.b16 %v336
    %v682 = vunpack.c.h.b16 %v336
    %v683 = vunpack.c.l.b16 %v337
    %v684 = vunpack.c.h.b16 %v337
    %v685 = vunpack.c.l.b16 %v338
    %v686 = vunpack.c.h.b16 %v338
    %v687 = vunpack.c.l.b16 %v339
    %v688 = vunpack.c.h.b16 %v339
    %v689 = vunpack.c.l.b16 %v340
    %v690 = vunpack.c.h.b16 %v340
    %v691 = vunpack.c.l.b16 %v341
    %v692 = vunpack.c.h.b16 %v341
    %v693 = vunpack.c.l.b16 %v342
    %v694 = vunpack.c.h.b16 %v342
    %v695 = vunpack.c.l.b16 %v343
    %v696 = vunpack.c.h.b16 %v343
    %v697 = vunpack.c.l.b16 %v344
    %v698 = vunpack.c.h.b16 %v344
    %v699 = vunpack.c.l.b16 %v345
    %v700 = vunpack.c.h.b16 %v345
    %v701 = vunpack.c.l.b16 %v346
    %v702 = vunpack.c.h.b16 %v346
    %v703 = vunpack.c.l.b16 %v347
    %v704 = vunpack.c.h.b16 %v347
    %v705 = vunpack.c.l.b16 %v348
    %v706 = vunpack.c.h.b16 %v348
    %v707 = vunpack.c.l.b16 %v349
    %v708 = vunpack.c.h.b16 %v349
    %v709 = vunpack.c.l.b16 %v350
    %v710 = vunpack.c.h.b16 %v350
    %v711 = vunpack.c.l.b16 %v351
    %v712 = vunpack.c.h.b16 %v351
    %v713 = vunpack.c.l.b16 %v352
    %v714 = vunpack.c.h.b16 %v352
    %v715 = vunpack.c.l.b16 %v353
    %v716 = vunpack.c.h.b16 %v353
    %v717 = vunpack.c.l.b16 %v354
    %v718 = vunpack.c.h.b16 %v354
    %v719 = vunpack.c.l.b16 %v355
    %v720 = vunpack.c.h.b16 %v355
    %v721 = vunpack.c.l.b16 %v356
    %v722 = vunpack.c.h.b16 %v356
    %v723 = vunpack.c.l.b16 %v357
    %v724 = vunpack.c.h.b16 %v357
    %v725 = vunpack.c.l.b16 %v358
    %v726 = vunpack.c.h.b16 %v358
    %v727 = vunpack.c.l.b16 %v359
    %v728 = vunpack.c.h.b16 %v359
    %v729 = vunpack.c.l.b16 %v360
    %v730 = vunpack.c.h.b16 %v360
    %v731 = vunpack.c.l.b16 %v361
    %v732 = vunpack.c.h.b16 %v361
    %v733 = vunpack.c.l.b16 %v362
    %v734 = vunpack.c.h.b16 %v362
    %v735 = vunpack.c.l.b16 %v363
    %v736 = vunpack.c.h.b16 %v363
    %v737 = vunpack.c.l.b16 %v364
    %v738 = vunpack.c.h.b16 %v364
    %v739 = vunpack.c.l.b16 %v365
    %v740 = vunpack.c.h.b16 %v365
    %v741 = vunpack.c.l.b16 %v366
    %v742 = vunpack.c.h.b16 %v366
    %v743 = vunpack.c.l.b16 %v367
    %v744 = vunpack.c.h.b16 %v367
    %v745 = vunpack.c.l.b16 %v368
    %v746 = vunpack.c.h.b16 %v368
    %v747 = vunpack.c.l.b16 %v369
    %v748 = vunpack.c.h.b16 %v369
    %v749 = vunpack.c.l.b16 %v370
    %v750 = vunpack.c.h.b16 %v370
    %v751 = vunpack.c.l.b16 %v371
    %v752 = vunpack.c.h.b16 %v371
    %v753 = vunpack.c.l.b16 %v372
    %v754 = vunpack.c.h.b16 %v372
    %v755 = vunpack.c.l.b16 %v373
    %v756 = vunpack.c.h.b16 %v373
    %v757 = vunpack.c.l.b16 %v374
    %v758 = vunpack.c.h.b16 %v374
    %v759 = vunpack.c.l.b16 %v375
    %v760 = vunpack.c.h.b16 %v375
    %v761 = vunpack.c.l.b16 %v376
    %v762 = vunpack.c.h.b16 %v376
    %v763 = vunpack.c.l.b16 %v377
    %v764 = vunpack.c.h.b16 %v377
    %v765 = vunpack.c.l.b16 %v378
    %v766 = vunpack.c.h.b16 %v378
    %v767 = vunpack.c.l.b16 %v379
    %v768 = vunpack.c.h.b16 %v379
    %v769 = vunpack.c.l.b16 %v380
    %v770 = vunpack.c.h.b16 %v380
    %v771 = vunpack.c.l.b16 %v381
    %v772 = vunpack.c.h.b16 %v381
    %v773 = vunpack.c.l.b16 %v382
    %v774 = vunpack.c.h.b16 %v382
    %v775 = vunpack.c.l.b16 %v383
    %v776 = vunpack.c.h.b16 %v383
    %v777 = vunpack.c.l.b16 %v384
    %v778 = vunpack.c.h.b16 %v384
    %v779 = vunpack.c.l.b16 %v385
    %v780 = vunpack.c.h.b16 %v385
    %v781 = vunpack.c.l.b16 %v386
    %v782 = vunpack.c.h.b16 %v386
    %v783 = vunpack.c.l.b16 %v387
    %v784 = vunpack.c.h.b16 %v387
    %v785 = vunpack.c.l.b16 %v388
    %v786 = vunpack.c.h.b16 %v388
    %v787 = vpack.c.b16 %v535, %v531
    %v788 = vpack.c.b16 %v536, %v532
    %v789 = vpack.c.b16 %v537, %v533
    %v790 = vpack.c.b16 %v538, %v534
    %v791 = vpack.c.b16 %v543, %v539
    %v792 = vpack.c.b16 %v544, %v540
    %v793 = vpack.c.b16 %v545, %v541
    %v794 = vpack.c.b16 %v546, %v542
    %v795 = vpack.c.b16 %v551, %v547
    %v796 = vpack.c.b16 %v552, %v548
    %v797 = vpack.c.b16 %v553, %v549
    %v798 = vpack.c.b16 %v554, %v550
    %v799 = vpack.c.b16 %v559, %v555
    %v800 = vpack.c.b16 %v560, %v556
    %v801 = vpack.c.b16 %v561, %v557
    %v802 = vpack.c.b16 %v562, %v558
    %v803 = vpack.c.b16 %v567, %v563
    %v804 = vpack.c.b16 %v568, %v564
    %v805 = vpack.c.b16 %v569, %v565
    %v806 = vpack.c.b16 %v570, %v566
    %v807 = vpack.c.b16 %v575, %v571
    %v808 = vpack.c.b16 %v576, %v572
    %v809 = vpack.c.b16 %v577, %v573
    %v810 = vpack.c.b16 %v578, %v574
    %v811 = vpack.c.b16 %v583, %v579
    %v812 = vpack.c.b16 %v584, %v580
    %v813 = vpack.c.b16 %v585, %v581
    %v814 = vpack.c.b16 %v586, %v582
    %v815 = vpack.c.b16 %v591, %v587
    %v816 = vpack.c.b16 %v592, %v588
    %v817 = vpack.c.b16 %v593, %v589
    %v818 = vpack.c.b16 %v594, %v590
    %v819 = vpack.c.b16 %v599, %v595
    %v820 = vpack.c.b16 %v600, %v596
    %v821 = vpack.c.b16 %v601, %v597
    %v822 = vpack.c.b16 %v602, %v598
    %v823 = vpack.c.b16 %v607, %v603
    %v824 = vpack.c.b16 %v608, %v604
    %v825 = vpack.c.b16 %v609, %v605
    %v826 = vpack.c.b16 %v610, %v606
    %v827 = vpack.c.b16 %v615, %v611
    %v828 = vpack.c.b16 %v616, %v612
    %v829 = vpack.c.b16 %v617, %v613
    %v830 = vpack.c.b16 %v618, %v614
    %v831 = vpack.c.b16 %v623, %v619
    %v832 = vpack.c.b16 %v624, %v620
    %v833 = vpack.c.b16 %v625, %v621
    %v834 = vpack.c.b16 %v626, %v622
    %v835 = vpack.c.b16 %v631, %v627
    %v836 = vpack.c.b16 %v632, %v628
    %v837 = vpack.c.b16 %v633, %v629
    %v838 = vpack.c.b16 %v634, %v630
    %v839 = vpack.c.b16 %v639, %v635
    %v840 = vpack.c.b16 %v640, %v636
    %v841 = vpack.c.b16 %v641, %v637
    %v842 = vpack.c.b16 %v642, %v638
    %v843 = vpack.c.b16 %v647, %v643
    %v844 = vpack.c.b16 %v648, %v644
    %v845 = vpack.c.b16 %v649, %v645
    %v846 = vpack.c.b16 %v650, %v646
    %v847 = vpack.c.b16 %v655, %v651
    %v848 = vpack.c.b16 %v656, %v652
    %v849 = vpack.c.b16 %v657, %v653
    %v850 = vpack.c.b16 %v658, %v654
    %v851 = vpack.c.b16 %v663, %v659
    %v852 = vpack.c.b16 %v664, %v660
    %v853 = vpack.c.b16 %v665, %v661
    %v854 = vpack.c.b16 %v666, %v662
    %v855 = vpack.c.b16 %v671, %v667
    %v856 = vpack.c.b16 %v672, %v668
    %v857 = vpack.c.b16 %v673, %v669
    %v858 = vpack.c.b16 %v674, %v670
    %v859 = vpack.c.b16 %v679, %v675
    %v860 = vpack.c.b16 %v680, %v676
    %v861 = vpack.c.b16 %v681, %v677
    %v862 = vpack.c.b16 %v682, %v678
    %v863 = vpack.c.b16 %v687, %v683
    %v864 = vpack.c.b16 %v688, %v684
    %v865 = vpack.c.b16 %v689, %v685
    %v866 = vpack.c.b16 %v690, %v686
    %v867 = vpack.c.b16 %v695, %v691
    %v868 = vpack.c.b16 %v696, %v692
    %v869 = vpack.c.b16 %v697, %v693
    %v870 = vpack.c.b16 %v698, %v694
    %v871 = vpack.c.b16 %v703, %v699
    %v872 = vpack.c.b16 %v704, %v700
    %v873 = vpack.c.b16 %v705, %v701
    %v874 = vpack.c.b16 %v706, %v702
    %v875 = vpack.c.b16 %v711, %v707
    %v876 = vpack.c.b16 %v712, %v708
    %v877 = vpack.c.b16 %v713, %v709
    %v878 = vpack.c.b16 %v714, %v710
    %v879 = vpack.c.b16 %v719, %v715
    %v880 = vpack.c.b16 %v720, %v716
    %v881 = vpack.c.b16 %v721, %v717
    %v882 = vpack.c.b16 %v722, %v718
    %v883 = vpack.c.b16 %v727, %v723
    %v884 = vpack.c.b16 %v728, %v724
    %v885 = vpack.c.b16 %v729, %v725
    %v886 = vpack.c.b16 %v730, %v726
    %v887 = vpack.c.b16 %v735, %v731
    %v888 = vpack.c.b16 %v736, %v732
    %v889 = vpack.c.b16 %v737, %v733
    %v890 = vpack.c.b16 %v738, %v734
    %v891 = vpack.c.b16 %v743, %v739
    %v892 = vpack.c.b16 %v744, %v740
    %v893 = vpack.c.b16 %v745, %v741
    %v894 = vpack.c.b16 %v746, %v742
    %v895 = vpack.c.b16 %v751, %v747
    %v896 = vpack.c.b16 %v752, %v748
    %v897 = vpack.c.b16 %v753, %v749
    %v898 = vpack.c.b16 %v754, %v750
    %v899 = vpack.c.b16 %v759, %v755
    %v900 = vpack.c.b16 %v760, %v756
    %v901 = vpack.c.b16 %v761, %v757
    %v902 = vpack.c.b16 %v762, %v758
    %v903 = vpack.c.b16 %v767, %v763
    %v904 = vpack.c.b16 %v768, %v764
    %v905 = vpack.c.b16 %v769, %v765
    %v906 = vpack.c.b16 %v770, %v766
    %v907 = vpack.c.b16 %v775, %v771
    %v908 = vpack.c.b16 %v776, %v772
    %v909 = vpack.c.b16 %v777, %v773
    %v910 = vpack.c.b16 %v778, %v774
    %v911 = vpack.c.b16 %v783, %v779
    %v912 = vpack.c.b16 %v784, %v780
    %v913 = vpack.c.b16 %v785, %v781
    %v914 = vpack.c.b16 %v786, %v782
    %1043 = vmatprep.subr.bf16.mxu0 %v788
    %1044 = vmatpush1.bf16.msra.mxu0 %v787
    %1045 = vmatprep.subr.bf16.mxu0 %v792
    %1046 = vmatpush1.bf16.msra.mxu0 %v791
    %1047 = vmatprep.subr.bf16.mxu0 %v796
    %1048 = vmatpush1.bf16.msra.mxu0 %v795
    %1049 = vmatprep.subr.bf16.mxu0 %v800
    %1050 = vmatpush1.bf16.msra.mxu0 %v799
    %1051 = vmatprep.subr.bf16.mxu0 %v804
    %1052 = vmatpush1.bf16.msra.mxu0 %v803
    %1053 = vmatprep.subr.bf16.mxu0 %v808
    %1054 = vmatpush1.bf16.msra.mxu0 %v807
    %1055 = vmatprep.subr.bf16.mxu0 %v812
    %1056 = vmatpush1.bf16.msra.mxu0 %v811
    %1057 = vmatprep.subr.bf16.mxu0 %v816
    %1058 = vmatpush1.bf16.msra.mxu0 %v815
    %1059 = vmatprep.subr.bf16.mxu0 %v820
    %1060 = vmatpush1.bf16.msra.mxu0 %v819
    %1061 = vmatprep.subr.bf16.mxu0 %v824
    %1062 = vmatpush1.bf16.msra.mxu0 %v823
    %1063 = vmatprep.subr.bf16.mxu0 %v828
    %1064 = vmatpush1.bf16.msra.mxu0 %v827
    %1065 = vmatprep.subr.bf16.mxu0 %v832
    %1066 = vmatpush1.bf16.msra.mxu0 %v831
    %1067 = vmatprep.subr.bf16.mxu0 %v836
    %1068 = vmatpush1.bf16.msra.mxu0 %v835
    %1069 = vmatprep.subr.bf16.mxu0 %v840
    %1070 = vmatpush1.bf16.msra.mxu0 %v839
    %1071 = vmatprep.subr.bf16.mxu0 %v844
    %1072 = vmatpush1.bf16.msra.mxu0 %v843
    %1073 = vmatprep.subr.bf16.mxu0 %v848
    %1074 = vmatpush1.bf16.msra.mxu0 %v847
    %1075 = vmatprep.mubr.bf16.mxu0 %v396
    %1076 = vmatmul.mubr.bf16.gmra.mrb[0].mxu0 %v395
    %v1077 = vpop.f32.mrb[0].mxu0
    %v1078 = vadd.f32 0.0, %v1077
    %v1079 = vpop.f32.mrb[0].mxu0
    %v1080 = vadd.f32 0.0, %v1079
    %v1081 = vpop.f32.mrb[0].mxu0
    %v1082 = vpop.f32.mrb[0].mxu0
    %1083 = vdwg.mxu0
    %1084 = vmatprep.subr.bf16.mxu0 %v852
    %1085 = vmatpush1.bf16.msra.mxu0 %v851
    %1086 = vmatprep.subr.bf16.mxu0 %v856
    %1087 = vmatpush1.bf16.msra.mxu0 %v855
    %1088 = vmatprep.subr.bf16.mxu0 %v860
    %1089 = vmatpush1.bf16.msra.mxu0 %v859
    %1090 = vmatprep.subr.bf16.mxu0 %v864
    %1091 = vmatpush1.bf16.msra.mxu0 %v863
    %1092 = vmatprep.subr.bf16.mxu0 %v868
    %1093 = vmatpush1.bf16.msra.mxu0 %v867
    %1094 = vmatprep.subr.bf16.mxu0 %v872
    %1095 = vmatpush1.bf16.msra.mxu0 %v871
    %1096 = vmatprep.subr.bf16.mxu0 %v876
    %1097 = vmatpush1.bf16.msra.mxu0 %v875
    %1098 = vmatprep.subr.bf16.mxu0 %v880
    %1099 = vmatpush1.bf16.msra.mxu0 %v879
    %1100 = vmatprep.subr.bf16.mxu0 %v884
    %1101 = vmatpush1.bf16.msra.mxu0 %v883
    %1102 = vmatprep.subr.bf16.mxu0 %v888
    %1103 = vmatpush1.bf16.msra.mxu0 %v887
    %1104 = vmatprep.subr.bf16.mxu0 %v892
    %1105 = vmatpush1.bf16.msra.mxu0 %v891
    %1106 = vmatprep.subr.bf16.mxu0 %v896
    %1107 = vmatpush1.bf16.msra.mxu0 %v895
    %1108 = vmatprep.subr.bf16.mxu0 %v900
    %1109 = vmatpush1.bf16.msra.mxu0 %v899
    %1110 = vmatprep.subr.bf16.mxu0 %v904
    %1111 = vmatpush1.bf16.msra.mxu0 %v903
    %1112 = vmatprep.subr.bf16.mxu0 %v908
    %1113 = vmatpush1.bf16.msra.mxu0 %v907
    %1114 = vmatprep.subr.bf16.mxu0 %v912
    %1115 = vmatpush1.bf16.msra.mxu0 %v911
    %1116 = vmatprep.mubr.bf16.mxu0 %v398
    %1117 = vmatmul.mubr.bf16.gmra.mrb[0].mxu0 %v397
    %v1118 = vpop.f32.mrb[0].mxu0
    %v1119 = vadd.f32 %v1078, %v1118
    %v1120 = vpop.f32.mrb[0].mxu0
    %v1121 = vadd.f32 %v1080, %v1120
    %v1122 = vpop.f32.mrb[0].mxu0
    %v1123 = vpop.f32.mrb[0].mxu0
    %1124 = vdwg.mxu0
    %1125 = vmatprep.subr.bf16.mxu0 %v790
    %1126 = vmatpush1.bf16.msra.mxu0 %v789
    %1127 = vmatprep.subr.bf16.mxu0 %v794
    %1128 = vmatpush1.bf16.msra.mxu0 %v793
    %1129 = vmatprep.subr.bf16.mxu0 %v798
    %1130 = vmatpush1.bf16.msra.mxu0 %v797
    %1131 = vmatprep.subr.bf16.mxu0 %v802
    %1132 = vmatpush1.bf16.msra.mxu0 %v801
    %1133 = vmatprep.subr.bf16.mxu0 %v806
    %1134 = vmatpush1.bf16.msra.mxu0 %v805
    %1135 = vmatprep.subr.bf16.mxu0 %v810
    %1136 = vmatpush1.bf16.msra.mxu0 %v809
    %1137 = vmatprep.subr.bf16.mxu0 %v814
    %1138 = vmatpush1.bf16.msra.mxu0 %v813
    %1139 = vmatprep.subr.bf16.mxu0 %v818
    %1140 = vmatpush1.bf16.msra.mxu0 %v817
    %1141 = vmatprep.subr.bf16.mxu0 %v822
    %1142 = vmatpush1.bf16.msra.mxu0 %v821
    %1143 = vmatprep.subr.bf16.mxu0 %v826
    %1144 = vmatpush1.bf16.msra.mxu0 %v825
    %1145 = vmatprep.subr.bf16.mxu0 %v830
    %1146 = vmatpush1.bf16.msra.mxu0 %v829
    %1147 = vmatprep.subr.bf16.mxu0 %v834
    %1148 = vmatpush1.bf16.msra.mxu0 %v833
    %1149 = vmatprep.subr.bf16.mxu0 %v838
    %1150 = vmatpush1.bf16.msra.mxu0 %v837
    %1151 = vmatprep.subr.bf16.mxu0 %v842
    %1152 = vmatpush1.bf16.msra.mxu0 %v841
    %1153 = vmatprep.subr.bf16.mxu0 %v846
    %1154 = vmatpush1.bf16.msra.mxu0 %v845
    %1155 = vmatprep.subr.bf16.mxu0 %v850
    %1156 = vmatpush1.bf16.msra.mxu0 %v849
    %1157 = vmatprep.mubr.bf16.mxu0 %v396
    %1158 = vmatmul.mubr.bf16.gmra.mrb[0].mxu0 %v395
    %v1159 = vpop.f32.mrb[0].mxu0
    %v1160 = vadd.f32 0.0, %v1159
    %v1161 = vpop.f32.mrb[0].mxu0
    %v1162 = vadd.f32 0.0, %v1161
    %v1163 = vpop.f32.mrb[0].mxu0
    %v1164 = vpop.f32.mrb[0].mxu0
    %1165 = vdwg.mxu0
    %1166 = vmatprep.subr.bf16.mxu0 %v854
    %1167 = vmatpush1.bf16.msra.mxu0 %v853
    %1168 = vmatprep.subr.bf16.mxu0 %v858
    %1169 = vmatpush1.bf16.msra.mxu0 %v857
    %1170 = vmatprep.subr.bf16.mxu0 %v862
    %1171 = vmatpush1.bf16.msra.mxu0 %v861
    %1172 = vmatprep.subr.bf16.mxu0 %v866
    %1173 = vmatpush1.bf16.msra.mxu0 %v865
    %1174 = vmatprep.subr.bf16.mxu0 %v870
    %1175 = vmatpush1.bf16.msra.mxu0 %v869
    %1176 = vmatprep.subr.bf16.mxu0 %v874
    %1177 = vmatpush1.bf16.msra.mxu0 %v873
    %1178 = vmatprep.subr.bf16.mxu0 %v878
    %1179 = vmatpush1.bf16.msra.mxu0 %v877
    %1180 = vmatprep.subr.bf16.mxu0 %v882
    %1181 = vmatpush1.bf16.msra.mxu0 %v881
    %1182 = vmatprep.subr.bf16.mxu0 %v886
    %1183 = vmatpush1.bf16.msra.mxu0 %v885
    %1184 = vmatprep.subr.bf16.mxu0 %v890
    %1185 = vmatpush1.bf16.msra.mxu0 %v889
    %1186 = vmatprep.subr.bf16.mxu0 %v894
    %1187 = vmatpush1.bf16.msra.mxu0 %v893
    %1188 = vmatprep.subr.bf16.mxu0 %v898
    %1189 = vmatpush1.bf16.msra.mxu0 %v897
    %1190 = vmatprep.subr.bf16.mxu0 %v902
    %1191 = vmatpush1.bf16.msra.mxu0 %v901
    %1192 = vmatprep.subr.bf16.mxu0 %v906
    %1193 = vmatpush1.bf16.msra.mxu0 %v905
    %1194 = vmatprep.subr.bf16.mxu0 %v910
    %1195 = vmatpush1.bf16.msra.mxu0 %v909
    %1196 = vmatprep.subr.bf16.mxu0 %v914
    %1197 = vmatpush1.bf16.msra.mxu0 %v913
    %1198 = vmatprep.mubr.bf16.mxu0 %v398
    %1199 = vmatmul.mubr.bf16.gmra.mrb[0].mxu0 %v397
    %v1200 = vpop.f32.mrb[0].mxu0
    %v1201 = vadd.f32 %v1160, %v1200
    %v1202 = vpop.f32.mrb[0].mxu0
    %v1203 = vadd.f32 %v1162, %v1202
    %v1204 = vpop.f32.mrb[0].mxu0
    %v1205 = vpop.f32.mrb[0].mxu0
    %1206 = vdwg.mxu0
    %v1209 = vunpack.c.l.b16 %v129
    %v1210 = vunpack.c.h.b16 %v129
    %v1211 = vunpack.c.l.b16 %v130
    %v1212 = vunpack.c.h.b16 %v130
    %v1213 = vpack.c.b16 %v1209, %v1209
    %v1214 = vpack.c.b16 %v1210, %v1210
    %v1215 = vpack.c.b16 %v1211, %v1211
    %v1216 = vpack.c.b16 %v1212, %v1212
    %v1349 = vunpack.c.l.b16 %v131
    %v1350 = vunpack.c.h.b16 %v131
    %v1351 = vunpack.c.l.b16 %v132
    %v1352 = vunpack.c.h.b16 %v132
    %v1353 = vunpack.c.l.b16 %v133
    %v1354 = vunpack.c.h.b16 %v133
    %v1355 = vunpack.c.l.b16 %v134
    %v1356 = vunpack.c.h.b16 %v134
    %v1357 = vunpack.c.l.b16 %v135
    %v1358 = vunpack.c.h.b16 %v135
    %v1359 = vunpack.c.l.b16 %v136
    %v1360 = vunpack.c.h.b16 %v136
    %v1361 = vunpack.c.l.b16 %v137
    %v1362 = vunpack.c.h.b16 %v137
    %v1363 = vunpack.c.l.b16 %v138
    %v1364 = vunpack.c.h.b16 %v138
    %v1365 = vunpack.c.l.b16 %v139
    %v1366 = vunpack.c.h.b16 %v139
    %v1367 = vunpack.c.l.b16 %v140
    %v1368 = vunpack.c.h.b16 %v140
    %v1369 = vunpack.c.l.b16 %v141
    %v1370 = vunpack.c.h.b16 %v141
    %v1371 = vunpack.c.l.b16 %v142
    %v1372 = vunpack.c.h.b16 %v142
    %v1373 = vunpack.c.l.b16 %v143
    %v1374 = vunpack.c.h.b16 %v143
    %v1375 = vunpack.c.l.b16 %v144
    %v1376 = vunpack.c.h.b16 %v144
    %v1377 = vunpack.c.l.b16 %v145
    %v1378 = vunpack.c.h.b16 %v145
    %v1379 = vunpack.c.l.b16 %v146
    %v1380 = vunpack.c.h.b16 %v146
    %v1381 = vunpack.c.l.b16 %v147
    %v1382 = vunpack.c.h.b16 %v147
    %v1383 = vunpack.c.l.b16 %v148
    %v1384 = vunpack.c.h.b16 %v148
    %v1385 = vunpack.c.l.b16 %v149
    %v1386 = vunpack.c.h.b16 %v149
    %v1387 = vunpack.c.l.b16 %v150
    %v1388 = vunpack.c.h.b16 %v150
    %v1389 = vunpack.c.l.b16 %v151
    %v1390 = vunpack.c.h.b16 %v151
    %v1391 = vunpack.c.l.b16 %v152
    %v1392 = vunpack.c.h.b16 %v152
    %v1393 = vunpack.c.l.b16 %v153
    %v1394 = vunpack.c.h.b16 %v153
    %v1395 = vunpack.c.l.b16 %v154
    %v1396 = vunpack.c.h.b16 %v154
    %v1397 = vunpack.c.l.b16 %v155
    %v1398 = vunpack.c.h.b16 %v155
    %v1399 = vunpack.c.l.b16 %v156
    %v1400 = vunpack.c.h.b16 %v156
    %v1401 = vunpack.c.l.b16 %v157
    %v1402 = vunpack.c.h.b16 %v157
    %v1403 = vunpack.c.l.b16 %v158
    %v1404 = vunpack.c.h.b16 %v158
    %v1405 = vunpack.c.l.b16 %v159
    %v1406 = vunpack.c.h.b16 %v159
    %v1407 = vunpack.c.l.b16 %v160
    %v1408 = vunpack.c.h.b16 %v160
    %v1409 = vunpack.c.l.b16 %v161
    %v1410 = vunpack.c.h.b16 %v161
    %v1411 = vunpack.c.l.b16 %v162
    %v1412 = vunpack.c.h.b16 %v162
    %v1413 = vunpack.c.l.b16 %v163
    %v1414 = vunpack.c.h.b16 %v163
    %v1415 = vunpack.c.l.b16 %v164
    %v1416 = vunpack.c.h.b16 %v164
    %v1417 = vunpack.c.l.b16 %v165
    %v1418 = vunpack.c.h.b16 %v165
    %v1419 = vunpack.c.l.b16 %v166
    %v1420 = vunpack.c.h.b16 %v166
    %v1421 = vunpack.c.l.b16 %v167
    %v1422 = vunpack.c.h.b16 %v167
    %v1423 = vunpack.c.l.b16 %v168
    %v1424 = vunpack.c.h.b16 %v168
    %v1425 = vunpack.c.l.b16 %v169
    %v1426 = vunpack.c.h.b16 %v169
    %v1427 = vunpack.c.l.b16 %v170
    %v1428 = vunpack.c.h.b16 %v170
    %v1429 = vunpack.c.l.b16 %v171
    %v1430 = vunpack.c.h.b16 %v171
    %v1431 = vunpack.c.l.b16 %v172
    %v1432 = vunpack.c.h.b16 %v172
    %v1433 = vunpack.c.l.b16 %v173
    %v1434 = vunpack.c.h.b16 %v173
    %v1435 = vunpack.c.l.b16 %v174
    %v1436 = vunpack.c.h.b16 %v174
    %v1437 = vunpack.c.l.b16 %v175
    %v1438 = vunpack.c.h.b16 %v175
    %v1439 = vunpack.c.l.b16 %v176
    %v1440 = vunpack.c.h.b16 %v176
    %v1441 = vunpack.c.l.b16 %v177
    %v1442 = vunpack.c.h.b16 %v177
    %v1443 = vunpack.c.l.b16 %v178
    %v1444 = vunpack.c.h.b16 %v178
    %v1445 = vunpack.c.l.b16 %v179
    %v1446 = vunpack.c.h.b16 %v179
    %v1447 = vunpack.c.l.b16 %v180
    %v1448 = vunpack.c.h.b16 %v180
    %v1449 = vunpack.c.l.b16 %v181
    %v1450 = vunpack.c.h.b16 %v181
    %v1451 = vunpack.c.l.b16 %v182
    %v1452 = vunpack.c.h.b16 %v182
    %v1453 = vunpack.c.l.b16 %v183
    %v1454 = vunpack.c.h.b16 %v183
    %v1455 = vunpack.c.l.b16 %v184
    %v1456 = vunpack.c.h.b16 %v184
    %v1457 = vunpack.c.l.b16 %v185
    %v1458 = vunpack.c.h.b16 %v185
    %v1459 = vunpack.c.l.b16 %v186
    %v1460 = vunpack.c.h.b16 %v186
    %v1461 = vunpack.c.l.b16 %v187
    %v1462 = vunpack.c.h.b16 %v187
    %v1463 = vunpack.c.l.b16 %v188
    %v1464 = vunpack.c.h.b16 %v188
    %v1465 = vunpack.c.l.b16 %v189
    %v1466 = vunpack.c.h.b16 %v189
    %v1467 = vunpack.c.l.b16 %v190
    %v1468 = vunpack.c.h.b16 %v190
    %v1469 = vunpack.c.l.b16 %v191
    %v1470 = vunpack.c.h.b16 %v191
    %v1471 = vunpack.c.l.b16 %v192
    %v1472 = vunpack.c.h.b16 %v192
    %v1473 = vunpack.c.l.b16 %v193
    %v1474 = vunpack.c.h.b16 %v193
    %v1475 = vunpack.c.l.b16 %v194
    %v1476 = vunpack.c.h.b16 %v194
    %v1477 = vunpack.c.l.b16 %v195
    %v1478 = vunpack.c.h.b16 %v195
    %v1479 = vunpack.c.l.b16 %v196
    %v1480 = vunpack.c.h.b16 %v196
    %v1481 = vunpack.c.l.b16 %v197
    %v1482 = vunpack.c.h.b16 %v197
    %v1483 = vunpack.c.l.b16 %v198
    %v1484 = vunpack.c.h.b16 %v198
    %v1485 = vunpack.c.l.b16 %v199
    %v1486 = vunpack.c.h.b16 %v199
    %v1487 = vunpack.c.l.b16 %v200
    %v1488 = vunpack.c.h.b16 %v200
    %v1489 = vunpack.c.l.b16 %v201
    %v1490 = vunpack.c.h.b16 %v201
    %v1491 = vunpack.c.l.b16 %v202
    %v1492 = vunpack.c.h.b16 %v202
    %v1493 = vunpack.c.l.b16 %v203
    %v1494 = vunpack.c.h.b16 %v203
    %v1495 = vunpack.c.l.b16 %v204
    %v1496 = vunpack.c.h.b16 %v204
    %v1497 = vunpack.c.l.b16 %v205
    %v1498 = vunpack.c.h.b16 %v205
    %v1499 = vunpack.c.l.b16 %v206
    %v1500 = vunpack.c.h.b16 %v206
    %v1501 = vunpack.c.l.b16 %v207
    %v1502 = vunpack.c.h.b16 %v207
    %v1503 = vunpack.c.l.b16 %v208
    %v1504 = vunpack.c.h.b16 %v208
    %v1505 = vunpack.c.l.b16 %v209
    %v1506 = vunpack.c.h.b16 %v209
    %v1507 = vunpack.c.l.b16 %v210
    %v1508 = vunpack.c.h.b16 %v210
    %v1509 = vunpack.c.l.b16 %v211
    %v1510 = vunpack.c.h.b16 %v211
    %v1511 = vunpack.c.l.b16 %v212
    %v1512 = vunpack.c.h.b16 %v212
    %v1513 = vunpack.c.l.b16 %v213
    %v1514 = vunpack.c.h.b16 %v213
    %v1515 = vunpack.c.l.b16 %v214
    %v1516 = vunpack.c.h.b16 %v214
    %v1517 = vunpack.c.l.b16 %v215
    %v1518 = vunpack.c.h.b16 %v215
    %v1519 = vunpack.c.l.b16 %v216
    %v1520 = vunpack.c.h.b16 %v216
    %v1521 = vunpack.c.l.b16 %v217
    %v1522 = vunpack.c.h.b16 %v217
    %v1523 = vunpack.c.l.b16 %v218
    %v1524 = vunpack.c.h.b16 %v218
    %v1525 = vunpack.c.l.b16 %v219
    %v1526 = vunpack.c.h.b16 %v219
    %v1527 = vunpack.c.l.b16 %v220
    %v1528 = vunpack.c.h.b16 %v220
    %v1529 = vunpack.c.l.b16 %v221
    %v1530 = vunpack.c.h.b16 %v221
    %v1531 = vunpack.c.l.b16 %v222
    %v1532 = vunpack.c.h.b16 %v222
    %v1533 = vunpack.c.l.b16 %v223
    %v1534 = vunpack.c.h.b16 %v223
    %v1535 = vunpack.c.l.b16 %v224
    %v1536 = vunpack.c.h.b16 %v224
    %v1537 = vunpack.c.l.b16 %v225
    %v1538 = vunpack.c.h.b16 %v225
    %v1539 = vunpack.c.l.b16 %v226
    %v1540 = vunpack.c.h.b16 %v226
    %v1541 = vunpack.c.l.b16 %v227
    %v1542 = vunpack.c.h.b16 %v227
    %v1543 = vunpack.c.l.b16 %v228
    %v1544 = vunpack.c.h.b16 %v228
    %v1545 = vunpack.c.l.b16 %v229
    %v1546 = vunpack.c.h.b16 %v229
    %v1547 = vunpack.c.l.b16 %v230
    %v1548 = vunpack.c.h.b16 %v230
    %v1549 = vunpack.c.l.b16 %v231
    %v1550 = vunpack.c.h.b16 %v231
    %v1551 = vunpack.c.l.b16 %v232
    %v1552 = vunpack.c.h.b16 %v232
    %v1553 = vunpack.c.l.b16 %v233
    %v1554 = vunpack.c.h.b16 %v233
    %v1555 = vunpack.c.l.b16 %v234
    %v1556 = vunpack.c.h.b16 %v234
    %v1557 = vunpack.c.l.b16 %v235
    %v1558 = vunpack.c.h.b16 %v235
    %v1559 = vunpack.c.l.b16 %v236
    %v1560 = vunpack.c.h.b16 %v236
    %v1561 = vunpack.c.l.b16 %v237
    %v1562 = vunpack.c.h.b16 %v237
    %v1563 = vunpack.c.l.b16 %v238
    %v1564 = vunpack.c.h.b16 %v238
    %v1565 = vunpack.c.l.b16 %v239
    %v1566 = vunpack.c.h.b16 %v239
    %v1567 = vunpack.c.l.b16 %v240
    %v1568 = vunpack.c.h.b16 %v240
    %v1569 = vunpack.c.l.b16 %v241
    %v1570 = vunpack.c.h.b16 %v241
    %v1571 = vunpack.c.l.b16 %v242
    %v1572 = vunpack.c.h.b16 %v242
    %v1573 = vunpack.c.l.b16 %v243
    %v1574 = vunpack.c.h.b16 %v243
    %v1575 = vunpack.c.l.b16 %v244
    %v1576 = vunpack.c.h.b16 %v244
    %v1577 = vunpack.c.l.b16 %v245
    %v1578 = vunpack.c.h.b16 %v245
    %v1579 = vunpack.c.l.b16 %v246
    %v1580 = vunpack.c.h.b16 %v246
    %v1581 = vunpack.c.l.b16 %v247
    %v1582 = vunpack.c.h.b16 %v247
    %v1583 = vunpack.c.l.b16 %v248
    %v1584 = vunpack.c.h.b16 %v248
    %v1585 = vunpack.c.l.b16 %v249
    %v1586 = vunpack.c.h.b16 %v249
    %v1587 = vunpack.c.l.b16 %v250
    %v1588 = vunpack.c.h.b16 %v250
    %v1589 = vunpack.c.l.b16 %v251
    %v1590 = vunpack.c.h.b16 %v251
    %v1591 = vunpack.c.l.b16 %v252
    %v1592 = vunpack.c.h.b16 %v252
    %v1593 = vunpack.c.l.b16 %v253
    %v1594 = vunpack.c.h.b16 %v253
    %v1595 = vunpack.c.l.b16 %v254
    %v1596 = vunpack.c.h.b16 %v254
    %v1597 = vunpack.c.l.b16 %v255
    %v1598 = vunpack.c.h.b16 %v255
    %v1599 = vunpack.c.l.b16 %v256
    %v1600 = vunpack.c.h.b16 %v256
    %v1601 = vunpack.c.l.b16 %v257
    %v1602 = vunpack.c.h.b16 %v257
    %v1603 = vunpack.c.l.b16 %v258
    %v1604 = vunpack.c.h.b16 %v258
    %v1605 = vpack.c.b16 %v1353, %v1349
    %v1606 = vpack.c.b16 %v1354, %v1350
    %v1607 = vpack.c.b16 %v1355, %v1351
    %v1608 = vpack.c.b16 %v1356, %v1352
    %v1609 = vpack.c.b16 %v1361, %v1357
    %v1610 = vpack.c.b16 %v1362, %v1358
    %v1611 = vpack.c.b16 %v1363, %v1359
    %v1612 = vpack.c.b16 %v1364, %v1360
    %v1613 = vpack.c.b16 %v1369, %v1365
    %v1614 = vpack.c.b16 %v1370, %v1366
    %v1615 = vpack.c.b16 %v1371, %v1367
    %v1616 = vpack.c.b16 %v1372, %v1368
    %v1617 = vpack.c.b16 %v1377, %v1373
    %v1618 = vpack.c.b16 %v1378, %v1374
    %v1619 = vpack.c.b16 %v1379, %v1375
    %v1620 = vpack.c.b16 %v1380, %v1376
    %v1621 = vpack.c.b16 %v1385, %v1381
    %v1622 = vpack.c.b16 %v1386, %v1382
    %v1623 = vpack.c.b16 %v1387, %v1383
    %v1624 = vpack.c.b16 %v1388, %v1384
    %v1625 = vpack.c.b16 %v1393, %v1389
    %v1626 = vpack.c.b16 %v1394, %v1390
    %v1627 = vpack.c.b16 %v1395, %v1391
    %v1628 = vpack.c.b16 %v1396, %v1392
    %v1629 = vpack.c.b16 %v1401, %v1397
    %v1630 = vpack.c.b16 %v1402, %v1398
    %v1631 = vpack.c.b16 %v1403, %v1399
    %v1632 = vpack.c.b16 %v1404, %v1400
    %v1633 = vpack.c.b16 %v1409, %v1405
    %v1634 = vpack.c.b16 %v1410, %v1406
    %v1635 = vpack.c.b16 %v1411, %v1407
    %v1636 = vpack.c.b16 %v1412, %v1408
    %v1637 = vpack.c.b16 %v1417, %v1413
    %v1638 = vpack.c.b16 %v1418, %v1414
    %v1639 = vpack.c.b16 %v1419, %v1415
    %v1640 = vpack.c.b16 %v1420, %v1416
    %v1641 = vpack.c.b16 %v1425, %v1421
    %v1642 = vpack.c.b16 %v1426, %v1422
    %v1643 = vpack.c.b16 %v1427, %v1423
    %v1644 = vpack.c.b16 %v1428, %v1424
    %v1645 = vpack.c.b16 %v1433, %v1429
    %v1646 = vpack.c.b16 %v1434, %v1430
    %v1647 = vpack.c.b16 %v1435, %v1431
    %v1648 = vpack.c.b16 %v1436, %v1432
    %v1649 = vpack.c.b16 %v1441, %v1437
    %v1650 = vpack.c.b16 %v1442, %v1438
    %v1651 = vpack.c.b16 %v1443, %v1439
    %v1652 = vpack.c.b16 %v1444, %v1440
    %v1653 = vpack.c.b16 %v1449, %v1445
    %v1654 = vpack.c.b16 %v1450, %v1446
    %v1655 = vpack.c.b16 %v1451, %v1447
    %v1656 = vpack.c.b16 %v1452, %v1448
    %v1657 = vpack.c.b16 %v1457, %v1453
    %v1658 = vpack.c.b16 %v1458, %v1454
    %v1659 = vpack.c.b16 %v1459, %v1455
    %v1660 = vpack.c.b16 %v1460, %v1456
    %v1661 = vpack.c.b16 %v1465, %v1461
    %v1662 = vpack.c.b16 %v1466, %v1462
    %v1663 = vpack.c.b16 %v1467, %v1463
    %v1664 = vpack.c.b16 %v1468, %v1464
    %v1665 = vpack.c.b16 %v1473, %v1469
    %v1666 = vpack.c.b16 %v1474, %v1470
    %v1667 = vpack.c.b16 %v1475, %v1471
    %v1668 = vpack.c.b16 %v1476, %v1472
    %v1669 = vpack.c.b16 %v1481, %v1477
    %v1670 = vpack.c.b16 %v1482, %v1478
    %v1671 = vpack.c.b16 %v1483, %v1479
    %v1672 = vpack.c.b16 %v1484, %v1480
    %v1673 = vpack.c.b16 %v1489, %v1485
    %v1674 = vpack.c.b16 %v1490, %v1486
    %v1675 = vpack.c.b16 %v1491, %v1487
    %v1676 = vpack.c.b16 %v1492, %v1488
    %v1677 = vpack.c.b16 %v1497, %v1493
    %v1678 = vpack.c.b16 %v1498, %v1494
    %v1679 = vpack.c.b16 %v1499, %v1495
    %v1680 = vpack.c.b16 %v1500, %v1496
    %v1681 = vpack.c.b16 %v1505, %v1501
    %v1682 = vpack.c.b16 %v1506, %v1502
    %v1683 = vpack.c.b16 %v1507, %v1503
    %v1684 = vpack.c.b16 %v1508, %v1504
    %v1685 = vpack.c.b16 %v1513, %v1509
    %v1686 = vpack.c.b16 %v1514, %v1510
    %v1687 = vpack.c.b16 %v1515, %v1511
    %v1688 = vpack.c.b16 %v1516, %v1512
    %v1689 = vpack.c.b16 %v1521, %v1517
    %v1690 = vpack.c.b16 %v1522, %v1518
    %v1691 = vpack.c.b16 %v1523, %v1519
    %v1692 = vpack.c.b16 %v1524, %v1520
    %v1693 = vpack.c.b16 %v1529, %v1525
    %v1694 = vpack.c.b16 %v1530, %v1526
    %v1695 = vpack.c.b16 %v1531, %v1527
    %v1696 = vpack.c.b16 %v1532, %v1528
    %v1697 = vpack.c.b16 %v1537, %v1533
    %v1698 = vpack.c.b16 %v1538, %v1534
    %v1699 = vpack.c.b16 %v1539, %v1535
    %v1700 = vpack.c.b16 %v1540, %v1536
    %v1701 = vpack.c.b16 %v1545, %v1541
    %v1702 = vpack.c.b16 %v1546, %v1542
    %v1703 = vpack.c.b16 %v1547, %v1543
    %v1704 = vpack.c.b16 %v1548, %v1544
    %v1705 = vpack.c.b16 %v1553, %v1549
    %v1706 = vpack.c.b16 %v1554, %v1550
    %v1707 = vpack.c.b16 %v1555, %v1551
    %v1708 = vpack.c.b16 %v1556, %v1552
    %v1709 = vpack.c.b16 %v1561, %v1557
    %v1710 = vpack.c.b16 %v1562, %v1558
    %v1711 = vpack.c.b16 %v1563, %v1559
    %v1712 = vpack.c.b16 %v1564, %v1560
    %v1713 = vpack.c.b16 %v1569, %v1565
    %v1714 = vpack.c.b16 %v1570, %v1566
    %v1715 = vpack.c.b16 %v1571, %v1567
    %v1716 = vpack.c.b16 %v1572, %v1568
    %v1717 = vpack.c.b16 %v1577, %v1573
    %v1718 = vpack.c.b16 %v1578, %v1574
    %v1719 = vpack.c.b16 %v1579, %v1575
    %v1720 = vpack.c.b16 %v1580, %v1576
    %v1721 = vpack.c.b16 %v1585, %v1581
    %v1722 = vpack.c.b16 %v1586, %v1582
    %v1723 = vpack.c.b16 %v1587, %v1583
    %v1724 = vpack.c.b16 %v1588, %v1584
    %v1725 = vpack.c.b16 %v1593, %v1589
    %v1726 = vpack.c.b16 %v1594, %v1590
    %v1727 = vpack.c.b16 %v1595, %v1591
    %v1728 = vpack.c.b16 %v1596, %v1592
    %v1729 = vpack.c.b16 %v1601, %v1597
    %v1730 = vpack.c.b16 %v1602, %v1598
    %v1731 = vpack.c.b16 %v1603, %v1599
    %v1732 = vpack.c.b16 %v1604, %v1600
    %1861 = vmatprep.subr.bf16.mxu0 %v1606
    %1862 = vmatpush1.bf16.msra.mxu0 %v1605
    %1863 = vmatprep.subr.bf16.mxu0 %v1610
    %1864 = vmatpush1.bf16.msra.mxu0 %v1609
    %1865 = vmatprep.subr.bf16.mxu0 %v1614
    %1866 = vmatpush1.bf16.msra.mxu0 %v1613
    %1867 = vmatprep.subr.bf16.mxu0 %v1618
    %1868 = vmatpush1.bf16.msra.mxu0 %v1617
    %1869 = vmatprep.subr.bf16.mxu0 %v1622
    %1870 = vmatpush1.bf16.msra.mxu0 %v1621
    %1871 = vmatprep.subr.bf16.mxu0 %v1626
    %1872 = vmatpush1.bf16.msra.mxu0 %v1625
    %1873 = vmatprep.subr.bf16.mxu0 %v1630
    %1874 = vmatpush1.bf16.msra.mxu0 %v1629
    %1875 = vmatprep.subr.bf16.mxu0 %v1634
    %1876 = vmatpush1.bf16.msra.mxu0 %v1633
    %1877 = vmatprep.subr.bf16.mxu0 %v1638
    %1878 = vmatpush1.bf16.msra.mxu0 %v1637
    %1879 = vmatprep.subr.bf16.mxu0 %v1642
    %1880 = vmatpush1.bf16.msra.mxu0 %v1641
    %1881 = vmatprep.subr.bf16.mxu0 %v1646
    %1882 = vmatpush1.bf16.msra.mxu0 %v1645
    %1883 = vmatprep.subr.bf16.mxu0 %v1650
    %1884 = vmatpush1.bf16.msra.mxu0 %v1649
    %1885 = vmatprep.subr.bf16.mxu0 %v1654
    %1886 = vmatpush1.bf16.msra.mxu0 %v1653
    %1887 = vmatprep.subr.bf16.mxu0 %v1658
    %1888 = vmatpush1.bf16.msra.mxu0 %v1657
    %1889 = vmatprep.subr.bf16.mxu0 %v1662
    %1890 = vmatpush1.bf16.msra.mxu0 %v1661
    %1891 = vmatprep.subr.bf16.mxu0 %v1666
    %1892 = vmatpush1.bf16.msra.mxu0 %v1665
    %1893 = vmatprep.mubr.bf16.mxu0 %v1214
    %1894 = vmatmul.mubr.bf16.gmra.mrb[0].mxu0 %v1213
    %v1895 = vpop.f32.mrb[0].mxu0
    %v1896 = vadd.f32 %v1119, %v1895
    %v1897 = vpop.f32.mrb[0].mxu0
    %v1898 = vadd.f32 %v1121, %v1897
    %v1899 = vpop.f32.mrb[0].mxu0
    %v1900 = vpop.f32.mrb[0].mxu0
    %1901 = vdwg.mxu0
    %1902 = vmatprep.subr.bf16.mxu0 %v1670
    %1903 = vmatpush1.bf16.msra.mxu0 %v1669
    %1904 = vmatprep.subr.bf16.mxu0 %v1674
    %1905 = vmatpush1.bf16.msra.mxu0 %v1673
    %1906 = vmatprep.subr.bf16.mxu0 %v1678
    %1907 = vmatpush1.bf16.msra.mxu0 %v1677
    %1908 = vmatprep.subr.bf16.mxu0 %v1682
    %1909 = vmatpush1.bf16.msra.mxu0 %v1681
    %1910 = vmatprep.subr.bf16.mxu0 %v1686
    %1911 = vmatpush1.bf16.msra.mxu0 %v1685
    %1912 = vmatprep.subr.bf16.mxu0 %v1690
    %1913 = vmatpush1.bf16.msra.mxu0 %v1689
    %1914 = vmatprep.subr.bf16.mxu0 %v1694
    %1915 = vmatpush1.bf16.msra.mxu0 %v1693
    %1916 = vmatprep.subr.bf16.mxu0 %v1698
    %1917 = vmatpush1.bf16.msra.mxu0 %v1697
    %1918 = vmatprep.subr.bf16.mxu0 %v1702
    %1919 = vmatpush1.bf16.msra.mxu0 %v1701
    %1920 = vmatprep.subr.bf16.mxu0 %v1706
    %1921 = vmatpush1.bf16.msra.mxu0 %v1705
    %1922 = vmatprep.subr.bf16.mxu0 %v1710
    %1923 = vmatpush1.bf16.msra.mxu0 %v1709
    %1924 = vmatprep.subr.bf16.mxu0 %v1714
    %1925 = vmatpush1.bf16.msra.mxu0 %v1713
    %1926 = vmatprep.subr.bf16.mxu0 %v1718
    %1927 = vmatpush1.bf16.msra.mxu0 %v1717
    %1928 = vmatprep.subr.bf16.mxu0 %v1722
    %1929 = vmatpush1.bf16.msra.mxu0 %v1721
    %1930 = vmatprep.subr.bf16.mxu0 %v1726
    %1931 = vmatpush1.bf16.msra.mxu0 %v1725
    %1932 = vmatprep.subr.bf16.mxu0 %v1730
    %1933 = vmatpush1.bf16.msra.mxu0 %v1729
    %1934 = vmatprep.mubr.bf16.mxu0 %v1216
    %1935 = vmatmul.mubr.bf16.gmra.mrb[0].mxu0 %v1215
    %v1936 = vpop.f32.mrb[0].mxu0
    %v1937 = vadd.f32 %v1896, %v1936
    %v1938 = vpop.f32.mrb[0].mxu0
    %v1939 = vadd.f32 %v1898, %v1938
    %v1940 = vpop.f32.mrb[0].mxu0
    %v1941 = vpop.f32.mrb[0].mxu0
    %1942 = vdwg.mxu0
    %1943 = vmatprep.subr.bf16.mxu0 %v1608
    %1944 = vmatpush1.bf16.msra.mxu0 %v1607
    %1945 = vmatprep.subr.bf16.mxu0 %v1612
    %1946 = vmatpush1.bf16.msra.mxu0 %v1611
    %1947 = vmatprep.subr.bf16.mxu0 %v1616
    %1948 = vmatpush1.bf16.msra.mxu0 %v1615
    %1949 = vmatprep.subr.bf16.mxu0 %v1620
    %1950 = vmatpush1.bf16.msra.mxu0 %v1619
    %1951 = vmatprep.subr.bf16.mxu0 %v1624
    %1952 = vmatpush1.bf16.msra.mxu0 %v1623
    %1953 = vmatprep.subr.bf16.mxu0 %v1628
    %1954 = vmatpush1.bf16.msra.mxu0 %v1627
    %1955 = vmatprep.subr.bf16.mxu0 %v1632
    %1956 = vmatpush1.bf16.msra.mxu0 %v1631
    %1957 = vmatprep.subr.bf16.mxu0 %v1636
    %1958 = vmatpush1.bf16.msra.mxu0 %v1635
    %1959 = vmatprep.subr.bf16.mxu0 %v1640
    %1960 = vmatpush1.bf16.msra.mxu0 %v1639
    %1961 = vmatprep.subr.bf16.mxu0 %v1644
    %1962 = vmatpush1.bf16.msra.mxu0 %v1643
    %1963 = vmatprep.subr.bf16.mxu0 %v1648
    %1964 = vmatpush1.bf16.msra.mxu0 %v1647
    %1965 = vmatprep.subr.bf16.mxu0 %v1652
    %1966 = vmatpush1.bf16.msra.mxu0 %v1651
    %1967 = vmatprep.subr.bf16.mxu0 %v1656
    %1968 = vmatpush1.bf16.msra.mxu0 %v1655
    %1969 = vmatprep.subr.bf16.mxu0 %v1660
    %1970 = vmatpush1.bf16.msra.mxu0 %v1659
    %1971 = vmatprep.subr.bf16.mxu0 %v1664
    %1972 = vmatpush1.bf16.msra.mxu0 %v1663
    %1973 = vmatprep.subr.bf16.mxu0 %v1668
    %1974 = vmatpush1.bf16.msra.mxu0 %v1667
    %1975 = vmatprep.mubr.bf16.mxu0 %v1214
    %1976 = vmatmul.mubr.bf16.gmra.mrb[0].mxu0 %v1213
    %v1977 = vpop.f32.mrb[0].mxu0
    %v1978 = vadd.f32 %v1201, %v1977
    %v1979 = vpop.f32.mrb[0].mxu0
    %v1980 = vadd.f32 %v1203, %v1979
    %v1981 = vpop.f32.mrb[0].mxu0
    %v1982 = vpop.f32.mrb[0].mxu0
    %1983 = vdwg.mxu0
    %1984 = vmatprep.subr.bf16.mxu0 %v1672
    %1985 = vmatpush1.bf16.msra.mxu0 %v1671
    %1986 = vmatprep.subr.bf16.mxu0 %v1676
    %1987 = vmatpush1.bf16.msra.mxu0 %v1675
    %1988 = vmatprep.subr.bf16.mxu0 %v1680
    %1989 = vmatpush1.bf16.msra.mxu0 %v1679
    %1990 = vmatprep.subr.bf16.mxu0 %v1684
    %1991 = vmatpush1.bf16.msra.mxu0 %v1683
    %1992 = vmatprep.subr.bf16.mxu0 %v1688
    %1993 = vmatpush1.bf16.msra.mxu0 %v1687
    %1994 = vmatprep.subr.bf16.mxu0 %v1692
    %1995 = vmatpush1.bf16.msra.mxu0 %v1691
    %1996 = vmatprep.subr.bf16.mxu0 %v1696
    %1997 = vmatpush1.bf16.msra.mxu0 %v1695
    %1998 = vmatprep.subr.bf16.mxu0 %v1700
    %1999 = vmatpush1.bf16.msra.mxu0 %v1699
    %2000 = vmatprep.subr.bf16.mxu0 %v1704
    %2001 = vmatpush1.bf16.msra.mxu0 %v1703
    %2002 = vmatprep.subr.bf16.mxu0 %v1708
    %2003 = vmatpush1.bf16.msra.mxu0 %v1707
    %2004 = vmatprep.subr.bf16.mxu0 %v1712
    %2005 = vmatpush1.bf16.msra.mxu0 %v1711
    %2006 = vmatprep.subr.bf16.mxu0 %v1716
    %2007 = vmatpush1.bf16.msra.mxu0 %v1715
    %2008 = vmatprep.subr.bf16.mxu0 %v1720
    %2009 = vmatpush1.bf16.msra.mxu0 %v1719
    %2010 = vmatprep.subr.bf16.mxu0 %v1724
    %2011 = vmatpush1.bf16.msra.mxu0 %v1723
    %2012 = vmatprep.subr.bf16.mxu0 %v1728
    %2013 = vmatpush1.bf16.msra.mxu0 %v1727
    %2014 = vmatprep.subr.bf16.mxu0 %v1732
    %2015 = vmatpush1.bf16.msra.mxu0 %v1731
    %2016 = vmatprep.mubr.bf16.mxu0 %v1216
    %2017 = vmatmul.mubr.bf16.gmra.mrb[0].mxu0 %v1215
    %v2018 = vpop.f32.mrb[0].mxu0
    %v2019 = vadd.f32 %v1978, %v2018
    %v2020 = vpop.f32.mrb[0].mxu0
    %v2021 = vadd.f32 %v1980, %v2020
    %v2022 = vpop.f32.mrb[0].mxu0
    %v2023 = vpop.f32.mrb[0].mxu0
    %2024 = vdwg.mxu0
    %v2025 = vld [vmem:[#allocation7] sm:$0xff]
    %v2026 = vld [vmem:[#allocation7 + $0x8] sm:$0xff]
    %v2027 = vld [vmem:[#allocation11] sm:$0xff]
    %v2028 = vld [vmem:[#allocation11 + $0x8] sm:$0xff]
    %v2029 = vld [vmem:[#allocation11 + $0x10] sm:$0xff]
    %v2030 = vld [vmem:[#allocation11 + $0x18] sm:$0xff]
    %v2031 = vld [vmem:[#allocation11 + $0x20] sm:$0xff]
    %v2032 = vld [vmem:[#allocation11 + $0x28] sm:$0xff]
    %v2033 = vld [vmem:[#allocation11 + $0x30] sm:$0xff]
    %v2034 = vld [vmem:[#allocation11 + $0x38] sm:$0xff]
    %v2035 = vld [vmem:[#allocation11 + $0x40] sm:$0xff]
    %v2036 = vld [vmem:[#allocation11 + $0x48] sm:$0xff]
    %v2037 = vld [vmem:[#allocation11 + $0x50] sm:$0xff]
    %v2038 = vld [vmem:[#allocation11 + $0x58] sm:$0xff]
    %v2039 = vld [vmem:[#allocation11 + $0x60] sm:$0xff]
    %v2040 = vld [vmem:[#allocation11 + $0x68] sm:$0xff]
    %v2041 = vld [vmem:[#allocation11 + $0x70] sm:$0xff]
    %v2042 = vld [vmem:[#allocation11 + $0x78] sm:$0xff]
    %v2043 = vld [vmem:[#allocation11 + $0x80] sm:$0xff]
    %v2044 = vld [vmem:[#allocation11 + $0x88] sm:$0xff]
    %v2045 = vld [vmem:[#allocation11 + $0x90] sm:$0xff]
    %v2046 = vld [vmem:[#allocation11 + $0x98] sm:$0xff]
    %v2047 = vld [vmem:[#allocation11 + $0xa0] sm:$0xff]
    %v2048 = vld [vmem:[#allocation11 + $0xa8] sm:$0xff]
    %v2049 = vld [vmem:[#allocation11 + $0xb0] sm:$0xff]
    %v2050 = vld [vmem:[#allocation11 + $0xb8] sm:$0xff]
    %v2051 = vld [vmem:[#allocation11 + $0xc0] sm:$0xff]
    %v2052 = vld [vmem:[#allocation11 + $0xc8] sm:$0xff]
    %v2053 = vld [vmem:[#allocation11 + $0xd0] sm:$0xff]
    %v2054 = vld [vmem:[#allocation11 + $0xd8] sm:$0xff]
    %v2055 = vld [vmem:[#allocation11 + $0xe0] sm:$0xff]
    %v2056 = vld [vmem:[#allocation11 + $0xe8] sm:$0xff]
    %v2057 = vld [vmem:[#allocation11 + $0xf0] sm:$0xff]
    %v2058 = vld [vmem:[#allocation11 + $0xf8] sm:$0xff]
    %v2059 = vld [vmem:[#allocation11 + $0x100] sm:$0xff]
    %v2060 = vld [vmem:[#allocation11 + $0x108] sm:$0xff]
    %v2061 = vld [vmem:[#allocation11 + $0x110] sm:$0xff]
    %v2062 = vld [vmem:[#allocation11 + $0x118] sm:$0xff]
    %v2063 = vld [vmem:[#allocation11 + $0x120] sm:$0xff]
    %v2064 = vld [vmem:[#allocation11 + $0x128] sm:$0xff]
    %v2065 = vld [vmem:[#allocation11 + $0x130] sm:$0xff]
    %v2066 = vld [vmem:[#allocation11 + $0x138] sm:$0xff]
    %v2067 = vld [vmem:[#allocation11 + $0x140] sm:$0xff]
    %v2068 = vld [vmem:[#allocation11 + $0x148] sm:$0xff]
    %v2069 = vld [vmem:[#allocation11 + $0x150] sm:$0xff]
    %v2070 = vld [vmem:[#allocation11 + $0x158] sm:$0xff]
    %v2071 = vld [vmem:[#allocation11 + $0x160] sm:$0xff]
    %v2072 = vld [vmem:[#allocation11 + $0x168] sm:$0xff]
    %v2073 = vld [vmem:[#allocation11 + $0x170] sm:$0xff]
    %v2074 = vld [vmem:[#allocation11 + $0x178] sm:$0xff]
    %v2075 = vld [vmem:[#allocation11 + $0x180] sm:$0xff]
    %v2076 = vld [vmem:[#allocation11 + $0x188] sm:$0xff]
    %v2077 = vld [vmem:[#allocation11 + $0x190] sm:$0xff]
    %v2078 = vld [vmem:[#allocation11 + $0x198] sm:$0xff]
    %v2079 = vld [vmem:[#allocation11 + $0x1a0] sm:$0xff]
    %v2080 = vld [vmem:[#allocation11 + $0x1a8] sm:$0xff]
    %v2081 = vld [vmem:[#allocation11 + $0x1b0] sm:$0xff]
    %v2082 = vld [vmem:[#allocation11 + $0x1b8] sm:$0xff]
    %v2083 = vld [vmem:[#allocation11 + $0x1c0] sm:$0xff]
    %v2084 = vld [vmem:[#allocation11 + $0x1c8] sm:$0xff]
    %v2085 = vld [vmem:[#allocation11 + $0x1d0] sm:$0xff]
    %v2086 = vld [vmem:[#allocation11 + $0x1d8] sm:$0xff]
    %v2087 = vld [vmem:[#allocation11 + $0x1e0] sm:$0xff]
    %v2088 = vld [vmem:[#allocation11 + $0x1e8] sm:$0xff]
    %v2089 = vld [vmem:[#allocation11 + $0x1f0] sm:$0xff]
    %v2090 = vld [vmem:[#allocation11 + $0x1f8] sm:$0xff]
    %v2091 = vld [vmem:[#allocation11 + $0x200] sm:$0xff]
    %v2092 = vld [vmem:[#allocation11 + $0x208] sm:$0xff]
    %v2093 = vld [vmem:[#allocation11 + $0x210] sm:$0xff]
    %v2094 = vld [vmem:[#allocation11 + $0x218] sm:$0xff]
    %v2095 = vld [vmem:[#allocation11 + $0x220] sm:$0xff]
    %v2096 = vld [vmem:[#allocation11 + $0x228] sm:$0xff]
    %v2097 = vld [vmem:[#allocation11 + $0x230] sm:$0xff]
    %v2098 = vld [vmem:[#allocation11 + $0x238] sm:$0xff]
    %v2099 = vld [vmem:[#allocation11 + $0x240] sm:$0xff]
    %v2100 = vld [vmem:[#allocation11 + $0x248] sm:$0xff]
    %v2101 = vld [vmem:[#allocation11 + $0x250] sm:$0xff]
    %v2102 = vld [vmem:[#allocation11 + $0x258] sm:$0xff]
    %v2103 = vld [vmem:[#allocation11 + $0x260] sm:$0xff]
    %v2104 = vld [vmem:[#allocation11 + $0x268] sm:$0xff]
    %v2105 = vld [vmem:[#allocation11 + $0x270] sm:$0xff]
    %v2106 = vld [vmem:[#allocation11 + $0x278] sm:$0xff]
    %v2107 = vld [vmem:[#allocation11 + $0x280] sm:$0xff]
    %v2108 = vld [vmem:[#allocation11 + $0x288] sm:$0xff]
    %v2109 = vld [vmem:[#allocation11 + $0x290] sm:$0xff]
    %v2110 = vld [vmem:[#allocation11 + $0x298] sm:$0xff]
    %v2111 = vld [vmem:[#allocation11 + $0x2a0] sm:$0xff]
    %v2112 = vld [vmem:[#allocation11 + $0x2a8] sm:$0xff]
    %v2113 = vld [vmem:[#allocation11 + $0x2b0] sm:$0xff]
    %v2114 = vld [vmem:[#allocation11 + $0x2b8] sm:$0xff]
    %v2115 = vld [vmem:[#allocation11 + $0x2c0] sm:$0xff]
    %v2116 = vld [vmem:[#allocation11 + $0x2c8] sm:$0xff]
    %v2117 = vld [vmem:[#allocation11 + $0x2d0] sm:$0xff]
    %v2118 = vld [vmem:[#allocation11 + $0x2d8] sm:$0xff]
    %v2119 = vld [vmem:[#allocation11 + $0x2e0] sm:$0xff]
    %v2120 = vld [vmem:[#allocation11 + $0x2e8] sm:$0xff]
    %v2121 = vld [vmem:[#allocation11 + $0x2f0] sm:$0xff]
    %v2122 = vld [vmem:[#allocation11 + $0x2f8] sm:$0xff]
    %v2123 = vld [vmem:[#allocation11 + $0x300] sm:$0xff]
    %v2124 = vld [vmem:[#allocation11 + $0x308] sm:$0xff]
    %v2125 = vld [vmem:[#allocation11 + $0x310] sm:$0xff]
    %v2126 = vld [vmem:[#allocation11 + $0x318] sm:$0xff]
    %v2127 = vld [vmem:[#allocation11 + $0x320] sm:$0xff]
    %v2128 = vld [vmem:[#allocation11 + $0x328] sm:$0xff]
    %v2129 = vld [vmem:[#allocation11 + $0x330] sm:$0xff]
    %v2130 = vld [vmem:[#allocation11 + $0x338] sm:$0xff]
    %v2131 = vld [vmem:[#allocation11 + $0x340] sm:$0xff]
    %v2132 = vld [vmem:[#allocation11 + $0x348] sm:$0xff]
    %v2133 = vld [vmem:[#allocation11 + $0x350] sm:$0xff]
    %v2134 = vld [vmem:[#allocation11 + $0x358] sm:$0xff]
    %v2135 = vld [vmem:[#allocation11 + $0x360] sm:$0xff]
    %v2136 = vld [vmem:[#allocation11 + $0x368] sm:$0xff]
    %v2137 = vld [vmem:[#allocation11 + $0x370] sm:$0xff]
    %v2138 = vld [vmem:[#allocation11 + $0x378] sm:$0xff]
    %v2139 = vld [vmem:[#allocation11 + $0x380] sm:$0xff]
    %v2140 = vld [vmem:[#allocation11 + $0x388] sm:$0xff]
    %v2141 = vld [vmem:[#allocation11 + $0x390] sm:$0xff]
    %v2142 = vld [vmem:[#allocation11 + $0x398] sm:$0xff]
    %v2143 = vld [vmem:[#allocation11 + $0x3a0] sm:$0xff]
    %v2144 = vld [vmem:[#allocation11 + $0x3a8] sm:$0xff]
    %v2145 = vld [vmem:[#allocation11 + $0x3b0] sm:$0xff]
    %v2146 = vld [vmem:[#allocation11 + $0x3b8] sm:$0xff]
    %v2147 = vld [vmem:[#allocation11 + $0x3c0] sm:$0xff]
    %v2148 = vld [vmem:[#allocation11 + $0x3c8] sm:$0xff]
    %v2149 = vld [vmem:[#allocation11 + $0x3d0] sm:$0xff]
    %v2150 = vld [vmem:[#allocation11 + $0x3d8] sm:$0xff]
    %v2151 = vld [vmem:[#allocation11 + $0x3e0] sm:$0xff]
    %v2152 = vld [vmem:[#allocation11 + $0x3e8] sm:$0xff]
    %v2153 = vld [vmem:[#allocation11 + $0x3f0] sm:$0xff]
    %v2154 = vld [vmem:[#allocation11 + $0x3f8] sm:$0xff]
    %v2157 = vunpack.c.l.b16 %v2025
    %v2158 = vunpack.c.h.b16 %v2025
    %v2159 = vunpack.c.l.b16 %v2026
    %v2160 = vunpack.c.h.b16 %v2026
    %v2161 = vpack.c.b16 %v2157, %v2157
    %v2162 = vpack.c.b16 %v2158, %v2158
    %v2163 = vpack.c.b16 %v2159, %v2159
    %v2164 = vpack.c.b16 %v2160, %v2160
    %v2297 = vunpack.c.l.b16 %v2027
    %v2298 = vunpack.c.h.b16 %v2027
    %v2299 = vunpack.c.l.b16 %v2028
    %v2300 = vunpack.c.h.b16 %v2028
    %v2301 = vunpack.c.l.b16 %v2029
    %v2302 = vunpack.c.h.b16 %v2029
    %v2303 = vunpack.c.l.b16 %v2030
    %v2304 = vunpack.c.h.b16 %v2030
    %v2305 = vunpack.c.l.b16 %v2031
    %v2306 = vunpack.c.h.b16 %v2031
    %v2307 = vunpack.c.l.b16 %v2032
    %v2308 = vunpack.c.h.b16 %v2032
    %v2309 = vunpack.c.l.b16 %v2033
    %v2310 = vunpack.c.h.b16 %v2033
    %v2311 = vunpack.c.l.b16 %v2034
    %v2312 = vunpack.c.h.b16 %v2034
    %v2313 = vunpack.c.l.b16 %v2035
    %v2314 = vunpack.c.h.b16 %v2035
    %v2315 = vunpack.c.l.b16 %v2036
    %v2316 = vunpack.c.h.b16 %v2036
    %v2317 = vunpack.c.l.b16 %v2037
    %v2318 = vunpack.c.h.b16 %v2037
    %v2319 = vunpack.c.l.b16 %v2038
    %v2320 = vunpack.c.h.b16 %v2038
    %v2321 = vunpack.c.l.b16 %v2039
    %v2322 = vunpack.c.h.b16 %v2039
    %v2323 = vunpack.c.l.b16 %v2040
    %v2324 = vunpack.c.h.b16 %v2040
    %v2325 = vunpack.c.l.b16 %v2041
    %v2326 = vunpack.c.h.b16 %v2041
    %v2327 = vunpack.c.l.b16 %v2042
    %v2328 = vunpack.c.h.b16 %v2042
    %v2329 = vunpack.c.l.b16 %v2043
    %v2330 = vunpack.c.h.b16 %v2043
    %v2331 = vunpack.c.l.b16 %v2044
    %v2332 = vunpack.c.h.b16 %v2044
    %v2333 = vunpack.c.l.b16 %v2045
    %v2334 = vunpack.c.h.b16 %v2045
    %v2335 = vunpack.c.l.b16 %v2046
    %v2336 = vunpack.c.h.b16 %v2046
    %v2337 = vunpack.c.l.b16 %v2047
    %v2338 = vunpack.c.h.b16 %v2047
    %v2339 = vunpack.c.l.b16 %v2048
    %v2340 = vunpack.c.h.b16 %v2048
    %v2341 = vunpack.c.l.b16 %v2049
    %v2342 = vunpack.c.h.b16 %v2049
    %v2343 = vunpack.c.l.b16 %v2050
    %v2344 = vunpack.c.h.b16 %v2050
    %v2345 = vunpack.c.l.b16 %v2051
    %v2346 = vunpack.c.h.b16 %v2051
    %v2347 = vunpack.c.l.b16 %v2052
    %v2348 = vunpack.c.h.b16 %v2052
    %v2349 = vunpack.c.l.b16 %v2053
    %v2350 = vunpack.c.h.b16 %v2053
    %v2351 = vunpack.c.l.b16 %v2054
    %v2352 = vunpack.c.h.b16 %v2054
    %v2353 = vunpack.c.l.b16 %v2055
    %v2354 = vunpack.c.h.b16 %v2055
    %v2355 = vunpack.c.l.b16 %v2056
    %v2356 = vunpack.c.h.b16 %v2056
    %v2357 = vunpack.c.l.b16 %v2057
    %v2358 = vunpack.c.h.b16 %v2057
    %v2359 = vunpack.c.l.b16 %v2058
    %v2360 = vunpack.c.h.b16 %v2058
    %v2361 = vunpack.c.l.b16 %v2059
    %v2362 = vunpack.c.h.b16 %v2059
    %v2363 = vunpack.c.l.b16 %v2060
    %v2364 = vunpack.c.h.b16 %v2060
    %v2365 = vunpack.c.l.b16 %v2061
    %v2366 = vunpack.c.h.b16 %v2061
    %v2367 = vunpack.c.l.b16 %v2062
    %v2368 = vunpack.c.h.b16 %v2062
    %v2369 = vunpack.c.l.b16 %v2063
    %v2370 = vunpack.c.h.b16 %v2063
    %v2371 = vunpack.c.l.b16 %v2064
    %v2372 = vunpack.c.h.b16 %v2064
    %v2373 = vunpack.c.l.b16 %v2065
    %v2374 = vunpack.c.h.b16 %v2065
    %v2375 = vunpack.c.l.b16 %v2066
    %v2376 = vunpack.c.h.b16 %v2066
    %v2377 = vunpack.c.l.b16 %v2067
    %v2378 = vunpack.c.h.b16 %v2067
    %v2379 = vunpack.c.l.b16 %v2068
    %v2380 = vunpack.c.h.b16 %v2068
    %v2381 = vunpack.c.l.b16 %v2069
    %v2382 = vunpack.c.h.b16 %v2069
    %v2383 = vunpack.c.l.b16 %v2070
    %v2384 = vunpack.c.h.b16 %v2070
    %v2385 = vunpack.c.l.b16 %v2071
    %v2386 = vunpack.c.h.b16 %v2071
    %v2387 = vunpack.c.l.b16 %v2072
    %v2388 = vunpack.c.h.b16 %v2072
    %v2389 = vunpack.c.l.b16 %v2073
    %v2390 = vunpack.c.h.b16 %v2073
    %v2391 = vunpack.c.l.b16 %v2074
    %v2392 = vunpack.c.h.b16 %v2074
    %v2393 = vunpack.c.l.b16 %v2075
    %v2394 = vunpack.c.h.b16 %v2075
    %v2395 = vunpack.c.l.b16 %v2076
    %v2396 = vunpack.c.h.b16 %v2076
    %v2397 = vunpack.c.l.b16 %v2077
    %v2398 = vunpack.c.h.b16 %v2077
    %v2399 = vunpack.c.l.b16 %v2078
    %v2400 = vunpack.c.h.b16 %v2078
    %v2401 = vunpack.c.l.b16 %v2079
    %v2402 = vunpack.c.h.b16 %v2079
    %v2403 = vunpack.c.l.b16 %v2080
    %v2404 = vunpack.c.h.b16 %v2080
    %v2405 = vunpack.c.l.b16 %v2081
    %v2406 = vunpack.c.h.b16 %v2081
    %v2407 = vunpack.c.l.b16 %v2082
    %v2408 = vunpack.c.h.b16 %v2082
    %v2409 = vunpack.c.l.b16 %v2083
    %v2410 = vunpack.c.h.b16 %v2083
    %v2411 = vunpack.c.l.b16 %v2084
    %v2412 = vunpack.c.h.b16 %v2084
    %v2413 = vunpack.c.l.b16 %v2085
    %v2414 = vunpack.c.h.b16 %v2085
    %v2415 = vunpack.c.l.b16 %v2086
    %v2416 = vunpack.c.h.b16 %v2086
    %v2417 = vunpack.c.l.b16 %v2087
    %v2418 = vunpack.c.h.b16 %v2087
    %v2419 = vunpack.c.l.b16 %v2088
    %v2420 = vunpack.c.h.b16 %v2088
    %v2421 = vunpack.c.l.b16 %v2089
    %v2422 = vunpack.c.h.b16 %v2089
    %v2423 = vunpack.c.l.b16 %v2090
    %v2424 = vunpack.c.h.b16 %v2090
    %v2425 = vunpack.c.l.b16 %v2091
    %v2426 = vunpack.c.h.b16 %v2091
    %v2427 = vunpack.c.l.b16 %v2092
    %v2428 = vunpack.c.h.b16 %v2092
    %v2429 = vunpack.c.l.b16 %v2093
    %v2430 = vunpack.c.h.b16 %v2093
    %v2431 = vunpack.c.l.b16 %v2094
    %v2432 = vunpack.c.h.b16 %v2094
    %v2433 = vunpack.c.l.b16 %v2095
    %v2434 = vunpack.c.h.b16 %v2095
    %v2435 = vunpack.c.l.b16 %v2096
    %v2436 = vunpack.c.h.b16 %v2096
    %v2437 = vunpack.c.l.b16 %v2097
    %v2438 = vunpack.c.h.b16 %v2097
    %v2439 = vunpack.c.l.b16 %v2098
    %v2440 = vunpack.c.h.b16 %v2098
    %v2441 = vunpack.c.l.b16 %v2099
    %v2442 = vunpack.c.h.b16 %v2099
    %v2443 = vunpack.c.l.b16 %v2100
    %v2444 = vunpack.c.h.b16 %v2100
    %v2445 = vunpack.c.l.b16 %v2101
    %v2446 = vunpack.c.h.b16 %v2101
    %v2447 = vunpack.c.l.b16 %v2102
    %v2448 = vunpack.c.h.b16 %v2102
    %v2449 = vunpack.c.l.b16 %v2103
    %v2450 = vunpack.c.h.b16 %v2103
    %v2451 = vunpack.c.l.b16 %v2104
    %v2452 = vunpack.c.h.b16 %v2104
    %v2453 = vunpack.c.l.b16 %v2105
    %v2454 = vunpack.c.h.b16 %v2105
    %v2455 = vunpack.c.l.b16 %v2106
    %v2456 = vunpack.c.h.b16 %v2106
    %v2457 = vunpack.c.l.b16 %v2107
    %v2458 = vunpack.c.h.b16 %v2107
    %v2459 = vunpack.c.l.b16 %v2108
    %v2460 = vunpack.c.h.b16 %v2108
    %v2461 = vunpack.c.l.b16 %v2109
    %v2462 = vunpack.c.h.b16 %v2109
    %v2463 = vunpack.c.l.b16 %v2110
    %v2464 = vunpack.c.h.b16 %v2110
    %v2465 = vunpack.c.l.b16 %v2111
    %v2466 = vunpack.c.h.b16 %v2111
    %v2467 = vunpack.c.l.b16 %v2112
    %v2468 = vunpack.c.h.b16 %v2112
    %v2469 = vunpack.c.l.b16 %v2113
    %v2470 = vunpack.c.h.b16 %v2113
    %v2471 = vunpack.c.l.b16 %v2114
    %v2472 = vunpack.c.h.b16 %v2114
    %v2473 = vunpack.c.l.b16 %v2115
    %v2474 = vunpack.c.h.b16 %v2115
    %v2475 = vunpack.c.l.b16 %v2116
    %v2476 = vunpack.c.h.b16 %v2116
    %v2477 = vunpack.c.l.b16 %v2117
    %v2478 = vunpack.c.h.b16 %v2117
    %v2479 = vunpack.c.l.b16 %v2118
    %v2480 = vunpack.c.h.b16 %v2118
    %v2481 = vunpack.c.l.b16 %v2119
    %v2482 = vunpack.c.h.b16 %v2119
    %v2483 = vunpack.c.l.b16 %v2120
    %v2484 = vunpack.c.h.b16 %v2120
    %v2485 = vunpack.c.l.b16 %v2121
    %v2486 = vunpack.c.h.b16 %v2121
    %v2487 = vunpack.c.l.b16 %v2122
    %v2488 = vunpack.c.h.b16 %v2122
    %v2489 = vunpack.c.l.b16 %v2123
    %v2490 = vunpack.c.h.b16 %v2123
    %v2491 = vunpack.c.l.b16 %v2124
    %v2492 = vunpack.c.h.b16 %v2124
    %v2493 = vunpack.c.l.b16 %v2125
    %v2494 = vunpack.c.h.b16 %v2125
    %v2495 = vunpack.c.l.b16 %v2126
    %v2496 = vunpack.c.h.b16 %v2126
    %v2497 = vunpack.c.l.b16 %v2127
    %v2498 = vunpack.c.h.b16 %v2127
    %v2499 = vunpack.c.l.b16 %v2128
    %v2500 = vunpack.c.h.b16 %v2128
    %v2501 = vunpack.c.l.b16 %v2129
    %v2502 = vunpack.c.h.b16 %v2129
    %v2503 = vunpack.c.l.b16 %v2130
    %v2504 = vunpack.c.h.b16 %v2130
    %v2505 = vunpack.c.l.b16 %v2131
    %v2506 = vunpack.c.h.b16 %v2131
    %v2507 = vunpack.c.l.b16 %v2132
    %v2508 = vunpack.c.h.b16 %v2132
    %v2509 = vunpack.c.l.b16 %v2133
    %v2510 = vunpack.c.h.b16 %v2133
    %v2511 = vunpack.c.l.b16 %v2134
    %v2512 = vunpack.c.h.b16 %v2134
    %v2513 = vunpack.c.l.b16 %v2135
    %v2514 = vunpack.c.h.b16 %v2135
    %v2515 = vunpack.c.l.b16 %v2136
    %v2516 = vunpack.c.h.b16 %v2136
    %v2517 = vunpack.c.l.b16 %v2137
    %v2518 = vunpack.c.h.b16 %v2137
    %v2519 = vunpack.c.l.b16 %v2138
    %v2520 = vunpack.c.h.b16 %v2138
    %v2521 = vunpack.c.l.b16 %v2139
    %v2522 = vunpack.c.h.b16 %v2139
    %v2523 = vunpack.c.l.b16 %v2140
    %v2524 = vunpack.c.h.b16 %v2140
    %v2525 = vunpack.c.l.b16 %v2141
    %v2526 = vunpack.c.h.b16 %v2141
    %v2527 = vunpack.c.l.b16 %v2142
    %v2528 = vunpack.c.h.b16 %v2142
    %v2529 = vunpack.c.l.b16 %v2143
    %v2530 = vunpack.c.h.b16 %v2143
    %v2531 = vunpack.c.l.b16 %v2144
    %v2532 = vunpack.c.h.b16 %v2144
    %v2533 = vunpack.c.l.b16 %v2145
    %v2534 = vunpack.c.h.b16 %v2145
    %v2535 = vunpack.c.l.b16 %v2146
    %v2536 = vunpack.c.h.b16 %v2146
    %v2537 = vunpack.c.l.b16 %v2147
    %v2538 = vunpack.c.h.b16 %v2147
    %v2539 = vunpack.c.l.b16 %v2148
    %v2540 = vunpack.c.h.b16 %v2148
    %v2541 = vunpack.c.l.b16 %v2149
    %v2542 = vunpack.c.h.b16 %v2149
    %v2543 = vunpack.c.l.b16 %v2150
    %v2544 = vunpack.c.h.b16 %v2150
    %v2545 = vunpack.c.l.b16 %v2151
    %v2546 = vunpack.c.h.b16 %v2151
    %v2547 = vunpack.c.l.b16 %v2152
    %v2548 = vunpack.c.h.b16 %v2152
    %v2549 = vunpack.c.l.b16 %v2153
    %v2550 = vunpack.c.h.b16 %v2153
    %v2551 = vunpack.c.l.b16 %v2154
    %v2552 = vunpack.c.h.b16 %v2154
    %v2553 = vpack.c.b16 %v2301, %v2297
    %v2554 = vpack.c.b16 %v2302, %v2298
    %v2555 = vpack.c.b16 %v2303, %v2299
    %v2556 = vpack.c.b16 %v2304, %v2300
    %v2557 = vpack.c.b16 %v2309, %v2305
    %v2558 = vpack.c.b16 %v2310, %v2306
    %v2559 = vpack.c.b16 %v2311, %v2307
    %v2560 = vpack.c.b16 %v2312, %v2308
    %v2561 = vpack.c.b16 %v2317, %v2313
    %v2562 = vpack.c.b16 %v2318, %v2314
    %v2563 = vpack.c.b16 %v2319, %v2315
    %v2564 = vpack.c.b16 %v2320, %v2316
    %v2565 = vpack.c.b16 %v2325, %v2321
    %v2566 = vpack.c.b16 %v2326, %v2322
    %v2567 = vpack.c.b16 %v2327, %v2323
    %v2568 = vpack.c.b16 %v2328, %v2324
    %v2569 = vpack.c.b16 %v2333, %v2329
    %v2570 = vpack.c.b16 %v2334, %v2330
    %v2571 = vpack.c.b16 %v2335, %v2331
    %v2572 = vpack.c.b16 %v2336, %v2332
    %v2573 = vpack.c.b16 %v2341, %v2337
    %v2574 = vpack.c.b16 %v2342, %v2338
    %v2575 = vpack.c.b16 %v2343, %v2339
    %v2576 = vpack.c.b16 %v2344, %v2340
    %v2577 = vpack.c.b16 %v2349, %v2345
    %v2578 = vpack.c.b16 %v2350, %v2346
    %v2579 = vpack.c.b16 %v2351, %v2347
    %v2580 = vpack.c.b16 %v2352, %v2348
    %v2581 = vpack.c.b16 %v2357, %v2353
    %v2582 = vpack.c.b16 %v2358, %v2354
    %v2583 = vpack.c.b16 %v2359, %v2355
    %v2584 = vpack.c.b16 %v2360, %v2356
    %v2585 = vpack.c.b16 %v2365, %v2361
    %v2586 = vpack.c.b16 %v2366, %v2362
    %v2587 = vpack.c.b16 %v2367, %v2363
    %v2588 = vpack.c.b16 %v2368, %v2364
    %v2589 = vpack.c.b16 %v2373, %v2369
    %v2590 = vpack.c.b16 %v2374, %v2370
    %v2591 = vpack.c.b16 %v2375, %v2371
    %v2592 = vpack.c.b16 %v2376, %v2372
    %v2593 = vpack.c.b16 %v2381, %v2377
    %v2594 = vpack.c.b16 %v2382, %v2378
    %v2595 = vpack.c.b16 %v2383, %v2379
    %v2596 = vpack.c.b16 %v2384, %v2380
    %v2597 = vpack.c.b16 %v2389, %v2385
    %v2598 = vpack.c.b16 %v2390, %v2386
    %v2599 = vpack.c.b16 %v2391, %v2387
    %v2600 = vpack.c.b16 %v2392, %v2388
    %v2601 = vpack.c.b16 %v2397, %v2393
    %v2602 = vpack.c.b16 %v2398, %v2394
    %v2603 = vpack.c.b16 %v2399, %v2395
    %v2604 = vpack.c.b16 %v2400, %v2396
    %v2605 = vpack.c.b16 %v2405, %v2401
    %v2606 = vpack.c.b16 %v2406, %v2402
    %v2607 = vpack.c.b16 %v2407, %v2403
    %v2608 = vpack.c.b16 %v2408, %v2404
    %v2609 = vpack.c.b16 %v2413, %v2409
    %v2610 = vpack.c.b16 %v2414, %v2410
    %v2611 = vpack.c.b16 %v2415, %v2411
    %v2612 = vpack.c.b16 %v2416, %v2412
    %v2613 = vpack.c.b16 %v2421, %v2417
    %v2614 = vpack.c.b16 %v2422, %v2418
    %v2615 = vpack.c.b16 %v2423, %v2419
    %v2616 = vpack.c.b16 %v2424, %v2420
    %v2617 = vpack.c.b16 %v2429, %v2425
    %v2618 = vpack.c.b16 %v2430, %v2426
    %v2619 = vpack.c.b16 %v2431, %v2427
    %v2620 = vpack.c.b16 %v2432, %v2428
    %v2621 = vpack.c.b16 %v2437, %v2433
    %v2622 = vpack.c.b16 %v2438, %v2434
    %v2623 = vpack.c.b16 %v2439, %v2435
    %v2624 = vpack.c.b16 %v2440, %v2436
    %v2625 = vpack.c.b16 %v2445, %v2441
    %v2626 = vpack.c.b16 %v2446, %v2442
    %v2627 = vpack.c.b16 %v2447, %v2443
    %v2628 = vpack.c.b16 %v2448, %v2444
    %v2629 = vpack.c.b16 %v2453, %v2449
    %v2630 = vpack.c.b16 %v2454, %v2450
    %v2631 = vpack.c.b16 %v2455, %v2451
    %v2632 = vpack.c.b16 %v2456, %v2452
    %v2633 = vpack.c.b16 %v2461, %v2457
    %v2634 = vpack.c.b16 %v2462, %v2458
    %v2635 = vpack.c.b16 %v2463, %v2459
    %v2636 = vpack.c.b16 %v2464, %v2460
    %v2637 = vpack.c.b16 %v2469, %v2465
    %v2638 = vpack.c.b16 %v2470, %v2466
    %v2639 = vpack.c.b16 %v2471, %v2467
    %v2640 = vpack.c.b16 %v2472, %v2468
    %v2641 = vpack.c.b16 %v2477, %v2473
    %v2642 = vpack.c.b16 %v2478, %v2474
    %v2643 = vpack.c.b16 %v2479, %v2475
    %v2644 = vpack.c.b16 %v2480, %v2476
    %v2645 = vpack.c.b16 %v2485, %v2481
    %v2646 = vpack.c.b16 %v2486, %v2482
    %v2647 = vpack.c.b16 %v2487, %v2483
    %v2648 = vpack.c.b16 %v2488, %v2484
    %v2649 = vpack.c.b16 %v2493, %v2489
    %v2650 = vpack.c.b16 %v2494, %v2490
    %v2651 = vpack.c.b16 %v2495, %v2491
    %v2652 = vpack.c.b16 %v2496, %v2492
    %v2653 = vpack.c.b16 %v2501, %v2497
    %v2654 = vpack.c.b16 %v2502, %v2498
    %v2655 = vpack.c.b16 %v2503, %v2499
    %v2656 = vpack.c.b16 %v2504, %v2500
    %v2657 = vpack.c.b16 %v2509, %v2505
    %v2658 = vpack.c.b16 %v2510, %v2506
    %v2659 = vpack.c.b16 %v2511, %v2507
    %v2660 = vpack.c.b16 %v2512, %v2508
    %v2661 = vpack.c.b16 %v2517, %v2513
    %v2662 = vpack.c.b16 %v2518, %v2514
    %v2663 = vpack.c.b16 %v2519, %v2515
    %v2664 = vpack.c.b16 %v2520, %v2516
    %v2665 = vpack.c.b16 %v2525, %v2521
    %v2666 = vpack.c.b16 %v2526, %v2522
    %v2667 = vpack.c.b16 %v2527, %v2523
    %v2668 = vpack.c.b16 %v2528, %v2524
    %v2669 = vpack.c.b16 %v2533, %v2529
    %v2670 = vpack.c.b16 %v2534, %v2530
    %v2671 = vpack.c.b16 %v2535, %v2531
    %v2672 = vpack.c.b16 %v2536, %v2532
    %v2673 = vpack.c.b16 %v2541, %v2537
    %v2674 = vpack.c.b16 %v2542, %v2538
    %v2675 = vpack.c.b16 %v2543, %v2539
    %v2676 = vpack.c.b16 %v2544, %v2540
    %v2677 = vpack.c.b16 %v2549, %v2545
    %v2678 = vpack.c.b16 %v2550, %v2546
    %v2679 = vpack.c.b16 %v2551, %v2547
    %v2680 = vpack.c.b16 %v2552, %v2548
    %2809 = vmatprep.subr.bf16.mxu0 %v2554
    %2810 = vmatpush1.bf16.msra.mxu0 %v2553
    %2811 = vmatprep.subr.bf16.mxu0 %v2558
    %2812 = vmatpush1.bf16.msra.mxu0 %v2557
    %2813 = vmatprep.subr.bf16.mxu0 %v2562
    %2814 = vmatpush1.bf16.msra.mxu0 %v2561
    %2815 = vmatprep.subr.bf16.mxu0 %v2566
    %2816 = vmatpush1.bf16.msra.mxu0 %v2565
    %2817 = vmatprep.subr.bf16.mxu0 %v2570
    %2818 = vmatpush1.bf16.msra.mxu0 %v2569
    %2819 = vmatprep.subr.bf16.mxu0 %v2574
    %2820 = vmatpush1.bf16.msra.mxu0 %v2573
    %2821 = vmatprep.subr.bf16.mxu0 %v2578
    %2822 = vmatpush1.bf16.msra.mxu0 %v2577
    %2823 = vmatprep.subr.bf16.mxu0 %v2582
    %2824 = vmatpush1.bf16.msra.mxu0 %v2581
    %2825 = vmatprep.subr.bf16.mxu0 %v2586
    %2826 = vmatpush1.bf16.msra.mxu0 %v2585
    %2827 = vmatprep.subr.bf16.mxu0 %v2590
    %2828 = vmatpush1.bf16.msra.mxu0 %v2589
    %2829 = vmatprep.subr.bf16.mxu0 %v2594
    %2830 = vmatpush1.bf16.msra.mxu0 %v2593
    %2831 = vmatprep.subr.bf16.mxu0 %v2598
    %2832 = vmatpush1.bf16.msra.mxu0 %v2597
    %2833 = vmatprep.subr.bf16.mxu0 %v2602
    %2834 = vmatpush1.bf16.msra.mxu0 %v2601
    %2835 = vmatprep.subr.bf16.mxu0 %v2606
    %2836 = vmatpush1.bf16.msra.mxu0 %v2605
    %2837 = vmatprep.subr.bf16.mxu0 %v2610
    %2838 = vmatpush1.bf16.msra.mxu0 %v2609
    %2839 = vmatprep.subr.bf16.mxu0 %v2614
    %2840 = vmatpush1.bf16.msra.mxu0 %v2613
    %2841 = vmatprep.mubr.bf16.mxu0 %v2162
    %2842 = vmatmul.mubr.bf16.gmra.mrb[0].mxu0 %v2161
    %v2843 = vpop.f32.mrb[0].mxu0
    %v2844 = vadd.f32 0.0, %v2843
    %v2845 = vpop.f32.mrb[0].mxu0
    %v2846 = vadd.f32 0.0, %v2845
    %v2847 = vpop.f32.mrb[0].mxu0
    %v2848 = vpop.f32.mrb[0].mxu0
    %2849 = vdwg.mxu0
    %2850 = vmatprep.subr.bf16.mxu0 %v2618
    %2851 = vmatpush1.bf16.msra.mxu0 %v2617
    %2852 = vmatprep.subr.bf16.mxu0 %v2622
    %2853 = vmatpush1.bf16.msra.mxu0 %v2621
    %2854 = vmatprep.subr.bf16.mxu0 %v2626
    %2855 = vmatpush1.bf16.msra.mxu0 %v2625
    %2856 = vmatprep.subr.bf16.mxu0 %v2630
    %2857 = vmatpush1.bf16.msra.mxu0 %v2629
    %2858 = vmatprep.subr.bf16.mxu0 %v2634
    %2859 = vmatpush1.bf16.msra.mxu0 %v2633
    %2860 = vmatprep.subr.bf16.mxu0 %v2638
    %2861 = vmatpush1.bf16.msra.mxu0 %v2637
    %2862 = vmatprep.subr.bf16.mxu0 %v2642
    %2863 = vmatpush1.bf16.msra.mxu0 %v2641
    %2864 = vmatprep.subr.bf16.mxu0 %v2646
    %2865 = vmatpush1.bf16.msra.mxu0 %v2645
    %2866 = vmatprep.subr.bf16.mxu0 %v2650
    %2867 = vmatpush1.bf16.msra.mxu0 %v2649
    %2868 = vmatprep.subr.bf16.mxu0 %v2654
    %2869 = vmatpush1.bf16.msra.mxu0 %v2653
    %2870 = vmatprep.subr.bf16.mxu0 %v2658
    %2871 = vmatpush1.bf16.msra.mxu0 %v2657
    %2872 = vmatprep.subr.bf16.mxu0 %v2662
    %2873 = vmatpush1.bf16.msra.mxu0 %v2661
    %2874 = vmatprep.subr.bf16.mxu0 %v2666
    %2875 = vmatpush1.bf16.msra.mxu0 %v2665
    %2876 = vmatprep.subr.bf16.mxu0 %v2670
    %2877 = vmatpush1.bf16.msra.mxu0 %v2669
    %2878 = vmatprep.subr.bf16.mxu0 %v2674
    %2879 = vmatpush1.bf16.msra.mxu0 %v2673
    %2880 = vmatprep.subr.bf16.mxu0 %v2678
    %2881 = vmatpush1.bf16.msra.mxu0 %v2677
    %2882 = vmatprep.mubr.bf16.mxu0 %v2164
    %2883 = vmatmul.mubr.bf16.gmra.mrb[0].mxu0 %v2163
    %v2884 = vpop.f32.mrb[0].mxu0
    %v2885 = vadd.f32 %v2844, %v2884
    %v2886 = vpop.f32.mrb[0].mxu0
    %v2887 = vadd.f32 %v2846, %v2886
    %v2888 = vpop.f32.mrb[0].mxu0
    %v2889 = vpop.f32.mrb[0].mxu0
    %2890 = vdwg.mxu0
    %2891 = vmatprep.subr.bf16.mxu0 %v2556
    %2892 = vmatpush1.bf16.msra.mxu0 %v2555
    %2893 = vmatprep.subr.bf16.mxu0 %v2560
    %2894 = vmatpush1.bf16.msra.mxu0 %v2559
    %2895 = vmatprep.subr.bf16.mxu0 %v2564
    %2896 = vmatpush1.bf16.msra.mxu0 %v2563
    %2897 = vmatprep.subr.bf16.mxu0 %v2568
    %2898 = vmatpush1.bf16.msra.mxu0 %v2567
    %2899 = vmatprep.subr.bf16.mxu0 %v2572
    %2900 = vmatpush1.bf16.msra.mxu0 %v2571
    %2901 = vmatprep.subr.bf16.mxu0 %v2576
    %2902 = vmatpush1.bf16.msra.mxu0 %v2575
    %2903 = vmatprep.subr.bf16.mxu0 %v2580
    %2904 = vmatpush1.bf16.msra.mxu0 %v2579
    %2905 = vmatprep.subr.bf16.mxu0 %v2584
    %2906 = vmatpush1.bf16.msra.mxu0 %v2583
    %2907 = vmatprep.subr.bf16.mxu0 %v2588
    %2908 = vmatpush1.bf16.msra.mxu0 %v2587
    %2909 = vmatprep.subr.bf16.mxu0 %v2592
    %2910 = vmatpush1.bf16.msra.mxu0 %v2591
    %2911 = vmatprep.subr.bf16.mxu0 %v2596
    %2912 = vmatpush1.bf16.msra.mxu0 %v2595
    %2913 = vmatprep.subr.bf16.mxu0 %v2600
    %2914 = vmatpush1.bf16.msra.mxu0 %v2599
    %2915 = vmatprep.subr.bf16.mxu0 %v2604
    %2916 = vmatpush1.bf16.msra.mxu0 %v2603
    %2917 = vmatprep.subr.bf16.mxu0 %v2608
    %2918 = vmatpush1.bf16.msra.mxu0 %v2607
    %2919 = vmatprep.subr.bf16.mxu0 %v2612
    %2920 = vmatpush1.bf16.msra.mxu0 %v2611
    %2921 = vmatprep.subr.bf16.mxu0 %v2616
    %2922 = vmatpush1.bf16.msra.mxu0 %v2615
    %2923 = vmatprep.mubr.bf16.mxu0 %v2162
    %2924 = vmatmul.mubr.bf16.gmra.mrb[0].mxu0 %v2161
    %v2925 = vpop.f32.mrb[0].mxu0
    %v2926 = vadd.f32 0.0, %v2925
    %v2927 = vpop.f32.mrb[0].mxu0
    %v2928 = vadd.f32 0.0, %v2927
    %v2929 = vpop.f32.mrb[0].mxu0
    %v2930 = vpop.f32.mrb[0].mxu0
    %2931 = vdwg.mxu0
    %2932 = vmatprep.subr.bf16.mxu0 %v2620
    %2933 = vmatpush1.bf16.msra.mxu0 %v2619
    %2934 = vmatprep.subr.bf16.mxu0 %v2624
    %2935 = vmatpush1.bf16.msra.mxu0 %v2623
    %2936 = vmatprep.subr.bf16.mxu0 %v2628
    %2937 = vmatpush1.bf16.msra.mxu0 %v2627
    %2938 = vmatprep.subr.bf16.mxu0 %v2632
    %2939 = vmatpush1.bf16.msra.mxu0 %v2631
    %2940 = vmatprep.subr.bf16.mxu0 %v2636
    %2941 = vmatpush1.bf16.msra.mxu0 %v2635
    %2942 = vmatprep.subr.bf16.mxu0 %v2640
    %2943 = vmatpush1.bf16.msra.mxu0 %v2639
    %2944 = vmatprep.subr.bf16.mxu0 %v2644
    %2945 = vmatpush1.bf16.msra.mxu0 %v2643
    %2946 = vmatprep.subr.bf16.mxu0 %v2648
    %2947 = vmatpush1.bf16.msra.mxu0 %v2647
    %2948 = vmatprep.subr.bf16.mxu0 %v2652
    %2949 = vmatpush1.bf16.msra.mxu0 %v2651
    %2950 = vmatprep.subr.bf16.mxu0 %v2656
    %2951 = vmatpush1.bf16.msra.mxu0 %v2655
    %2952 = vmatprep.subr.bf16.mxu0 %v2660
    %2953 = vmatpush1.bf16.msra.mxu0 %v2659
    %2954 = vmatprep.subr.bf16.mxu0 %v2664
    %2955 = vmatpush1.bf16.msra.mxu0 %v2663
    %2956 = vmatprep.subr.bf16.mxu0 %v2668
    %2957 = vmatpush1.bf16.msra.mxu0 %v2667
    %2958 = vmatprep.subr.bf16.mxu0 %v2672
    %2959 = vmatpush1.bf16.msra.mxu0 %v2671
    %2960 = vmatprep.subr.bf16.mxu0 %v2676
    %2961 = vmatpush1.bf16.msra.mxu0 %v2675
    %2962 = vmatprep.subr.bf16.mxu0 %v2680
    %2963 = vmatpush1.bf16.msra.mxu0 %v2679
    %2964 = vmatprep.mubr.bf16.mxu0 %v2164
    %2965 = vmatmul.mubr.bf16.gmra.mrb[0].mxu0 %v2163
    %v2966 = vpop.f32.mrb[0].mxu0
    %v2967 = vadd.f32 %v2926, %v2966
    %v2968 = vpop.f32.mrb[0].mxu0
    %v2969 = vadd.f32 %v2928, %v2968
    %v2970 = vpop.f32.mrb[0].mxu0
    %v2971 = vpop.f32.mrb[0].mxu0
    %2972 = vdwg.mxu0
    %v2973 = vadd.f32 %v1937, %v2885
    %v2974 = vadd.f32 %v1939, %v2887
    %v2975 = vadd.f32 %v2019, %v2967
    %v2976 = vadd.f32 %v2021, %v2969
    %v2977 = vld [vmem:[%s6] sm:$0xf]
    %v2979 = vlaneseq
    %v2980 = vshrl.u32 %v2979, 7
    %v2981 = vsub.s32 0, %v2980
    %v2982 = vrot.slane %v2977, %v2981
    %v2983 = vlaneseq
    %v2984 = vshrl.u32 %v2983, 7
    %v2985 = vsub.s32 1, %v2984
    %v2986 = vrot.slane %v2977, %v2985
    %v2987 = vlaneseq
    %v2988 = vshrl.u32 %v2987, 7
    %v2989 = vsub.s32 2, %v2988
    %v2990 = vrot.slane %v2977, %v2989
    %v2991 = vlaneseq
    %v2992 = vshrl.u32 %v2991, 7
    %v2993 = vsub.s32 3, %v2992
    %v2994 = vrot.slane %v2977, %v2993
    %v2999 = vadd.f32 %v2973, %v2982
    %v3000 = vadd.f32 %v2974, %v2986
    %v3001 = vadd.f32 %v2975, %v2990
    %v3002 = vadd.f32 %v2976, %v2994
    %v3003 = vmax.f32 %v2999, 0.0
    %v3004 = vmax.f32 %v3000, 0.0
    %v3005 = vmax.f32 %v3001, 0.0
    %v3006 = vmax.f32 %v3002, 0.0
    %v3007 = vpack.c.bf16 %v3003, %v3003
    %v3008 = vpack.c.bf16 %v3004, %v3004
    %v3009 = vpack.c.bf16 %v3005, %v3005
    %v3010 = vpack.c.bf16 %v3006, %v3006
    %v3011 = vld [vmem:[#allocation13] sm:$0xff]
    %v3012 = vld [vmem:[#allocation13 + $0x8] sm:$0xff]
    %v3013 = vld [vmem:[#allocation13 + $0x10] sm:$0xff]
    %v3014 = vld [vmem:[#allocation13 + $0x18] sm:$0xff]
    %v3015 = vld [vmem:[#allocation13 + $0x20] sm:$0xff]
    %v3016 = vld [vmem:[#allocation13 + $0x28] sm:$0xff]
    %v3017 = vld [vmem:[#allocation13 + $0x30] sm:$0xff]
    %v3018 = vld [vmem:[#allocation13 + $0x38] sm:$0xff]
    %v3019 = vld [vmem:[#allocation13 + $0x40] sm:$0xff]
    %v3020 = vld [vmem:[#allocation13 + $0x48] sm:$0xff]
    %v3021 = vld [vmem:[#allocation13 + $0x50] sm:$0xff]
    %v3022 = vld [vmem:[#allocation13 + $0x58] sm:$0xff]
    %v3023 = vld [vmem:[#allocation13 + $0x60] sm:$0xff]
    %v3024 = vld [vmem:[#allocation13 + $0x68] sm:$0xff]
    %v3025 = vld [vmem:[#allocation13 + $0x70] sm:$0xff]
    %v3026 = vld [vmem:[#allocation13 + $0x78] sm:$0xff]
    %v3027 = vld [vmem:[#allocation13 + $0x80] sm:$0xff]
    %v3028 = vld [vmem:[#allocation13 + $0x88] sm:$0xff]
    %v3029 = vld [vmem:[#allocation13 + $0x90] sm:$0xff]
    %v3030 = vld [vmem:[#allocation13 + $0x98] sm:$0xff]
    %v3031 = vld [vmem:[#allocation13 + $0xa0] sm:$0xff]
    %v3032 = vld [vmem:[#allocation13 + $0xa8] sm:$0xff]
    %v3033 = vld [vmem:[#allocation13 + $0xb0] sm:$0xff]
    %v3034 = vld [vmem:[#allocation13 + $0xb8] sm:$0xff]
    %v3035 = vld [vmem:[#allocation13 + $0xc0] sm:$0xff]
    %v3036 = vld [vmem:[#allocation13 + $0xc8] sm:$0xff]
    %v3037 = vld [vmem:[#allocation13 + $0xd0] sm:$0xff]
    %v3038 = vld [vmem:[#allocation13 + $0xd8] sm:$0xff]
    %v3039 = vld [vmem:[#allocation13 + $0xe0] sm:$0xff]
    %v3040 = vld [vmem:[#allocation13 + $0xe8] sm:$0xff]
    %v3041 = vld [vmem:[#allocation13 + $0xf0] sm:$0xff]
    %v3042 = vld [vmem:[#allocation13 + $0xf8] sm:$0xff]
    %v3043 = vld [vmem:[#allocation13 + $0x100] sm:$0xff]
    %v3044 = vld [vmem:[#allocation13 + $0x108] sm:$0xff]
    %v3045 = vld [vmem:[#allocation13 + $0x110] sm:$0xff]
    %v3046 = vld [vmem:[#allocation13 + $0x118] sm:$0xff]
    %v3047 = vld [vmem:[#allocation13 + $0x120] sm:$0xff]
    %v3048 = vld [vmem:[#allocation13 + $0x128] sm:$0xff]
    %v3049 = vld [vmem:[#allocation13 + $0x130] sm:$0xff]
    %v3050 = vld [vmem:[#allocation13 + $0x138] sm:$0xff]
    %v3051 = vld [vmem:[#allocation13 + $0x140] sm:$0xff]
    %v3052 = vld [vmem:[#allocation13 + $0x148] sm:$0xff]
    %v3053 = vld [vmem:[#allocation13 + $0x150] sm:$0xff]
    %v3054 = vld [vmem:[#allocation13 + $0x158] sm:$0xff]
    %v3055 = vld [vmem:[#allocation13 + $0x160] sm:$0xff]
    %v3056 = vld [vmem:[#allocation13 + $0x168] sm:$0xff]
    %v3057 = vld [vmem:[#allocation13 + $0x170] sm:$0xff]
    %v3058 = vld [vmem:[#allocation13 + $0x178] sm:$0xff]
    %v3059 = vld [vmem:[#allocation13 + $0x180] sm:$0xff]
    %v3060 = vld [vmem:[#allocation13 + $0x188] sm:$0xff]
    %v3061 = vld [vmem:[#allocation13 + $0x190] sm:$0xff]
    %v3062 = vld [vmem:[#allocation13 + $0x198] sm:$0xff]
    %v3063 = vld [vmem:[#allocation13 + $0x1a0] sm:$0xff]
    %v3064 = vld [vmem:[#allocation13 + $0x1a8] sm:$0xff]
    %v3065 = vld [vmem:[#allocation13 + $0x1b0] sm:$0xff]
    %v3066 = vld [vmem:[#allocation13 + $0x1b8] sm:$0xff]
    %v3067 = vld [vmem:[#allocation13 + $0x1c0] sm:$0xff]
    %v3068 = vld [vmem:[#allocation13 + $0x1c8] sm:$0xff]
    %v3069 = vld [vmem:[#allocation13 + $0x1d0] sm:$0xff]
    %v3070 = vld [vmem:[#allocation13 + $0x1d8] sm:$0xff]
    %v3071 = vld [vmem:[#allocation13 + $0x1e0] sm:$0xff]
    %v3072 = vld [vmem:[#allocation13 + $0x1e8] sm:$0xff]
    %v3073 = vld [vmem:[#allocation13 + $0x1f0] sm:$0xff]
    %v3074 = vld [vmem:[#allocation13 + $0x1f8] sm:$0xff]
    %v3075 = vld [vmem:[#allocation13 + $0x200] sm:$0xff]
    %v3076 = vld [vmem:[#allocation13 + $0x208] sm:$0xff]
    %v3077 = vld [vmem:[#allocation13 + $0x210] sm:$0xff]
    %v3078 = vld [vmem:[#allocation13 + $0x218] sm:$0xff]
    %v3079 = vld [vmem:[#allocation13 + $0x220] sm:$0xff]
    %v3080 = vld [vmem:[#allocation13 + $0x228] sm:$0xff]
    %v3081 = vld [vmem:[#allocation13 + $0x230] sm:$0xff]
    %v3082 = vld [vmem:[#allocation13 + $0x238] sm:$0xff]
    %v3083 = vld [vmem:[#allocation13 + $0x240] sm:$0xff]
    %v3084 = vld [vmem:[#allocation13 + $0x248] sm:$0xff]
    %v3085 = vld [vmem:[#allocation13 + $0x250] sm:$0xff]
    %v3086 = vld [vmem:[#allocation13 + $0x258] sm:$0xff]
    %v3087 = vld [vmem:[#allocation13 + $0x260] sm:$0xff]
    %v3088 = vld [vmem:[#allocation13 + $0x268] sm:$0xff]
    %v3089 = vld [vmem:[#allocation13 + $0x270] sm:$0xff]
    %v3090 = vld [vmem:[#allocation13 + $0x278] sm:$0xff]
    %v3091 = vld [vmem:[#allocation13 + $0x280] sm:$0xff]
    %v3092 = vld [vmem:[#allocation13 + $0x288] sm:$0xff]
    %v3093 = vld [vmem:[#allocation13 + $0x290] sm:$0xff]
    %v3094 = vld [vmem:[#allocation13 + $0x298] sm:$0xff]
    %v3095 = vld [vmem:[#allocation13 + $0x2a0] sm:$0xff]
    %v3096 = vld [vmem:[#allocation13 + $0x2a8] sm:$0xff]
    %v3097 = vld [vmem:[#allocation13 + $0x2b0] sm:$0xff]
    %v3098 = vld [vmem:[#allocation13 + $0x2b8] sm:$0xff]
    %v3099 = vld [vmem:[#allocation13 + $0x2c0] sm:$0xff]
    %v3100 = vld [vmem:[#allocation13 + $0x2c8] sm:$0xff]
    %v3101 = vld [vmem:[#allocation13 + $0x2d0] sm:$0xff]
    %v3102 = vld [vmem:[#allocation13 + $0x2d8] sm:$0xff]
    %v3103 = vld [vmem:[#allocation13 + $0x2e0] sm:$0xff]
    %v3104 = vld [vmem:[#allocation13 + $0x2e8] sm:$0xff]
    %v3105 = vld [vmem:[#allocation13 + $0x2f0] sm:$0xff]
    %v3106 = vld [vmem:[#allocation13 + $0x2f8] sm:$0xff]
    %v3107 = vld [vmem:[#allocation13 + $0x300] sm:$0xff]
    %v3108 = vld [vmem:[#allocation13 + $0x308] sm:$0xff]
    %v3109 = vld [vmem:[#allocation13 + $0x310] sm:$0xff]
    %v3110 = vld [vmem:[#allocation13 + $0x318] sm:$0xff]
    %v3111 = vld [vmem:[#allocation13 + $0x320] sm:$0xff]
    %v3112 = vld [vmem:[#allocation13 + $0x328] sm:$0xff]
    %v3113 = vld [vmem:[#allocation13 + $0x330] sm:$0xff]
    %v3114 = vld [vmem:[#allocation13 + $0x338] sm:$0xff]
    %v3115 = vld [vmem:[#allocation13 + $0x340] sm:$0xff]
    %v3116 = vld [vmem:[#allocation13 + $0x348] sm:$0xff]
    %v3117 = vld [vmem:[#allocation13 + $0x350] sm:$0xff]
    %v3118 = vld [vmem:[#allocation13 + $0x358] sm:$0xff]
    %v3119 = vld [vmem:[#allocation13 + $0x360] sm:$0xff]
    %v3120 = vld [vmem:[#allocation13 + $0x368] sm:$0xff]
    %v3121 = vld [vmem:[#allocation13 + $0x370] sm:$0xff]
    %v3122 = vld [vmem:[#allocation13 + $0x378] sm:$0xff]
    %v3123 = vld [vmem:[#allocation13 + $0x380] sm:$0xff]
    %v3124 = vld [vmem:[#allocation13 + $0x388] sm:$0xff]
    %v3125 = vld [vmem:[#allocation13 + $0x390] sm:$0xff]
    %v3126 = vld [vmem:[#allocation13 + $0x398] sm:$0xff]
    %v3127 = vld [vmem:[#allocation13 + $0x3a0] sm:$0xff]
    %v3128 = vld [vmem:[#allocation13 + $0x3a8] sm:$0xff]
    %v3129 = vld [vmem:[#allocation13 + $0x3b0] sm:$0xff]
    %v3130 = vld [vmem:[#allocation13 + $0x3b8] sm:$0xff]
    %v3131 = vld [vmem:[#allocation13 + $0x3c0] sm:$0xff]
    %v3132 = vld [vmem:[#allocation13 + $0x3c8] sm:$0xff]
    %v3133 = vld [vmem:[#allocation13 + $0x3d0] sm:$0xff]
    %v3134 = vld [vmem:[#allocation13 + $0x3d8] sm:$0xff]
    %v3135 = vld [vmem:[#allocation13 + $0x3e0] sm:$0xff]
    %v3136 = vld [vmem:[#allocation13 + $0x3e8] sm:$0xff]
    %v3137 = vld [vmem:[#allocation13 + $0x3f0] sm:$0xff]
    %v3138 = vld [vmem:[#allocation13 + $0x3f8] sm:$0xff]
    %v3139 = vld [vmem:[%s8] sm:$0xf]
    %v3141 = vlaneseq
    %v3142 = vshrl.u32 %v3141, 7
    %v3143 = vsub.s32 0, %v3142
    %v3144 = vrot.slane %v3139, %v3143
    %v3145 = vlaneseq
    %v3146 = vshrl.u32 %v3145, 7
    %v3147 = vsub.s32 1, %v3146
    %v3148 = vrot.slane %v3139, %v3147
    %v3149 = vlaneseq
    %v3150 = vshrl.u32 %v3149, 7
    %v3151 = vsub.s32 2, %v3150
    %v3152 = vrot.slane %v3139, %v3151
    %v3153 = vlaneseq
    %v3154 = vshrl.u32 %v3153, 7
    %v3155 = vsub.s32 3, %v3154
    %v3156 = vrot.slane %v3139, %v3155
    %v3289 = vunpack.c.l.b16 %v3011
    %v3290 = vunpack.c.h.b16 %v3011
    %v3291 = vunpack.c.l.b16 %v3012
    %v3292 = vunpack.c.h.b16 %v3012
    %v3293 = vunpack.c.l.b16 %v3013
    %v3294 = vunpack.c.h.b16 %v3013
    %v3295 = vunpack.c.l.b16 %v3014
    %v3296 = vunpack.c.h.b16 %v3014
    %v3297 = vunpack.c.l.b16 %v3015
    %v3298 = vunpack.c.h.b16 %v3015
    %v3299 = vunpack.c.l.b16 %v3016
    %v3300 = vunpack.c.h.b16 %v3016
    %v3301 = vunpack.c.l.b16 %v3017
    %v3302 = vunpack.c.h.b16 %v3017
    %v3303 = vunpack.c.l.b16 %v3018
    %v3304 = vunpack.c.h.b16 %v3018
    %v3305 = vunpack.c.l.b16 %v3019
    %v3306 = vunpack.c.h.b16 %v3019
    %v3307 = vunpack.c.l.b16 %v3020
    %v3308 = vunpack.c.h.b16 %v3020
    %v3309 = vunpack.c.l.b16 %v3021
    %v3310 = vunpack.c.h.b16 %v3021
    %v3311 = vunpack.c.l.b16 %v3022
    %v3312 = vunpack.c.h.b16 %v3022
    %v3313 = vunpack.c.l.b16 %v3023
    %v3314 = vunpack.c.h.b16 %v3023
    %v3315 = vunpack.c.l.b16 %v3024
    %v3316 = vunpack.c.h.b16 %v3024
    %v3317 = vunpack.c.l.b16 %v3025
    %v3318 = vunpack.c.h.b16 %v3025
    %v3319 = vunpack.c.l.b16 %v3026
    %v3320 = vunpack.c.h.b16 %v3026
    %v3321 = vunpack.c.l.b16 %v3027
    %v3322 = vunpack.c.h.b16 %v3027
    %v3323 = vunpack.c.l.b16 %v3028
    %v3324 = vunpack.c.h.b16 %v3028
    %v3325 = vunpack.c.l.b16 %v3029
    %v3326 = vunpack.c.h.b16 %v3029
    %v3327 = vunpack.c.l.b16 %v3030
    %v3328 = vunpack.c.h.b16 %v3030
    %v3329 = vunpack.c.l.b16 %v3031
    %v3330 = vunpack.c.h.b16 %v3031
    %v3331 = vunpack.c.l.b16 %v3032
    %v3332 = vunpack.c.h.b16 %v3032
    %v3333 = vunpack.c.l.b16 %v3033
    %v3334 = vunpack.c.h.b16 %v3033
    %v3335 = vunpack.c.l.b16 %v3034
    %v3336 = vunpack.c.h.b16 %v3034
    %v3337 = vunpack.c.l.b16 %v3035
    %v3338 = vunpack.c.h.b16 %v3035
    %v3339 = vunpack.c.l.b16 %v3036
    %v3340 = vunpack.c.h.b16 %v3036
    %v3341 = vunpack.c.l.b16 %v3037
    %v3342 = vunpack.c.h.b16 %v3037
    %v3343 = vunpack.c.l.b16 %v3038
    %v3344 = vunpack.c.h.b16 %v3038
    %v3345 = vunpack.c.l.b16 %v3039
    %v3346 = vunpack.c.h.b16 %v3039
    %v3347 = vunpack.c.l.b16 %v3040
    %v3348 = vunpack.c.h.b16 %v3040
    %v3349 = vunpack.c.l.b16 %v3041
    %v3350 = vunpack.c.h.b16 %v3041
    %v3351 = vunpack.c.l.b16 %v3042
    %v3352 = vunpack.c.h.b16 %v3042
    %v3353 = vunpack.c.l.b16 %v3043
    %v3354 = vunpack.c.h.b16 %v3043
    %v3355 = vunpack.c.l.b16 %v3044
    %v3356 = vunpack.c.h.b16 %v3044
    %v3357 = vunpack.c.l.b16 %v3045
    %v3358 = vunpack.c.h.b16 %v3045
    %v3359 = vunpack.c.l.b16 %v3046
    %v3360 = vunpack.c.h.b16 %v3046
    %v3361 = vunpack.c.l.b16 %v3047
    %v3362 = vunpack.c.h.b16 %v3047
    %v3363 = vunpack.c.l.b16 %v3048
    %v3364 = vunpack.c.h.b16 %v3048
    %v3365 = vunpack.c.l.b16 %v3049
    %v3366 = vunpack.c.h.b16 %v3049
    %v3367 = vunpack.c.l.b16 %v3050
    %v3368 = vunpack.c.h.b16 %v3050
    %v3369 = vunpack.c.l.b16 %v3051
    %v3370 = vunpack.c.h.b16 %v3051
    %v3371 = vunpack.c.l.b16 %v3052
    %v3372 = vunpack.c.h.b16 %v3052
    %v3373 = vunpack.c.l.b16 %v3053
    %v3374 = vunpack.c.h.b16 %v3053
    %v3375 = vunpack.c.l.b16 %v3054
    %v3376 = vunpack.c.h.b16 %v3054
    %v3377 = vunpack.c.l.b16 %v3055
    %v3378 = vunpack.c.h.b16 %v3055
    %v3379 = vunpack.c.l.b16 %v3056
    %v3380 = vunpack.c.h.b16 %v3056
    %v3381 = vunpack.c.l.b16 %v3057
    %v3382 = vunpack.c.h.b16 %v3057
    %v3383 = vunpack.c.l.b16 %v3058
    %v3384 = vunpack.c.h.b16 %v3058
    %v3385 = vunpack.c.l.b16 %v3059
    %v3386 = vunpack.c.h.b16 %v3059
    %v3387 = vunpack.c.l.b16 %v3060
    %v3388 = vunpack.c.h.b16 %v3060
    %v3389 = vunpack.c.l.b16 %v3061
    %v3390 = vunpack.c.h.b16 %v3061
    %v3391 = vunpack.c.l.b16 %v3062
    %v3392 = vunpack.c.h.b16 %v3062
    %v3393 = vunpack.c.l.b16 %v3063
    %v3394 = vunpack.c.h.b16 %v3063
    %v3395 = vunpack.c.l.b16 %v3064
    %v3396 = vunpack.c.h.b16 %v3064
    %v3397 = vunpack.c.l.b16 %v3065
    %v3398 = vunpack.c.h.b16 %v3065
    %v3399 = vunpack.c.l.b16 %v3066
    %v3400 = vunpack.c.h.b16 %v3066
    %v3401 = vunpack.c.l.b16 %v3067
    %v3402 = vunpack.c.h.b16 %v3067
    %v3403 = vunpack.c.l.b16 %v3068
    %v3404 = vunpack.c.h.b16 %v3068
    %v3405 = vunpack.c.l.b16 %v3069
    %v3406 = vunpack.c.h.b16 %v3069
    %v3407 = vunpack.c.l.b16 %v3070
    %v3408 = vunpack.c.h.b16 %v3070
    %v3409 = vunpack.c.l.b16 %v3071
    %v3410 = vunpack.c.h.b16 %v3071
    %v3411 = vunpack.c.l.b16 %v3072
    %v3412 = vunpack.c.h.b16 %v3072
    %v3413 = vunpack.c.l.b16 %v3073
    %v3414 = vunpack.c.h.b16 %v3073
    %v3415 = vunpack.c.l.b16 %v3074
    %v3416 = vunpack.c.h.b16 %v3074
    %v3417 = vunpack.c.l.b16 %v3075
    %v3418 = vunpack.c.h.b16 %v3075
    %v3419 = vunpack.c.l.b16 %v3076
    %v3420 = vunpack.c.h.b16 %v3076
    %v3421 = vunpack.c.l.b16 %v3077
    %v3422 = vunpack.c.h.b16 %v3077
    %v3423 = vunpack.c.l.b16 %v3078
    %v3424 = vunpack.c.h.b16 %v3078
    %v3425 = vunpack.c.l.b16 %v3079
    %v3426 = vunpack.c.h.b16 %v3079
    %v3427 = vunpack.c.l.b16 %v3080
    %v3428 = vunpack.c.h.b16 %v3080
    %v3429 = vunpack.c.l.b16 %v3081
    %v3430 = vunpack.c.h.b16 %v3081
    %v3431 = vunpack.c.l.b16 %v3082
    %v3432 = vunpack.c.h.b16 %v3082
    %v3433 = vunpack.c.l.b16 %v3083
    %v3434 = vunpack.c.h.b16 %v3083
    %v3435 = vunpack.c.l.b16 %v3084
    %v3436 = vunpack.c.h.b16 %v3084
    %v3437 = vunpack.c.l.b16 %v3085
    %v3438 = vunpack.c.h.b16 %v3085
    %v3439 = vunpack.c.l.b16 %v3086
    %v3440 = vunpack.c.h.b16 %v3086
    %v3441 = vunpack.c.l.b16 %v3087
    %v3442 = vunpack.c.h.b16 %v3087
    %v3443 = vunpack.c.l.b16 %v3088
    %v3444 = vunpack.c.h.b16 %v3088
    %v3445 = vunpack.c.l.b16 %v3089
    %v3446 = vunpack.c.h.b16 %v3089
    %v3447 = vunpack.c.l.b16 %v3090
    %v3448 = vunpack.c.h.b16 %v3090
    %v3449 = vunpack.c.l.b16 %v3091
    %v3450 = vunpack.c.h.b16 %v3091
    %v3451 = vunpack.c.l.b16 %v3092
    %v3452 = vunpack.c.h.b16 %v3092
    %v3453 = vunpack.c.l.b16 %v3093
    %v3454 = vunpack.c.h.b16 %v3093
    %v3455 = vunpack.c.l.b16 %v3094
    %v3456 = vunpack.c.h.b16 %v3094
    %v3457 = vunpack.c.l.b16 %v3095
    %v3458 = vunpack.c.h.b16 %v3095
    %v3459 = vunpack.c.l.b16 %v3096
    %v3460 = vunpack.c.h.b16 %v3096
    %v3461 = vunpack.c.l.b16 %v3097
    %v3462 = vunpack.c.h.b16 %v3097
    %v3463 = vunpack.c.l.b16 %v3098
    %v3464 = vunpack.c.h.b16 %v3098
    %v3465 = vunpack.c.l.b16 %v3099
    %v3466 = vunpack.c.h.b16 %v3099
    %v3467 = vunpack.c.l.b16 %v3100
    %v3468 = vunpack.c.h.b16 %v3100
    %v3469 = vunpack.c.l.b16 %v3101
    %v3470 = vunpack.c.h.b16 %v3101
    %v3471 = vunpack.c.l.b16 %v3102
    %v3472 = vunpack.c.h.b16 %v3102
    %v3473 = vunpack.c.l.b16 %v3103
    %v3474 = vunpack.c.h.b16 %v3103
    %v3475 = vunpack.c.l.b16 %v3104
    %v3476 = vunpack.c.h.b16 %v3104
    %v3477 = vunpack.c.l.b16 %v3105
    %v3478 = vunpack.c.h.b16 %v3105
    %v3479 = vunpack.c.l.b16 %v3106
    %v3480 = vunpack.c.h.b16 %v3106
    %v3481 = vunpack.c.l.b16 %v3107
    %v3482 = vunpack.c.h.b16 %v3107
    %v3483 = vunpack.c.l.b16 %v3108
    %v3484 = vunpack.c.h.b16 %v3108
    %v3485 = vunpack.c.l.b16 %v3109
    %v3486 = vunpack.c.h.b16 %v3109
    %v3487 = vunpack.c.l.b16 %v3110
    %v3488 = vunpack.c.h.b16 %v3110
    %v3489 = vunpack.c.l.b16 %v3111
    %v3490 = vunpack.c.h.b16 %v3111
    %v3491 = vunpack.c.l.b16 %v3112
    %v3492 = vunpack.c.h.b16 %v3112
    %v3493 = vunpack.c.l.b16 %v3113
    %v3494 = vunpack.c.h.b16 %v3113
    %v3495 = vunpack.c.l.b16 %v3114
    %v3496 = vunpack.c.h.b16 %v3114
    %v3497 = vunpack.c.l.b16 %v3115
    %v3498 = vunpack.c.h.b16 %v3115
    %v3499 = vunpack.c.l.b16 %v3116
    %v3500 = vunpack.c.h.b16 %v3116
    %v3501 = vunpack.c.l.b16 %v3117
    %v3502 = vunpack.c.h.b16 %v3117
    %v3503 = vunpack.c.l.b16 %v3118
    %v3504 = vunpack.c.h.b16 %v3118
    %v3505 = vunpack.c.l.b16 %v3119
    %v3506 = vunpack.c.h.b16 %v3119
    %v3507 = vunpack.c.l.b16 %v3120
    %v3508 = vunpack.c.h.b16 %v3120
    %v3509 = vunpack.c.l.b16 %v3121
    %v3510 = vunpack.c.h.b16 %v3121
    %v3511 = vunpack.c.l.b16 %v3122
    %v3512 = vunpack.c.h.b16 %v3122
    %v3513 = vunpack.c.l.b16 %v3123
    %v3514 = vunpack.c.h.b16 %v3123
    %v3515 = vunpack.c.l.b16 %v3124
    %v3516 = vunpack.c.h.b16 %v3124
    %v3517 = vunpack.c.l.b16 %v3125
    %v3518 = vunpack.c.h.b16 %v3125
    %v3519 = vunpack.c.l.b16 %v3126
    %v3520 = vunpack.c.h.b16 %v3126
    %v3521 = vunpack.c.l.b16 %v3127
    %v3522 = vunpack.c.h.b16 %v3127
    %v3523 = vunpack.c.l.b16 %v3128
    %v3524 = vunpack.c.h.b16 %v3128
    %v3525 = vunpack.c.l.b16 %v3129
    %v3526 = vunpack.c.h.b16 %v3129
    %v3527 = vunpack.c.l.b16 %v3130
    %v3528 = vunpack.c.h.b16 %v3130
    %v3529 = vunpack.c.l.b16 %v3131
    %v3530 = vunpack.c.h.b16 %v3131
    %v3531 = vunpack.c.l.b16 %v3132
    %v3532 = vunpack.c.h.b16 %v3132
    %v3533 = vunpack.c.l.b16 %v3133
    %v3534 = vunpack.c.h.b16 %v3133
    %v3535 = vunpack.c.l.b16 %v3134
    %v3536 = vunpack.c.h.b16 %v3134
    %v3537 = vunpack.c.l.b16 %v3135
    %v3538 = vunpack.c.h.b16 %v3135
    %v3539 = vunpack.c.l.b16 %v3136
    %v3540 = vunpack.c.h.b16 %v3136
    %v3541 = vunpack.c.l.b16 %v3137
    %v3542 = vunpack.c.h.b16 %v3137
    %v3543 = vunpack.c.l.b16 %v3138
    %v3544 = vunpack.c.h.b16 %v3138
    %v3545 = vpack.c.b16 %v3293, %v3289
    %v3546 = vpack.c.b16 %v3294, %v3290
    %v3547 = vpack.c.b16 %v3295, %v3291
    %v3548 = vpack.c.b16 %v3296, %v3292
    %v3549 = vpack.c.b16 %v3301, %v3297
    %v3550 = vpack.c.b16 %v3302, %v3298
    %v3551 = vpack.c.b16 %v3303, %v3299
    %v3552 = vpack.c.b16 %v3304, %v3300
    %v3553 = vpack.c.b16 %v3309, %v3305
    %v3554 = vpack.c.b16 %v3310, %v3306
    %v3555 = vpack.c.b16 %v3311, %v3307
    %v3556 = vpack.c.b16 %v3312, %v3308
    %v3557 = vpack.c.b16 %v3317, %v3313
    %v3558 = vpack.c.b16 %v3318, %v3314
    %v3559 = vpack.c.b16 %v3319, %v3315
    %v3560 = vpack.c.b16 %v3320, %v3316
    %v3561 = vpack.c.b16 %v3325, %v3321
    %v3562 = vpack.c.b16 %v3326, %v3322
    %v3563 = vpack.c.b16 %v3327, %v3323
    %v3564 = vpack.c.b16 %v3328, %v3324
    %v3565 = vpack.c.b16 %v3333, %v3329
    %v3566 = vpack.c.b16 %v3334, %v3330
    %v3567 = vpack.c.b16 %v3335, %v3331
    %v3568 = vpack.c.b16 %v3336, %v3332
    %v3569 = vpack.c.b16 %v3341, %v3337
    %v3570 = vpack.c.b16 %v3342, %v3338
    %v3571 = vpack.c.b16 %v3343, %v3339
    %v3572 = vpack.c.b16 %v3344, %v3340
    %v3573 = vpack.c.b16 %v3349, %v3345
    %v3574 = vpack.c.b16 %v3350, %v3346
    %v3575 = vpack.c.b16 %v3351, %v3347
    %v3576 = vpack.c.b16 %v3352, %v3348
    %v3577 = vpack.c.b16 %v3357, %v3353
    %v3578 = vpack.c.b16 %v3358, %v3354
    %v3579 = vpack.c.b16 %v3359, %v3355
    %v3580 = vpack.c.b16 %v3360, %v3356
    %v3581 = vpack.c.b16 %v3365, %v3361
    %v3582 = vpack.c.b16 %v3366, %v3362
    %v3583 = vpack.c.b16 %v3367, %v3363
    %v3584 = vpack.c.b16 %v3368, %v3364
    %v3585 = vpack.c.b16 %v3373, %v3369
    %v3586 = vpack.c.b16 %v3374, %v3370
    %v3587 = vpack.c.b16 %v3375, %v3371
    %v3588 = vpack.c.b16 %v3376, %v3372
    %v3589 = vpack.c.b16 %v3381, %v3377
    %v3590 = vpack.c.b16 %v3382, %v3378
    %v3591 = vpack.c.b16 %v3383, %v3379
    %v3592 = vpack.c.b16 %v3384, %v3380
    %v3593 = vpack.c.b16 %v3389, %v3385
    %v3594 = vpack.c.b16 %v3390, %v3386
    %v3595 = vpack.c.b16 %v3391, %v3387
    %v3596 = vpack.c.b16 %v3392, %v3388
    %v3597 = vpack.c.b16 %v3397, %v3393
    %v3598 = vpack.c.b16 %v3398, %v3394
    %v3599 = vpack.c.b16 %v3399, %v3395
    %v3600 = vpack.c.b16 %v3400, %v3396
    %v3601 = vpack.c.b16 %v3405, %v3401
    %v3602 = vpack.c.b16 %v3406, %v3402
    %v3603 = vpack.c.b16 %v3407, %v3403
    %v3604 = vpack.c.b16 %v3408, %v3404
    %v3605 = vpack.c.b16 %v3413, %v3409
    %v3606 = vpack.c.b16 %v3414, %v3410
    %v3607 = vpack.c.b16 %v3415, %v3411
    %v3608 = vpack.c.b16 %v3416, %v3412
    %v3609 = vpack.c.b16 %v3421, %v3417
    %v3610 = vpack.c.b16 %v3422, %v3418
    %v3611 = vpack.c.b16 %v3423, %v3419
    %v3612 = vpack.c.b16 %v3424, %v3420
    %v3613 = vpack.c.b16 %v3429, %v3425
    %v3614 = vpack.c.b16 %v3430, %v3426
    %v3615 = vpack.c.b16 %v3431, %v3427
    %v3616 = vpack.c.b16 %v3432, %v3428
    %v3617 = vpack.c.b16 %v3437, %v3433
    %v3618 = vpack.c.b16 %v3438, %v3434
    %v3619 = vpack.c.b16 %v3439, %v3435
    %v3620 = vpack.c.b16 %v3440, %v3436
    %v3621 = vpack.c.b16 %v3445, %v3441
    %v3622 = vpack.c.b16 %v3446, %v3442
    %v3623 = vpack.c.b16 %v3447, %v3443
    %v3624 = vpack.c.b16 %v3448, %v3444
    %v3625 = vpack.c.b16 %v3453, %v3449
    %v3626 = vpack.c.b16 %v3454, %v3450
    %v3627 = vpack.c.b16 %v3455, %v3451
    %v3628 = vpack.c.b16 %v3456, %v3452
    %v3629 = vpack.c.b16 %v3461, %v3457
    %v3630 = vpack.c.b16 %v3462, %v3458
    %v3631 = vpack.c.b16 %v3463, %v3459
    %v3632 = vpack.c.b16 %v3464, %v3460
    %v3633 = vpack.c.b16 %v3469, %v3465
    %v3634 = vpack.c.b16 %v3470, %v3466
    %v3635 = vpack.c.b16 %v3471, %v3467
    %v3636 = vpack.c.b16 %v3472, %v3468
    %v3637 = vpack.c.b16 %v3477, %v3473
    %v3638 = vpack.c.b16 %v3478, %v3474
    %v3639 = vpack.c.b16 %v3479, %v3475
    %v3640 = vpack.c.b16 %v3480, %v3476
    %v3641 = vpack.c.b16 %v3485, %v3481
    %v3642 = vpack.c.b16 %v3486, %v3482
    %v3643 = vpack.c.b16 %v3487, %v3483
    %v3644 = vpack.c.b16 %v3488, %v3484
    %v3645 = vpack.c.b16 %v3493, %v3489
    %v3646 = vpack.c.b16 %v3494, %v3490
    %v3647 = vpack.c.b16 %v3495, %v3491
    %v3648 = vpack.c.b16 %v3496, %v3492
    %v3649 = vpack.c.b16 %v3501, %v3497
    %v3650 = vpack.c.b16 %v3502, %v3498
    %v3651 = vpack.c.b16 %v3503, %v3499
    %v3652 = vpack.c.b16 %v3504, %v3500
    %v3653 = vpack.c.b16 %v3509, %v3505
    %v3654 = vpack.c.b16 %v3510, %v3506
    %v3655 = vpack.c.b16 %v3511, %v3507
    %v3656 = vpack.c.b16 %v3512, %v3508
    %v3657 = vpack.c.b16 %v3517, %v3513
    %v3658 = vpack.c.b16 %v3518, %v3514
    %v3659 = vpack.c.b16 %v3519, %v3515
    %v3660 = vpack.c.b16 %v3520, %v3516
    %v3661 = vpack.c.b16 %v3525, %v3521
    %v3662 = vpack.c.b16 %v3526, %v3522
    %v3663 = vpack.c.b16 %v3527, %v3523
    %v3664 = vpack.c.b16 %v3528, %v3524
    %v3665 = vpack.c.b16 %v3533, %v3529
    %v3666 = vpack.c.b16 %v3534, %v3530
    %v3667 = vpack.c.b16 %v3535, %v3531
    %v3668 = vpack.c.b16 %v3536, %v3532
    %v3669 = vpack.c.b16 %v3541, %v3537
    %v3670 = vpack.c.b16 %v3542, %v3538
    %v3671 = vpack.c.b16 %v3543, %v3539
    %v3672 = vpack.c.b16 %v3544, %v3540
    %3801 = vmatprep.subr.bf16.mxu0 %v3546
    %3802 = vmatpush1.bf16.msra.mxu0 %v3545
    %3803 = vmatprep.subr.bf16.mxu0 %v3550
    %3804 = vmatpush1.bf16.msra.mxu0 %v3549
    %3805 = vmatprep.subr.bf16.mxu0 %v3554
    %3806 = vmatpush1.bf16.msra.mxu0 %v3553
    %3807 = vmatprep.subr.bf16.mxu0 %v3558
    %3808 = vmatpush1.bf16.msra.mxu0 %v3557
    %3809 = vmatprep.subr.bf16.mxu0 %v3562
    %3810 = vmatpush1.bf16.msra.mxu0 %v3561
    %3811 = vmatprep.subr.bf16.mxu0 %v3566
    %3812 = vmatpush1.bf16.msra.mxu0 %v3565
    %3813 = vmatprep.subr.bf16.mxu0 %v3570
    %3814 = vmatpush1.bf16.msra.mxu0 %v3569
    %3815 = vmatprep.subr.bf16.mxu0 %v3574
    %3816 = vmatpush1.bf16.msra.mxu0 %v3573
    %3817 = vmatprep.subr.bf16.mxu0 %v3578
    %3818 = vmatpush1.bf16.msra.mxu0 %v3577
    %3819 = vmatprep.subr.bf16.mxu0 %v3582
    %3820 = vmatpush1.bf16.msra.mxu0 %v3581
    %3821 = vmatprep.subr.bf16.mxu0 %v3586
    %3822 = vmatpush1.bf16.msra.mxu0 %v3585
    %3823 = vmatprep.subr.bf16.mxu0 %v3590
    %3824 = vmatpush1.bf16.msra.mxu0 %v3589
    %3825 = vmatprep.subr.bf16.mxu0 %v3594
    %3826 = vmatpush1.bf16.msra.mxu0 %v3593
    %3827 = vmatprep.subr.bf16.mxu0 %v3598
    %3828 = vmatpush1.bf16.msra.mxu0 %v3597
    %3829 = vmatprep.subr.bf16.mxu0 %v3602
    %3830 = vmatpush1.bf16.msra.mxu0 %v3601
    %3831 = vmatprep.subr.bf16.mxu0 %v3606
    %3832 = vmatpush1.bf16.msra.mxu0 %v3605
    %3833 = vmatprep.mubr.bf16.mxu0 %v3008
    %3834 = vmatmul.mubr.bf16.gmra.mrb[0].mxu0 %v3007
    %v3835 = vpop.f32.mrb[0].mxu0
    %v3836 = vadd.f32 %v3144, %v3835
    %v3837 = vpop.f32.mrb[0].mxu0
    %v3838 = vadd.f32 %v3148, %v3837
    %v3839 = vpop.f32.mrb[0].mxu0
    %v3840 = vpop.f32.mrb[0].mxu0
    %3841 = vdwg.mxu0
    %3842 = vmatprep.subr.bf16.mxu0 %v3610
    %3843 = vmatpush1.bf16.msra.mxu0 %v3609
    %3844 = vmatprep.subr.bf16.mxu0 %v3614
    %3845 = vmatpush1.bf16.msra.mxu0 %v3613
    %3846 = vmatprep.subr.bf16.mxu0 %v3618
    %3847 = vmatpush1.bf16.msra.mxu0 %v3617
    %3848 = vmatprep.subr.bf16.mxu0 %v3622
    %3849 = vmatpush1.bf16.msra.mxu0 %v3621
    %3850 = vmatprep.subr.bf16.mxu0 %v3626
    %3851 = vmatpush1.bf16.msra.mxu0 %v3625
    %3852 = vmatprep.subr.bf16.mxu0 %v3630
    %3853 = vmatpush1.bf16.msra.mxu0 %v3629
    %3854 = vmatprep.subr.bf16.mxu0 %v3634
    %3855 = vmatpush1.bf16.msra.mxu0 %v3633
    %3856 = vmatprep.subr.bf16.mxu0 %v3638
    %3857 = vmatpush1.bf16.msra.mxu0 %v3637
    %3858 = vmatprep.subr.bf16.mxu0 %v3642
    %3859 = vmatpush1.bf16.msra.mxu0 %v3641
    %3860 = vmatprep.subr.bf16.mxu0 %v3646
    %3861 = vmatpush1.bf16.msra.mxu0 %v3645
    %3862 = vmatprep.subr.bf16.mxu0 %v3650
    %3863 = vmatpush1.bf16.msra.mxu0 %v3649
    %3864 = vmatprep.subr.bf16.mxu0 %v3654
    %3865 = vmatpush1.bf16.msra.mxu0 %v3653
    %3866 = vmatprep.subr.bf16.mxu0 %v3658
    %3867 = vmatpush1.bf16.msra.mxu0 %v3657
    %3868 = vmatprep.subr.bf16.mxu0 %v3662
    %3869 = vmatpush1.bf16.msra.mxu0 %v3661
    %3870 = vmatprep.subr.bf16.mxu0 %v3666
    %3871 = vmatpush1.bf16.msra.mxu0 %v3665
    %3872 = vmatprep.subr.bf16.mxu0 %v3670
    %3873 = vmatpush1.bf16.msra.mxu0 %v3669
    %3874 = vmatprep.mubr.bf16.mxu0 %v3010
    %3875 = vmatmul.mubr.bf16.gmra.mrb[0].mxu0 %v3009
    %v3876 = vpop.f32.mrb[0].mxu0
    %v3877 = vadd.f32 %v3836, %v3876
    %v3878 = vpop.f32.mrb[0].mxu0
    %v3879 = vadd.f32 %v3838, %v3878
    %v3880 = vpop.f32.mrb[0].mxu0
    %v3881 = vpop.f32.mrb[0].mxu0
    %3882 = vdwg.mxu0
    %3883 = vmatprep.subr.bf16.mxu0 %v3548
    %3884 = vmatpush1.bf16.msra.mxu0 %v3547
    %3885 = vmatprep.subr.bf16.mxu0 %v3552
    %3886 = vmatpush1.bf16.msra.mxu0 %v3551
    %3887 = vmatprep.subr.bf16.mxu0 %v3556
    %3888 = vmatpush1.bf16.msra.mxu0 %v3555
    %3889 = vmatprep.subr.bf16.mxu0 %v3560
    %3890 = vmatpush1.bf16.msra.mxu0 %v3559
    %3891 = vmatprep.subr.bf16.mxu0 %v3564
    %3892 = vmatpush1.bf16.msra.mxu0 %v3563
    %3893 = vmatprep.subr.bf16.mxu0 %v3568
    %3894 = vmatpush1.bf16.msra.mxu0 %v3567
    %3895 = vmatprep.subr.bf16.mxu0 %v3572
    %3896 = vmatpush1.bf16.msra.mxu0 %v3571
    %3897 = vmatprep.subr.bf16.mxu0 %v3576
    %3898 = vmatpush1.bf16.msra.mxu0 %v3575
    %3899 = vmatprep.subr.bf16.mxu0 %v3580
    %3900 = vmatpush1.bf16.msra.mxu0 %v3579
    %3901 = vmatprep.subr.bf16.mxu0 %v3584
    %3902 = vmatpush1.bf16.msra.mxu0 %v3583
    %3903 = vmatprep.subr.bf16.mxu0 %v3588
    %3904 = vmatpush1.bf16.msra.mxu0 %v3587
    %3905 = vmatprep.subr.bf16.mxu0 %v3592
    %3906 = vmatpush1.bf16.msra.mxu0 %v3591
    %3907 = vmatprep.subr.bf16.mxu0 %v3596
    %3908 = vmatpush1.bf16.msra.mxu0 %v3595
    %3909 = vmatprep.subr.bf16.mxu0 %v3600
    %3910 = vmatpush1.bf16.msra.mxu0 %v3599
    %3911 = vmatprep.subr.bf16.mxu0 %v3604
    %3912 = vmatpush1.bf16.msra.mxu0 %v3603
    %3913 = vmatprep.subr.bf16.mxu0 %v3608
    %3914 = vmatpush1.bf16.msra.mxu0 %v3607
    %3915 = vmatprep.mubr.bf16.mxu0 %v3008
    %3916 = vmatmul.mubr.bf16.gmra.mrb[0].mxu0 %v3007
    %v3917 = vpop.f32.mrb[0].mxu0
    %v3918 = vadd.f32 %v3152, %v3917
    %v3919 = vpop.f32.mrb[0].mxu0
    %v3920 = vadd.f32 %v3156, %v3919
    %v3921 = vpop.f32.mrb[0].mxu0
    %v3922 = vpop.f32.mrb[0].mxu0
    %3923 = vdwg.mxu0
    %3924 = vmatprep.subr.bf16.mxu0 %v3612
    %3925 = vmatpush1.bf16.msra.mxu0 %v3611
    %3926 = vmatprep.subr.bf16.mxu0 %v3616
    %3927 = vmatpush1.bf16.msra.mxu0 %v3615
    %3928 = vmatprep.subr.bf16.mxu0 %v3620
    %3929 = vmatpush1.bf16.msra.mxu0 %v3619
    %3930 = vmatprep.subr.bf16.mxu0 %v3624
    %3931 = vmatpush1.bf16.msra.mxu0 %v3623
    %3932 = vmatprep.subr.bf16.mxu0 %v3628
    %3933 = vmatpush1.bf16.msra.mxu0 %v3627
    %3934 = vmatprep.subr.bf16.mxu0 %v3632
    %3935 = vmatpush1.bf16.msra.mxu0 %v3631
    %3936 = vmatprep.subr.bf16.mxu0 %v3636
    %3937 = vmatpush1.bf16.msra.mxu0 %v3635
    %3938 = vmatprep.subr.bf16.mxu0 %v3640
    %3939 = vmatpush1.bf16.msra.mxu0 %v3639
    %3940 = vmatprep.subr.bf16.mxu0 %v3644
    %3941 = vmatpush1.bf16.msra.mxu0 %v3643
    %3942 = vmatprep.subr.bf16.mxu0 %v3648
    %3943 = vmatpush1.bf16.msra.mxu0 %v3647
    %3944 = vmatprep.subr.bf16.mxu0 %v3652
    %3945 = vmatpush1.bf16.msra.mxu0 %v3651
    %3946 = vmatprep.subr.bf16.mxu0 %v3656
    %3947 = vmatpush1.bf16.msra.mxu0 %v3655
    %3948 = vmatprep.subr.bf16.mxu0 %v3660
    %3949 = vmatpush1.bf16.msra.mxu0 %v3659
    %3950 = vmatprep.subr.bf16.mxu0 %v3664
    %3951 = vmatpush1.bf16.msra.mxu0 %v3663
    %3952 = vmatprep.subr.bf16.mxu0 %v3668
    %3953 = vmatpush1.bf16.msra.mxu0 %v3667
    %3954 = vmatprep.subr.bf16.mxu0 %v3672
    %3955 = vmatpush1.bf16.msra.mxu0 %v3671
    %3956 = vmatprep.mubr.bf16.mxu0 %v3010
    %3957 = vmatmul.mubr.bf16.gmra.mrb[0].mxu0 %v3009
    %v3958 = vpop.f32.mrb[0].mxu0
    %v3959 = vadd.f32 %v3918, %v3958
    %v3960 = vpop.f32.mrb[0].mxu0
    %v3961 = vadd.f32 %v3920, %v3960
    %v3962 = vpop.f32.mrb[0].mxu0
    %v3963 = vpop.f32.mrb[0].mxu0
    %3964 = vdwg.mxu0
    %v3965 = vmax.f32 %v3877, 0.0
    %v3966 = vmax.f32 %v3879, 0.0
    %v3967 = vmax.f32 %v3959, 0.0
    %v3968 = vmax.f32 %v3961, 0.0
    %v3969 = vld [vmem:[%s9] sm:$0xf]
    %v3971 = vlaneseq
    %v3972 = vshrl.u32 %v3971, 7
    %v3973 = vsub.s32 0, %v3972
    %v3974 = vrot.slane %v3969, %v3973
    %v3975 = vlaneseq
    %v3976 = vshrl.u32 %v3975, 7
    %v3977 = vsub.s32 1, %v3976
    %v3978 = vrot.slane %v3969, %v3977
    %v3979 = vlaneseq
    %v3980 = vshrl.u32 %v3979, 7
    %v3981 = vsub.s32 2, %v3980
    %v3982 = vrot.slane %v3969, %v3981
    %v3983 = vlaneseq
    %v3984 = vshrl.u32 %v3983, 7
    %v3985 = vsub.s32 3, %v3984
    %v3986 = vrot.slane %v3969, %v3985
    %v3991 = vmul.f32 %v3965, %v3974
    %v3992 = vmul.f32 %v3966, %v3978
    %v3993 = vmul.f32 %v3967, %v3982
    %v3994 = vmul.f32 %v3968, %v3986
    %v3995 = vadd.f32 %v3991, %v3992
    %v3996 = vadd.f32 %v3995, %v3993
    %v3997 = vadd.f32 %v3996, %v3994
    %3998 = vadd.xlane.f32.xlu0 %v3997
    %v3999 = vpop.xlane.xlu0 %3998
    %v4000 = vld [vmem:[#allocation2] sm:$0x1]
    %s4001 = vtos %v4000
    %v4002 = vstv %s4001
    %v4003 = vadd.f32 %v3999, %v4002
    %v4004 = vtanh.pop %v4003
    %vm4005 = vcmask 7168
    %4006 = vst.msk [vmem:[%s11] sm:$0xff] %vm4005, %v4004
    // Predicated region
    $region74: #{tpu_custom_call.1} parent=1 // pred_check
      _
    $region75: #{tpu_custom_call.1} parent=1 // pred_check_branch
      %4008 = sbr.rel (0) target = $region77
    $region76: #{tpu_custom_call.1} parent=1 // pred_region
      _
    $region77: #{tpu_custom_call.1} parent=1 // pred_fallthru
      _
    // Predicated region
    $region78: #{tpu_custom_call.1} parent=1 // pred_check
      _
    $region79: #{tpu_custom_call.1} parent=1 // pred_check_branch
      %4010 = sbr.rel (0) target = $region81
    $region80: #{tpu_custom_call.1} parent=1 // pred_region
      _
    $region81: #{tpu_custom_call.1} parent=1 // pred_fallthru
      _
    %4011 = vsyncpa [#allocation4], 1
    %4012 = vsyncpa [#allocation6], 1
    %4013 = vsyncpa [#allocation9], 1
    %4014 = vsyncpa [#allocation12], 1

</llo_original>
